<compile_context>
chip_gen: v5e
topology: v5e:2x2
jax: 0.10.0
libtpu: 0.0.40
codegen_flags: <defaults>
</compile_context>

<pallas_src>
import functools

import jax
import jax.numpy as jnp
from jax.experimental import pallas as pl
from jax.experimental.pallas import tpu as pltpu


WEIGHT_DTYPE = jnp.bfloat16     # MXU operand dtype (f32 accumulation)
TARGET_M_ROWS = 256             # per-step matmul M target; ~128 is enough on v5e
N_CLASSES = 10


# ---------------------------------------------------------------------------
# Pallas kernels
# ---------------------------------------------------------------------------
def _conv_relu_pool_kernel(x_ref, w_ref, b_ref, se_ref, o_ref, *,
                           Bt, H, kh, Hp, WpO):
    """Fused valid 3x3 conv + bias + ReLU + 2x2 floor max-pool for Bt images.

    x_ref  : [Bt*H, W*C]        images stacked along rows (channels-last)
    w_ref  : [kh*W*C, 2*Wp*O]   banded weights, columns ordered (q, j, o) bf16
    b_ref  : [1, 2*Wp*O]        bias tiled over (q, j)                    f32
    se_ref : [Hp, 2*Hp]         even-row 0/1 selection                    f32
    o_ref  : [Bt*Hp, Wp*O]      pooled channels-last output slab          f32
    """
    M = Bt * H - (kh - 1)                                   # conv rows (+ boundary garbage)
    xb = x_ref[...].astype(w_ref.dtype)                     # bf16 MXU operand
    # Banded im2col: lane-concat the kh row-shifted slabs -> one big matmul.
    lhs = jnp.concatenate([xb[ki:ki + M, :] for ki in range(kh)], axis=1)
    acc = jnp.dot(lhs, w_ref[...], preferred_element_type=jnp.float32)
    acc = jnp.maximum(acc + b_ref[...], 0.0)                # bias + ReLU   [M, 2*Wp*O]
    # W-pool: even-w and odd-w column blocks are contiguous halves by layout.
    zc = jnp.maximum(acc[:, :WpO], acc[:, WpO:])            # [M, Wp*O]
    # H-pool pair max: z[r] = max(zc[r], zc[r+1]) (shift-by-one via concat;
    # the duplicated last row is never selected).
    zdn = jnp.concatenate([zc[1:, :], zc[M - 1:M, :]], axis=0)
    zr = jnp.maximum(zc, zdn)
    # Per-image even-row selection (tiny exact 0/1 matmul) + store.
    for bi in range(Bt):
        blk = zr[bi * H:bi * H + 2 * Hp, :]                 # valid conv rows only
        o_ref[bi * Hp:(bi + 1) * Hp, :] = jnp.dot(
            se_ref[...], blk, preferred_element_type=jnp.float32
        ).astype(o_ref.dtype)


def _mlp_kernel(x_ref, w1_ref, b1_ref, w2_ref, b2_ref, o_ref):
    """Fused fc1 + ReLU + fc2 on one M-tile (fc1 activation never leaves VMEM)."""
    h = jnp.dot(x_ref[...].astype(w1_ref.dtype), w1_ref[...],
                preferred_element_type=jnp.float32)
    h = jnp.maximum(h + b1_ref[...], 0.0)
    o_ref[...] = (jnp.dot(h.astype(w2_ref.dtype), w2_ref[...],
                          preferred_element_type=jnp.float32)
                  + b2_ref[...]).astype(o_ref.dtype)


# ---------------------------------------------------------------------------
# Tile choosers (static, shape-driven)
# ---------------------------------------------------------------------------
def _choose_batch_tile(B, H, Hp, target_rows=TARGET_M_ROWS):
    """Images per grid step: blocks obey the (8,*) sublane rule, prefer >=2
    grid steps (v7x megacore) and Bt*H near target_rows."""
    ok = lambda bt: (bt * H) % 8 == 0 and (bt * Hp) % 8 == 0
    cands = [bt for bt in range(1, B + 1) if ok(bt)]
    if not cands:                       # tiny batch: single full-array block
        return B, B
    multi = [bt for bt in cands if -(-B // bt) >= 2] or cands
    divs = [bt for bt in multi if B % bt == 0] or multi
    bt = min(divs, key=lambda t: abs(t * H - target_rows))
    return bt, -(-B // bt) * bt


def _choose_m_tile(M, target=TARGET_M_ROWS):
    cands = list(range(8, M + 1, 8))
    if not cands:
        return M, M
    multi = [t for t in cands if -(-M // t) >= 2] or cands
    divs = [t for t in multi if M % t == 0] or multi
    tm = min(divs, key=lambda t: abs(t - target))
    return tm, -(-M // tm) * tm


# ---------------------------------------------------------------------------
# pallas_call wrappers
# ---------------------------------------------------------------------------
def conv_relu_pool(xs, w, b, se, *, H, Hp, WpO, kh, bt):
    """xs: [Bp*H, W*C] -> [Bp*Hp, Wp*O]  (conv -> ReLU -> 2x2 max-pool)."""
    BpH, WC = xs.shape
    Bp = BpH // H
    steps = Bp // bt
    kernel = functools.partial(_conv_relu_pool_kernel,
                               Bt=bt, H=H, kh=kh, Hp=Hp, WpO=WpO)
    return pl.pallas_call(
        kernel,
        out_shape=jax.ShapeDtypeStruct((Bp * Hp, WpO), jnp.float32),
        grid=(steps,),
        in_specs=[
            pl.BlockSpec((bt * H, WC), lambda i: (i, 0)),
            pl.BlockSpec(w.shape, lambda i: (0, 0)),     # resident weights
            pl.BlockSpec(b.shape, lambda i: (0, 0)),
            pl.BlockSpec(se.shape, lambda i: (0, 0)),
        ],
        out_specs=pl.BlockSpec((bt * Hp, WpO), lambda i: (i, 0)),
        compiler_params=pltpu.CompilerParams(
            dimension_semantics=("parallel",),
            vmem_limit_bytes=32 * 1024 * 1024),
    )(xs, w, b, se)


def mlp_head(x, w1, b1, w2, b2, *, tm, Mp):
    """relu(x@w1+b1)@w2+b2 fused; M tiled (padded) with lane-dense N=128 out."""
    M, K = x.shape
    N1 = w1.shape[1]
    N2 = w2.shape[1]
    if Mp != M:
        x = jnp.pad(x, ((0, Mp - M), (0, 0)))
    out = pl.pallas_call(
        _mlp_kernel,
        out_shape=jax.ShapeDtypeStruct((Mp, N2), jnp.float32),
        grid=(Mp // tm,),
        in_specs=[
            pl.BlockSpec((tm, K), lambda i: (i, 0)),
            pl.BlockSpec((K, N1), lambda i: (0, 0)),
            pl.BlockSpec((1, N1), lambda i: (0, 0)),
            pl.BlockSpec((N1, N2), lambda i: (0, 0)),
            pl.BlockSpec((1, N2), lambda i: (0, 0)),
        ],
        out_specs=pl.BlockSpec((tm, N2), lambda i: (i, 0)),
        compiler_params=pltpu.CompilerParams(
            dimension_semantics=("parallel",),
            vmem_limit_bytes=32 * 1024 * 1024),
    )(x, w1, b1, w2, b2)
    return out[:M]


# ---------------------------------------------------------------------------
# Parameters: PyTorch-layout init + one-time kernel-ready preprocessing
# ---------------------------------------------------------------------------
def init_params(key):
    keys = jax.random.split(key, 8)

    def uniform(k, shape, fan_in):
        bound = 1.0 / jnp.sqrt(jnp.float32(fan_in))
        return jax.random.uniform(k, shape, jnp.float32, -bound, bound)

    return {
        "conv1_w": uniform(keys[0], (32, 1, 3, 3), 1 * 3 * 3),
        "conv1_b": uniform(keys[1], (32,), 1 * 3 * 3),
        "conv2_w": uniform(keys[2], (64, 32, 3, 3), 32 * 3 * 3),
        "conv2_b": uniform(keys[3], (64,), 32 * 3 * 3),
        "fc1_w": uniform(keys[4], (128, 64 * 5 * 5), 64 * 5 * 5),
        "fc1_b": uniform(keys[5], (128,), 64 * 5 * 5),
        "fc2_w": uniform(keys[6], (10, 128), 128),
        "fc2_b": uniform(keys[7], (10,), 128),
    }


def _prep_conv(w, b, H, W, dtype=WEIGHT_DTYPE):
    """Banded conv weights + pool constants for one conv layer.

    wb[ki*W*C + u*C + c, q*Wp*O + j*O + o] = w[o, c, ki, u-(2j+q)] (valid taps),
    so the conv is ONE matmul of the lane-concat of kh row-shifted slabs, and
    even-w / odd-w output columns land in contiguous halves (W-pool = max of
    halves).  The odd trailing column (floor pooling) is dropped.
    """
    O, C, kh, kw = w.shape                              # PyTorch layout
    Ho, Wo = H - kh + 1, W - kw + 1
    Hp, Wp = Ho // 2, Wo // 2
    f32 = jnp.float32
    wt = jnp.transpose(w.astype(f32), (2, 3, 1, 0))     # [kh, kw, C, O]
    u = jnp.arange(W)
    col = 2 * jnp.arange(Wp)[None, :] + jnp.arange(2)[:, None]       # w = 2j+q
    sel = (u[None, :, None, None] ==
           (col[None, None, :, :] +
            jnp.arange(kw)[:, None, None, None])).astype(f32)        # [kw,W,2,Wp]
    wb = jnp.einsum("akco,kuqj->aucqjo", wt, sel)                    # [kh,W,C,2,Wp,O]
    wb = wb.reshape(kh * W * C, 2 * Wp * O).astype(dtype)
    b2 = jnp.tile(b.astype(f32), 2 * Wp).reshape(1, 2 * Wp * O)
    se = (jnp.arange(2 * Hp)[None, :] ==
          2 * jnp.arange(Hp)[:, None]).astype(f32)                   # [Hp, 2*Hp]
    return {"w": wb, "b": b2, "se": se}, (Hp, Wp, O)


def prepare_params(params, in_hw=(28, 28)):
    prep = {}
    H, W = in_hw
    C = 1
    for name in ("conv1", "conv2"):
        layer, (Hp, Wp, O) = _prep_conv(params[name + "_w"], params[name + "_b"], H, W)
        prep[name] = layer
        H, W, C = Hp, Wp, O
    # fc1: PyTorch flattens (C, H, W); our activations flatten (H, W, C).
    n_hidden, n_flat = params["fc1_w"].shape
    fc1 = params["fc1_w"].astype(jnp.float32).reshape(n_hidden, C, H, W)
    fc1 = fc1.transpose(0, 2, 3, 1).reshape(n_hidden, n_flat)
    prep["fc1_w"] = fc1.T.astype(WEIGHT_DTYPE)                       # [1600, 128]
    prep["fc1_b"] = params["fc1_b"].astype(jnp.float32).reshape(1, -1)
    # fc2 padded to 128 output lanes (lane-dense store); sliced to 10 outside.
    w2 = params["fc2_w"].astype(jnp.float32).T                       # [128, 10]
    pad_n = (-w2.shape[1]) % 128
    prep["fc2_w"] = jnp.pad(w2, ((0, 0), (0, pad_n))).astype(WEIGHT_DTYPE)
    prep["fc2_b"] = jnp.pad(params["fc2_b"].astype(jnp.float32),
                            (0, pad_n)).reshape(1, -1)
    return prep


# ---------------------------------------------------------------------------
# CNNMnist forward: conv1->relu->pool -> conv2->relu->pool -> fc1->relu -> fc2
# ---------------------------------------------------------------------------
def _conv_layer(layer, xs, B, H, W, C, kh=3, kw=3):
    Ho, Wo = H - kh + 1, W - kw + 1
    Hp, Wp = Ho // 2, Wo // 2
    O = layer["b"].shape[1] // (2 * Wp)
    bt, Bp = _choose_batch_tile(B, H, Hp)
    if Bp != B:
        xs = jnp.pad(xs, ((0, (Bp - B) * H), (0, 0)))
    out = conv_relu_pool(xs, layer["w"], layer["b"], layer["se"],
                         H=H, Hp=Hp, WpO=Wp * O, kh=kh, bt=bt)
    if Bp != B:
        out = out[:B * Hp]
    return out, (Hp, Wp, O)


def cnn_mnist_forward(prep, x):
    # x: [B, 1, 28, 28] float32 NCHW (PyTorch interface) -> [B, 10] logits.
    B, C, H, W = x.shape
    xs = jnp.transpose(x, (0, 2, 3, 1)).reshape(B * H, W * C)   # channels-last slab
    xs, (H, W, C) = _conv_layer(prep["conv1"], xs, B, H, W, C)  # [B*13, 13*32]
    xs, (H, W, C) = _conv_layer(prep["conv2"], xs, B, H, W, C)  # [B*5, 5*64]
    flat = xs.reshape(B, H * W * C)                             # NHWC flatten (fc1 permuted to match)
    tm, Mp = _choose_m_tile(B)
    logits = mlp_head(flat, prep["fc1_w"], prep["fc1_b"],
                      prep["fc2_w"], prep["fc2_b"], tm=tm, Mp=Mp)
    return logits[:, :N_CLASSES]


if __name__ == "__main__":
    key = jax.random.PRNGKey(0)
    pkey, xkey = jax.random.split(key)
    params = init_params(pkey)
    prep = prepare_params(params)            # one-time weight preprocessing
    # Spatial size must be 28x28 for the 64*5*5 flatten to hold; batch=2.
    x = jax.random.normal(xkey, (2, 1, 28, 28), dtype=jnp.float32)
    fwd = jax.jit(cnn_mnist_forward)
    out = jax.block_until_ready(fwd(prep, x))
    assert out.shape == (2, 10) and out.dtype == jnp.float32
    print("KERNEL_OK")
</pallas_src>

<mosaic_0001>
module attributes {stable_mosaic.version = 11 : i64} {
  func.func @_mlp_kernel(%arg0: i32, %arg1: memref<2x1600xf32, #tpu.memory_space<vmem>>, %arg2: memref<1600x128xbf16, #tpu.memory_space<vmem>>, %arg3: memref<1x128xf32, #tpu.memory_space<vmem>>, %arg4: memref<128x128xbf16, #tpu.memory_space<vmem>>, %arg5: memref<1x128xf32, #tpu.memory_space<vmem>>, %arg6: memref<2x128xf32, #tpu.memory_space<vmem>>) attributes {dimension_semantics = [#tpu.dimension_semantics<parallel>], iteration_bounds = array<i64: 1>, scalar_prefetch = 0 : i64, scratch_operands = 0 : i64, tpu.core_type = #tpu.core_type<tc>, window_params = [{transform_indices = @transform_0, window_bounds = array<i64: 2, 1600>}, {pipeline_mode = #tpu.pipeline_mode<synchronous>, transform_indices = @transform_1, window_bounds = array<i64: 1600, 128>}, {pipeline_mode = #tpu.pipeline_mode<synchronous>, transform_indices = @transform_2, window_bounds = array<i64: 1, 128>}, {pipeline_mode = #tpu.pipeline_mode<synchronous>, transform_indices = @transform_3, window_bounds = array<i64: 128, 128>}, {pipeline_mode = #tpu.pipeline_mode<synchronous>, transform_indices = @transform_4, window_bounds = array<i64: 1, 128>}, {transform_indices = @transform_5, window_bounds = array<i64: 2, 128>}]} {
    %c0 = arith.constant 0 : index
    %c0_0 = arith.constant 0 : index
    %0 = vector.load %arg1[%c0, %c0_0] : memref<2x1600xf32, #tpu.memory_space<vmem>>, vector<2x1600xf32>
    %1 = arith.truncf %0 : vector<2x1600xf32> to vector<2x1600xbf16>
    %c0_1 = arith.constant 0 : index
    %c0_2 = arith.constant 0 : index
    %2 = vector.load %arg2[%c0_1, %c0_2] : memref<1600x128xbf16, #tpu.memory_space<vmem>>, vector<1600x128xbf16>
    %cst = arith.constant dense<0.000000e+00> : vector<2x128xf32>
    %3 = tpu.matmul %1, %2, %cst {dimension_numbers = #tpu.dot_dimension_numbers<[1], [0], [0], [1], [0, 0, 1, 1], [], []>} : vector<2x1600xbf16>, vector<1600x128xbf16>, vector<2x128xf32> -> vector<2x128xf32>
    %c0_3 = arith.constant 0 : index
    %c0_4 = arith.constant 0 : index
    %4 = vector.load %arg3[%c0_3, %c0_4] : memref<1x128xf32, #tpu.memory_space<vmem>>, vector<1x128xf32>
    %5 = vector.broadcast %4 : vector<1x128xf32> to vector<2x128xf32>
    %6 = arith.addf %3, %5 : vector<2x128xf32>
    %cst_5 = arith.constant 0.000000e+00 : f32
    %7 = vector.broadcast %cst_5 : f32 to vector<2x128xf32>
    %8 = arith.maximumf %6, %7 : vector<2x128xf32>
    %9 = arith.truncf %8 : vector<2x128xf32> to vector<2x128xbf16>
    %c0_6 = arith.constant 0 : index
    %c0_7 = arith.constant 0 : index
    %10 = vector.load %arg4[%c0_6, %c0_7] : memref<128x128xbf16, #tpu.memory_space<vmem>>, vector<128x128xbf16>
    %cst_8 = arith.constant dense<0.000000e+00> : vector<2x128xf32>
    %11 = tpu.matmul %9, %10, %cst_8 {dimension_numbers = #tpu.dot_dimension_numbers<[1], [0], [0], [1], [0, 0, 1, 1], [], []>} : vector<2x128xbf16>, vector<128x128xbf16>, vector<2x128xf32> -> vector<2x128xf32>
    %c0_9 = arith.constant 0 : index
    %c0_10 = arith.constant 0 : index
    %12 = vector.load %arg5[%c0_9, %c0_10] : memref<1x128xf32, #tpu.memory_space<vmem>>, vector<1x128xf32>
    %13 = vector.broadcast %12 : vector<1x128xf32> to vector<2x128xf32>
    %14 = arith.addf %11, %13 : vector<2x128xf32>
    %c0_11 = arith.constant 0 : index
    %c0_12 = arith.constant 0 : index
    %15 = vector.load %arg6[%c0_11, %c0_12] : memref<2x128xf32, #tpu.memory_space<vmem>>, vector<2x128xf32>
    tpu.vector_store %arg6[%c0_11, %c0_12], %14 {strides = array<i32>} : memref<2x128xf32, #tpu.memory_space<vmem>>, vector<2x128xf32>,
    return
  }
  func.func @transform_0(%arg0: i32) -> (i32, i32) {
    %c0_i32 = arith.constant 0 : i32
    %c0_i32_0 = arith.constant 0 : i32
    return %arg0, %c0_i32 : i32, i32
  }
  func.func @transform_1(%arg0: i32) -> (i32, i32) {
    %c0_i32 = arith.constant 0 : i32
    %c0_i32_0 = arith.constant 0 : i32
    %c0_i32_1 = arith.constant 0 : i32
    return %c0_i32, %c0_i32_0 : i32, i32
  }
  func.func @transform_2(%arg0: i32) -> (i32, i32) {
    %c0_i32 = arith.constant 0 : i32
    %c0_i32_0 = arith.constant 0 : i32
    %c0_i32_1 = arith.constant 0 : i32
    return %c0_i32, %c0_i32_0 : i32, i32
  }
  func.func @transform_3(%arg0: i32) -> (i32, i32) {
    %c0_i32 = arith.constant 0 : i32
    %c0_i32_0 = arith.constant 0 : i32
    %c0_i32_1 = arith.constant 0 : i32
    return %c0_i32, %c0_i32_0 : i32, i32
  }
  func.func @transform_4(%arg0: i32) -> (i32, i32) {
    %c0_i32 = arith.constant 0 : i32
    %c0_i32_0 = arith.constant 0 : i32
    %c0_i32_1 = arith.constant 0 : i32
    return %c0_i32, %c0_i32_0 : i32, i32
  }
  func.func @transform_5(%arg0: i32) -> (i32, i32) {
    %c0_i32 = arith.constant 0 : i32
    %c0_i32_0 = arith.constant 0 : i32
    return %arg0, %c0_i32 : i32, i32
  }
}

module attributes {stable_mosaic.version = 11 : i64} {
  func.func @_conv_relu_pool_kernel(%arg0: i32, %arg1: memref<26x416xf32, #tpu.memory_space<vmem>>, %arg2: memref<1248x640xbf16, #tpu.memory_space<vmem>>, %arg3: memref<1x640xf32, #tpu.memory_space<vmem>>, %arg4: memref<5x10xf32, #tpu.memory_space<vmem>>, %arg5: memref<10x320xf32, #tpu.memory_space<vmem>>) attributes {dimension_semantics = [#tpu.dimension_semantics<parallel>], iteration_bounds = array<i64: 1>, scalar_prefetch = 0 : i64, scratch_operands = 0 : i64, tpu.core_type = #tpu.core_type<tc>, window_params = [{transform_indices = @transform_0, window_bounds = array<i64: 26, 416>}, {pipeline_mode = #tpu.pipeline_mode<synchronous>, transform_indices = @transform_1, window_bounds = array<i64: 1248, 640>}, {pipeline_mode = #tpu.pipeline_mode<synchronous>, transform_indices = @transform_2, window_bounds = array<i64: 1, 640>}, {pipeline_mode = #tpu.pipeline_mode<synchronous>, transform_indices = @transform_3, window_bounds = array<i64: 5, 10>}, {transform_indices = @transform_4, window_bounds = array<i64: 10, 320>}]} {
    %c0 = arith.constant 0 : index
    %c0_0 = arith.constant 0 : index
    %0 = vector.load %arg1[%c0, %c0_0] : memref<26x416xf32, #tpu.memory_space<vmem>>, vector<26x416xf32>
    %1 = arith.truncf %0 : vector<26x416xf32> to vector<26x416xbf16>
    %2 = vector.extract_strided_slice %1 {offsets = [0, 0], sizes = [24, 416], strides = [1, 1]} : vector<26x416xbf16> to vector<24x416xbf16>
    %3 = vector.extract_strided_slice %1 {offsets = [1, 0], sizes = [24, 416], strides = [1, 1]} : vector<26x416xbf16> to vector<24x416xbf16>
    %4 = vector.extract_strided_slice %1 {offsets = [2, 0], sizes = [24, 416], strides = [1, 1]} : vector<26x416xbf16> to vector<24x416xbf16>
    %5 = tpu.concatenate %2, %3, %4 in 1 : vector<24x416xbf16>, vector<24x416xbf16>, vector<24x416xbf16> -> vector<24x1248xbf16>
    %c0_1 = arith.constant 0 : index
    %c0_2 = arith.constant 0 : index
    %6 = vector.load %arg2[%c0_1, %c0_2] : memref<1248x640xbf16, #tpu.memory_space<vmem>>, vector<1248x640xbf16>
    %cst = arith.constant dense<0.000000e+00> : vector<24x640xf32>
    %7 = tpu.matmul %5, %6, %cst {dimension_numbers = #tpu.dot_dimension_numbers<[1], [0], [0], [1], [0, 0, 1, 1], [], []>} : vector<24x1248xbf16>, vector<1248x640xbf16>, vector<24x640xf32> -> vector<24x640xf32>
    %c0_3 = arith.constant 0 : index
    %c0_4 = arith.constant 0 : index
    %8 = vector.load %arg3[%c0_3, %c0_4] : memref<1x640xf32, #tpu.memory_space<vmem>>, vector<1x640xf32>
    %9 = vector.broadcast %8 : vector<1x640xf32> to vector<24x640xf32>
    %10 = arith.addf %7, %9 : vector<24x640xf32>
    %cst_5 = arith.constant 0.000000e+00 : f32
    %11 = vector.broadcast %cst_5 : f32 to vector<24x640xf32>
    %12 = arith.maximumf %10, %11 : vector<24x640xf32>
    %13 = vector.extract_strided_slice %12 {offsets = [0, 0], sizes = [24, 320], strides = [1, 1]} : vector<24x640xf32> to vector<24x320xf32>
    %14 = vector.extract_strided_slice %12 {offsets = [0, 320], sizes = [24, 320], strides = [1, 1]} : vector<24x640xf32> to vector<24x320xf32>
    %15 = arith.maximumf %13, %14 : vector<24x320xf32>
    %16 = vector.extract_strided_slice %15 {offsets = [1, 0], sizes = [23, 320], strides = [1, 1]} : vector<24x320xf32> to vector<23x320xf32>
    %17 = vector.extract_strided_slice %15 {offsets = [23, 0], sizes = [1, 320], strides = [1, 1]} : vector<24x320xf32> to vector<1x320xf32>
    %18 = tpu.concatenate %16, %17 in 0 : vector<23x320xf32>, vector<1x320xf32> -> vector<24x320xf32>
    %19 = arith.maximumf %15, %18 : vector<24x320xf32>
    %20 = vector.extract_strided_slice %19 {offsets = [0, 0], sizes = [10, 320], strides = [1, 1]} : vector<24x320xf32> to vector<10x320xf32>
    %c0_6 = arith.constant 0 : index
    %c0_7 = arith.constant 0 : index
    %21 = vector.load %arg4[%c0_6, %c0_7] : memref<5x10xf32, #tpu.memory_space<vmem>>, vector<5x10xf32>
    %cst_8 = arith.constant dense<0.000000e+00> : vector<5x320xf32>
    %22 = tpu.matmul %21, %20, %cst_8 {dimension_numbers = #tpu.dot_dimension_numbers<[1], [0], [0], [1], [0, 0, 1, 1], [], []>} : vector<5x10xf32>, vector<10x320xf32>, vector<5x320xf32> -> vector<5x320xf32>
    %c0_9 = arith.constant 0 : index
    %c0_10 = arith.constant 0 : index
    %23 = vector.load %arg5[%c0_9, %c0_10] : memref<10x320xf32, #tpu.memory_space<vmem>>, vector<5x320xf32>
    tpu.vector_store %arg5[%c0_9, %c0_10], %22 {strides = array<i32>} : memref<10x320xf32, #tpu.memory_space<vmem>>, vector<5x320xf32>,
    %24 = vector.extract_strided_slice %19 {offsets = [13, 0], sizes = [10, 320], strides = [1, 1]} : vector<24x320xf32> to vector<10x320xf32>
    %c0_11 = arith.constant 0 : index
    %c0_12 = arith.constant 0 : index
    %25 = vector.load %arg4[%c0_11, %c0_12] : memref<5x10xf32, #tpu.memory_space<vmem>>, vector<5x10xf32>
    %cst_13 = arith.constant dense<0.000000e+00> : vector<5x320xf32>
    %26 = tpu.matmul %25, %24, %cst_13 {dimension_numbers = #tpu.dot_dimension_numbers<[1], [0], [0], [1], [0, 0, 1, 1], [], []>} : vector<5x10xf32>, vector<10x320xf32>, vector<5x320xf32> -> vector<5x320xf32>
    %c5 = arith.constant 5 : index
    %c0_14 = arith.constant 0 : index
    %27 = vector.load %arg5[%c5, %c0_14] : memref<10x320xf32, #tpu.memory_space<vmem>>, vector<5x320xf32>
    tpu.vector_store %arg5[%c5, %c0_14], %26 {strides = array<i32>} : memref<10x320xf32, #tpu.memory_space<vmem>>, vector<5x320xf32>,
    return
  }
  func.func @transform_0(%arg0: i32) -> (i32, i32) {
    %c0_i32 = arith.constant 0 : i32
    %c0_i32_0 = arith.constant 0 : i32
    return %arg0, %c0_i32 : i32, i32
  }
  func.func @transform_1(%arg0: i32) -> (i32, i32) {
    %c0_i32 = arith.constant 0 : i32
    %c0_i32_0 = arith.constant 0 : i32
    %c0_i32_1 = arith.constant 0 : i32
    return %c0_i32, %c0_i32_0 : i32, i32
  }
  func.func @transform_2(%arg0: i32) -> (i32, i32) {
    %c0_i32 = arith.constant 0 : i32
    %c0_i32_0 = arith.constant 0 : i32
    %c0_i32_1 = arith.constant 0 : i32
    return %c0_i32, %c0_i32_0 : i32, i32
  }
  func.func @transform_3(%arg0: i32) -> (i32, i32) {
    %c0_i32 = arith.constant 0 : i32
    %c0_i32_0 = arith.constant 0 : i32
    %c0_i32_1 = arith.constant 0 : i32
    return %c0_i32, %c0_i32_0 : i32, i32
  }
  func.func @transform_4(%arg0: i32) -> (i32, i32) {
    %c0_i32 = arith.constant 0 : i32
    %c0_i32_0 = arith.constant 0 : i32
    return %arg0, %c0_i32 : i32, i32
  }
}

module attributes {stable_mosaic.version = 11 : i64} {
  func.func @_conv_relu_pool_kernel(%arg0: i32, %arg1: memref<56x28xf32, #tpu.memory_space<vmem>>, %arg2: memref<84x832xbf16, #tpu.memory_space<vmem>>, %arg3: memref<1x832xf32, #tpu.memory_space<vmem>>, %arg4: memref<13x26xf32, #tpu.memory_space<vmem>>, %arg5: memref<26x416xf32, #tpu.memory_space<vmem>>) attributes {dimension_semantics = [#tpu.dimension_semantics<parallel>], iteration_bounds = array<i64: 1>, scalar_prefetch = 0 : i64, scratch_operands = 0 : i64, tpu.core_type = #tpu.core_type<tc>, window_params = [{transform_indices = @transform_0, window_bounds = array<i64: 56, 28>}, {pipeline_mode = #tpu.pipeline_mode<synchronous>, transform_indices = @transform_1, window_bounds = array<i64: 84, 832>}, {pipeline_mode = #tpu.pipeline_mode<synchronous>, transform_indices = @transform_2, window_bounds = array<i64: 1, 832>}, {pipeline_mode = #tpu.pipeline_mode<synchronous>, transform_indices = @transform_3, window_bounds = array<i64: 13, 26>}, {transform_indices = @transform_4, window_bounds = array<i64: 26, 416>}]} {
    %c0 = arith.constant 0 : index
    %c0_0 = arith.constant 0 : index
    %0 = vector.load %arg1[%c0, %c0_0] : memref<56x28xf32, #tpu.memory_space<vmem>>, vector<56x28xf32>
    %1 = arith.truncf %0 : vector<56x28xf32> to vector<56x28xbf16>
    %2 = vector.extract_strided_slice %1 {offsets = [0, 0], sizes = [54, 28], strides = [1, 1]} : vector<56x28xbf16> to vector<54x28xbf16>
    %3 = vector.extract_strided_slice %1 {offsets = [1, 0], sizes = [54, 28], strides = [1, 1]} : vector<56x28xbf16> to vector<54x28xbf16>
    %4 = vector.extract_strided_slice %1 {offsets = [2, 0], sizes = [54, 28], strides = [1, 1]} : vector<56x28xbf16> to vector<54x28xbf16>
    %5 = tpu.concatenate %2, %3, %4 in 1 : vector<54x28xbf16>, vector<54x28xbf16>, vector<54x28xbf16> -> vector<54x84xbf16>
    %c0_1 = arith.constant 0 : index
    %c0_2 = arith.constant 0 : index
    %6 = vector.load %arg2[%c0_1, %c0_2] : memref<84x832xbf16, #tpu.memory_space<vmem>>, vector<84x832xbf16>
    %cst = arith.constant dense<0.000000e+00> : vector<54x832xf32>
    %7 = tpu.matmul %5, %6, %cst {dimension_numbers = #tpu.dot_dimension_numbers<[1], [0], [0], [1], [0, 0, 1, 1], [], []>} : vector<54x84xbf16>, vector<84x832xbf16>, vector<54x832xf32> -> vector<54x832xf32>
    %c0_3 = arith.constant 0 : index
    %c0_4 = arith.constant 0 : index
    %8 = vector.load %arg3[%c0_3, %c0_4] : memref<1x832xf32, #tpu.memory_space<vmem>>, vector<1x832xf32>
    %9 = vector.broadcast %8 : vector<1x832xf32> to vector<54x832xf32>
    %10 = arith.addf %7, %9 : vector<54x832xf32>
    %cst_5 = arith.constant 0.000000e+00 : f32
    %11 = vector.broadcast %cst_5 : f32 to vector<54x832xf32>
    %12 = arith.maximumf %10, %11 : vector<54x832xf32>
    %13 = vector.extract_strided_slice %12 {offsets = [0, 0], sizes = [54, 416], strides = [1, 1]} : vector<54x832xf32> to vector<54x416xf32>
    %14 = vector.extract_strided_slice %12 {offsets = [0, 416], sizes = [54, 416], strides = [1, 1]} : vector<54x832xf32> to vector<54x416xf32>
    %15 = arith.maximumf %13, %14 : vector<54x416xf32>
    %16 = vector.extract_strided_slice %15 {offsets = [1, 0], sizes = [53, 416], strides = [1, 1]} : vector<54x416xf32> to vector<53x416xf32>
    %17 = vector.extract_strided_slice %15 {offsets = [53, 0], sizes = [1, 416], strides = [1, 1]} : vector<54x416xf32> to vector<1x416xf32>
    %18 = tpu.concatenate %16, %17 in 0 : vector<53x416xf32>, vector<1x416xf32> -> vector<54x416xf32>
    %19 = arith.maximumf %15, %18 : vector<54x416xf32>
    %20 = vector.extract_strided_slice %19 {offsets = [0, 0], sizes = [26, 416], strides = [1, 1]} : vector<54x416xf32> to vector<26x416xf32>
    %c0_6 = arith.constant 0 : index
    %c0_7 = arith.constant 0 : index
    %21 = vector.load %arg4[%c0_6, %c0_7] : memref<13x26xf32, #tpu.memory_space<vmem>>, vector<13x26xf32>
    %cst_8 = arith.constant dense<0.000000e+00> : vector<13x416xf32>
    %22 = tpu.matmul %21, %20, %cst_8 {dimension_numbers = #tpu.dot_dimension_numbers<[1], [0], [0], [1], [0, 0, 1, 1], [], []>} : vector<13x26xf32>, vector<26x416xf32>, vector<13x416xf32> -> vector<13x416xf32>
    %c0_9 = arith.constant 0 : index
    %c0_10 = arith.constant 0 : index
    %23 = vector.load %arg5[%c0_9, %c0_10] : memref<26x416xf32, #tpu.memory_space<vmem>>, vector<13x416xf32>
    tpu.vector_store %arg5[%c0_9, %c0_10], %22 {strides = array<i32>} : memref<26x416xf32, #tpu.memory_space<vmem>>, vector<13x416xf32>,
    %24 = vector.extract_strided_slice %19 {offsets = [28, 0], sizes = [26, 416], strides = [1, 1]} : vector<54x416xf32> to vector<26x416xf32>
    %c0_11 = arith.constant 0 : index
    %c0_12 = arith.constant 0 : index
    %25 = vector.load %arg4[%c0_11, %c0_12] : memref<13x26xf32, #tpu.memory_space<vmem>>, vector<13x26xf32>
    %cst_13 = arith.constant dense<0.000000e+00> : vector<13x416xf32>
    %26 = tpu.matmul %25, %24, %cst_13 {dimension_numbers = #tpu.dot_dimension_numbers<[1], [0], [0], [1], [0, 0, 1, 1], [], []>} : vector<13x26xf32>, vector<26x416xf32>, vector<13x416xf32> -> vector<13x416xf32>
    %c13 = arith.constant 13 : index
    %c0_14 = arith.constant 0 : index
    %27 = vector.load %arg5[%c13, %c0_14] : memref<26x416xf32, #tpu.memory_space<vmem>>, vector<13x416xf32>
    tpu.vector_store %arg5[%c13, %c0_14], %26 {strides = array<i32>} : memref<26x416xf32, #tpu.memory_space<vmem>>, vector<13x416xf32>,
    return
  }
  func.func @transform_0(%arg0: i32) -> (i32, i32) {
    %c0_i32 = arith.constant 0 : i32
    %c0_i32_0 = arith.constant 0 : i32
    return %arg0, %c0_i32 : i32, i32
  }
  func.func @transform_1(%arg0: i32) -> (i32, i32) {
    %c0_i32 = arith.constant 0 : i32
    %c0_i32_0 = arith.constant 0 : i32
    %c0_i32_1 = arith.constant 0 : i32
    return %c0_i32, %c0_i32_0 : i32, i32
  }
  func.func @transform_2(%arg0: i32) -> (i32, i32) {
    %c0_i32 = arith.constant 0 : i32
    %c0_i32_0 = arith.constant 0 : i32
    %c0_i32_1 = arith.constant 0 : i32
    return %c0_i32, %c0_i32_0 : i32, i32
  }
  func.func @transform_3(%arg0: i32) -> (i32, i32) {
    %c0_i32 = arith.constant 0 : i32
    %c0_i32_0 = arith.constant 0 : i32
    %c0_i32_1 = arith.constant 0 : i32
    return %c0_i32, %c0_i32_0 : i32, i32
  }
  func.func @transform_4(%arg0: i32) -> (i32, i32) {
    %c0_i32 = arith.constant 0 : i32
    %c0_i32_0 = arith.constant 0 : i32
    return %arg0, %c0_i32 : i32, i32
  }
}

</mosaic_0001>

<llo_original>
// kernel: cnn_mnist_forward.3
$region0: #{cnn_mnist_forward.3}
  #allocation0 [shape = 'u32[]', space=smem, size = 0x4, offset = 0x4, fixed_abs, tag = 'smem constant byte address 0x4 - core index']
  #allocation1 [shape = 'u32[72,128]{1,0:T(1,128)}', space=vmem, size = 0x9000, scoped, tag = 'internal scratch']
  %s0 = inlined_call_operand.hbm [shape: f32[56,28], index: 0, kind: input, shape index: {}]
  %s1 = inlined_call_operand.hbm [shape: bf16[84,832], index: 1, kind: input, shape index: {}]
  %s2 = inlined_call_operand.hbm [shape: f32[1,832], index: 2, kind: input, shape index: {}]
  %s3 = inlined_call_operand.hbm [shape: f32[13,26], index: 3, kind: input, shape index: {}]
  %s4 = inlined_call_operand.vmem [shape: f32[26,416], index: 4, kind: output, shape index: {}]
  %s5 = sld [smem:[#allocation0]]
  $region42: #{cnn_mnist_forward.3} parent=0
    _
  %s7 = ssub.s32 1, %s5
  %s8 = scalar_select 0, %s7, %s5
  $region1: #{cnn_mnist_forward.3} parent=0
    #allocation2 [shape = 'u8[28672]{0}', space=vmem, size = 0x7000, scoped, tag = 'input window, operand 0, single buffered']
    #allocation3 [shape = 's32[1]{0}', space=sflag, size = 0x4, scoped, tag = 'scoped memory for cnn_mnist_forward.3']
    #allocation4 [shape = 'u8[157696]{0}', space=vmem, size = 0x26800, scoped, tag = 'input window, operand 1, single buffered']
    #allocation5 [shape = 's32[1]{0}', space=sflag, size = 0x4, scoped, tag = 'scoped memory for cnn_mnist_forward.3']
    #allocation6 [shape = 'u8[3584]{0}', space=vmem, size = 0x1000, scoped, tag = 'input window, operand 2, single buffered']
    #allocation7 [shape = 'u8[8192]{0}', space=vmem, size = 0x2000, scoped, tag = 'input window, operand 3, single buffered']
    #allocation8 [shape = 's32[1]{0}', space=sflag, size = 0x4, scoped, tag = 'scoped memory for cnn_mnist_forward.3']
    %9 = vsyncpa [#allocation3], 0
    %10 = vsyncpa [#allocation5], 0
    %11 = vsyncpa [#allocation8], 0
    // Predicated region
    $region2: #{cnn_mnist_forward.3} parent=1 // pred_check
      _
    $region3: #{cnn_mnist_forward.3} parent=1 // pred_check_branch
      %13 = sbr.rel (0) target = $region5
    $region4: #{cnn_mnist_forward.3} parent=1 // pred_region
      %15 = vsyncadd [#allocation3], 0
      %s16 = sshll.u32 %s0, 4
      %s17 = int_to_ptr.hbm [resolvable:$true] %s16
      %s18 = sshll.u32 [#allocation2], 4
      %s19 = int_to_ptr.vmem [resolvable:$true] %s18
      %24 = dma.hbm_to_vmem [thread:$0]  %s17, 896, %s19, [#allocation3], 128, 128, 8
    $region5: #{cnn_mnist_forward.3} parent=1 // pred_fallthru
      _
    // Predicated region
    $region6: #{cnn_mnist_forward.3} parent=1 // pred_check
      _
    $region7: #{cnn_mnist_forward.3} parent=1 // pred_check_branch
      %26 = sbr.rel (0) target = $region9
    $region8: #{cnn_mnist_forward.3} parent=1 // pred_region
      %28 = vsyncadd [#allocation5], 0
      %s29 = sshll.u32 %s1, 4
      %s30 = int_to_ptr.hbm [resolvable:$true] %s29
      %s31 = sshll.u32 [#allocation4], 4
      %s32 = int_to_ptr.vmem [resolvable:$true] %s31
      %37 = dma.hbm_to_vmem [thread:$0]  %s30, 4928, %s32, [#allocation5], 448, 448, 28
    $region9: #{cnn_mnist_forward.3} parent=1 // pred_fallthru
      _
    // Predicated region
    $region10: #{cnn_mnist_forward.3} parent=1 // pred_check
      _
    $region11: #{cnn_mnist_forward.3} parent=1 // pred_check_branch
      %39 = sbr.rel (0) target = $region13
    $region12: #{cnn_mnist_forward.3} parent=1 // pred_region
      %41 = vsyncadd [#allocation5], 0
      %s43 = sshll.u32 %s2, 4
      %s44 = int_to_ptr.hbm [resolvable:$true] %s43
      %s45 = sshll.u32 [#allocation6], 4
      %s46 = int_to_ptr.vmem [resolvable:$true] %s45
      %48 = dma.hbm_to_vmem [thread:$0]  %s44, 112, %s46, [#allocation5]
    $region13: #{cnn_mnist_forward.3} parent=1 // pred_fallthru
      _
    // Predicated region
    $region14: #{cnn_mnist_forward.3} parent=1 // pred_check
      _
    $region15: #{cnn_mnist_forward.3} parent=1 // pred_check_branch
      %50 = sbr.rel (0) target = $region17
    $region16: #{cnn_mnist_forward.3} parent=1 // pred_region
      %52 = vsyncadd [#allocation8], 0
      %s53 = sshll.u32 %s3, 4
      %s54 = int_to_ptr.hbm [resolvable:$true] %s53
      %s55 = sshll.u32 [#allocation7], 4
      %s56 = int_to_ptr.vmem [resolvable:$true] %s55
      %61 = dma.hbm_to_vmem [thread:$0]  %s54, 256, %s56, [#allocation8], 128, 128, 8
    $region17: #{cnn_mnist_forward.3} parent=1 // pred_fallthru
      _
    // Predicated region
    $region18: #{cnn_mnist_forward.3} parent=1 // pred_check
      _
    $region19: #{cnn_mnist_forward.3} parent=1 // pred_check_branch
      %63 = sbr.rel (0) target = $region21
    $region20: #{cnn_mnist_forward.3} parent=1 // pred_region
      %65 = dma.done [#allocation3], 896
    $region21: #{cnn_mnist_forward.3} parent=1 // pred_fallthru
      _
    // Predicated region
    $region22: #{cnn_mnist_forward.3} parent=1 // pred_check
      _
    $region23: #{cnn_mnist_forward.3} parent=1 // pred_check_branch
      %67 = sbr.rel (0) target = $region25
    $region24: #{cnn_mnist_forward.3} parent=1 // pred_region
      %69 = dma.done [#allocation5], 4928
    $region25: #{cnn_mnist_forward.3} parent=1 // pred_fallthru
      _
    // Predicated region
    $region26: #{cnn_mnist_forward.3} parent=1 // pred_check
      _
    $region27: #{cnn_mnist_forward.3} parent=1 // pred_check_branch
      %71 = sbr.rel (0) target = $region29
    $region28: #{cnn_mnist_forward.3} parent=1 // pred_region
      %73 = dma.done [#allocation5], 112
    $region29: #{cnn_mnist_forward.3} parent=1 // pred_fallthru
      _
    // Predicated region
    $region30: #{cnn_mnist_forward.3} parent=1 // pred_check
      _
    $region31: #{cnn_mnist_forward.3} parent=1 // pred_check_branch
      %75 = sbr.rel (0) target = $region33
    $region32: #{cnn_mnist_forward.3} parent=1 // pred_region
      %77 = dma.done [#allocation8], 256
    $region33: #{cnn_mnist_forward.3} parent=1 // pred_fallthru
      _
    %v79 = vld [vmem:[#allocation2] sm:$0xff]
    %v80 = vld [vmem:[#allocation2 + $0x8] sm:$0xff]
    %v81 = vld [vmem:[#allocation2 + $0x10] sm:$0xff]
    %v82 = vld [vmem:[#allocation2 + $0x18] sm:$0xff]
    %v83 = vld [vmem:[#allocation2 + $0x20] sm:$0xff]
    %v84 = vld [vmem:[#allocation2 + $0x28] sm:$0xff]
    %v85 = vld [vmem:[#allocation2 + $0x30] sm:$0xff]
    %v86 = vpack.c.bf16 %v79, %v79
    %v87 = vpack.c.bf16 %v80, %v80
    %v88 = vpack.c.bf16 %v81, %v81
    %v89 = vpack.c.bf16 %v82, %v82
    %v90 = vpack.c.bf16 %v83, %v83
    %v91 = vpack.c.bf16 %v84, %v84
    %v92 = vpack.c.bf16 %v85, %v85
    %v100 = vunpack.c.l.b16 %v86
    %v101 = vunpack.c.l.b16 %v87
    %v102 = vunpack.c.l.b16 %v88
    %v103 = vunpack.c.l.b16 %v89
    %v104 = vunpack.c.l.b16 %v90
    %v105 = vunpack.c.l.b16 %v91
    %v106 = vunpack.c.l.b16 %v92
    %v107 = vpack.c.b16 %v101, %v100
    %v108 = vpack.c.b16 %v103, %v102
    %v109 = vpack.c.b16 %v105, %v104
    %v110 = vpack.c.b16 %v106, %v106
    %vm111 = vsmask.f32 7424
    %v113 = vshrl.u32 %v107, 16
    %v115 = vshll.u32 %v107, 16
    %v117 = vrot.slane %v115, 1
    %v118 = vor.u32 %v113, %v117
    %v120 = vshll.u32 %v108, 16
    %v122 = vrot.slane %v120, 1
    %v123 = vsel %vm111, %v118, %v122
    %v124 = vshrl.u32 %v108, 16
    %v126 = vor.u32 %v124, %v122
    %v128 = vshll.u32 %v109, 16
    %v130 = vrot.slane %v128, 1
    %v131 = vsel %vm111, %v126, %v130
    %v132 = vshrl.u32 %v109, 16
    %v134 = vor.u32 %v132, %v130
    %v136 = vshll.u32 %v110, 16
    %v138 = vrot.slane %v136, 1
    %v139 = vsel %vm111, %v134, %v138
    %v140 = vshrl.u32 %v110, 16
    %v142 = vor.u32 %v140, %v138
    %143 = vrot.lane.b32.xlu0 %v123, 28
    %v144 = vpop.permute.xlu0 %143
    %145 = vrot.lane.b32.xlu0 %v131, 28
    %v146 = vpop.permute.xlu0 %145
    %147 = vrot.lane.b32.xlu0 %v139, 28
    %v148 = vpop.permute.xlu0 %147
    %149 = vrot.lane.b32.xlu0 %v142, 28
    %v150 = vpop.permute.xlu0 %149
    %vm151 = vcmask 1046528
    %v152 = vrot.slane %v107, 1
    %v153 = vrot.slane %v108, 1
    %v154 = vsel %vm151, %v152, %v153
    %v155 = vrot.slane %v109, 1
    %v156 = vsel %vm151, %v153, %v155
    %v157 = vrot.slane %v110, 1
    %v158 = vsel %vm151, %v155, %v157
    %159 = vrot.lane.b32.xlu0 %v154, 56
    %v160 = vpop.permute.xlu0 %159
    %161 = vrot.lane.b32.xlu0 %v156, 56
    %v162 = vpop.permute.xlu0 %161
    %163 = vrot.lane.b32.xlu0 %v158, 56
    %v164 = vpop.permute.xlu0 %163
    %165 = vrot.lane.b32.xlu0 %v157, 56
    %v166 = vpop.permute.xlu0 %165
    %vm167 = vcmask 228352
    %v169 = vsel %vm167, %v107, %v144
    %v171 = vsel %vm167, %v108, %v146
    %v173 = vsel %vm167, %v109, %v148
    %v175 = vsel %vm167, %v110, %v150
    %vm176 = vcmask 457728
    %v178 = vsel %vm176, %v169, %v160
    %v180 = vsel %vm176, %v171, %v162
    %v182 = vsel %vm176, %v173, %v164
    %v184 = vsel %vm176, %v175, %v166
    %v185 = vld [vmem:[#allocation4] sm:$0xff]
    %v186 = vld [vmem:[#allocation4 + $0x8] sm:$0xff]
    %v187 = vld [vmem:[#allocation4 + $0x10] sm:$0xff]
    %v188 = vld [vmem:[#allocation4 + $0x18] sm:$0xf]
    %v189 = vld [vmem:[#allocation4 + $0x1c] sm:$0xff]
    %v190 = vld [vmem:[#allocation4 + $0x24] sm:$0xff]
    %v191 = vld [vmem:[#allocation4 + $0x2c] sm:$0xff]
    %v192 = vld [vmem:[#allocation4 + $0x34] sm:$0xf]
    %v193 = vld [vmem:[#allocation4 + $0x38] sm:$0xff]
    %v194 = vld [vmem:[#allocation4 + $0x40] sm:$0xff]
    %v195 = vld [vmem:[#allocation4 + $0x48] sm:$0xff]
    %v196 = vld [vmem:[#allocation4 + $0x50] sm:$0xf]
    %v197 = vld [vmem:[#allocation4 + $0x54] sm:$0xff]
    %v198 = vld [vmem:[#allocation4 + $0x5c] sm:$0xff]
    %v199 = vld [vmem:[#allocation4 + $0x64] sm:$0xff]
    %v200 = vld [vmem:[#allocation4 + $0x6c] sm:$0xf]
    %v201 = vld [vmem:[#allocation4 + $0x70] sm:$0xff]
    %v202 = vld [vmem:[#allocation4 + $0x78] sm:$0xff]
    %v203 = vld [vmem:[#allocation4 + $0x80] sm:$0xff]
    %v204 = vld [vmem:[#allocation4 + $0x88] sm:$0xf]
    %v205 = vld [vmem:[#allocation4 + $0x8c] sm:$0xff]
    %v206 = vld [vmem:[#allocation4 + $0x94] sm:$0xff]
    %v207 = vld [vmem:[#allocation4 + $0x9c] sm:$0xff]
    %v208 = vld [vmem:[#allocation4 + $0xa4] sm:$0xf]
    %v209 = vld [vmem:[#allocation4 + $0xa8] sm:$0xff]
    %v210 = vld [vmem:[#allocation4 + $0xb0] sm:$0xff]
    %v211 = vld [vmem:[#allocation4 + $0xb8] sm:$0xff]
    %v212 = vld [vmem:[#allocation4 + $0xc0] sm:$0xf]
    %v213 = vld [vmem:[#allocation4 + $0xc4] sm:$0xff]
    %v214 = vld [vmem:[#allocation4 + $0xcc] sm:$0xff]
    %v215 = vld [vmem:[#allocation4 + $0xd4] sm:$0xff]
    %v216 = vld [vmem:[#allocation4 + $0xdc] sm:$0xf]
    %v217 = vld [vmem:[#allocation4 + $0xe0] sm:$0xff]
    %v218 = vld [vmem:[#allocation4 + $0xe8] sm:$0xff]
    %v219 = vld [vmem:[#allocation4 + $0xf0] sm:$0xff]
    %v220 = vld [vmem:[#allocation4 + $0xf8] sm:$0xf]
    %v221 = vld [vmem:[#allocation4 + $0xfc] sm:$0xff]
    %v222 = vld [vmem:[#allocation4 + $0x104] sm:$0xff]
    %v223 = vld [vmem:[#allocation4 + $0x10c] sm:$0xff]
    %v224 = vld [vmem:[#allocation4 + $0x114] sm:$0xf]
    %v225 = vld [vmem:[#allocation4 + $0x118] sm:$0x33]
    %v226 = vld [vmem:[#allocation4 + $0x120] sm:$0x33]
    %v227 = vld [vmem:[#allocation4 + $0x128] sm:$0x33]
    %v228 = vld [vmem:[#allocation4 + $0x130] sm:$0x3]
    %v229 = vld [vmem:[#allocation6] sm:$0x7f]
    %v231 = vperm.slane %v229, 0
    %v232 = vperm.slane %v229, 1
    %v233 = vperm.slane %v229, 2
    %v234 = vperm.slane %v229, 3
    %v235 = vperm.slane %v229, 4
    %v236 = vperm.slane %v229, 5
    %v237 = vperm.slane %v229, 6
    %v289 = vunpack.c.l.b16 %v185
    %v290 = vunpack.c.h.b16 %v185
    %v291 = vunpack.c.l.b16 %v186
    %v292 = vunpack.c.h.b16 %v186
    %v293 = vunpack.c.l.b16 %v187
    %v294 = vunpack.c.h.b16 %v187
    %v295 = vunpack.c.l.b16 %v188
    %v296 = vunpack.c.l.b16 %v189
    %v297 = vunpack.c.h.b16 %v189
    %v298 = vunpack.c.l.b16 %v190
    %v299 = vunpack.c.h.b16 %v190
    %v300 = vunpack.c.l.b16 %v191
    %v301 = vunpack.c.h.b16 %v191
    %v302 = vunpack.c.l.b16 %v192
    %v303 = vunpack.c.l.b16 %v193
    %v304 = vunpack.c.h.b16 %v193
    %v305 = vunpack.c.l.b16 %v194
    %v306 = vunpack.c.h.b16 %v194
    %v307 = vunpack.c.l.b16 %v195
    %v308 = vunpack.c.h.b16 %v195
    %v309 = vunpack.c.l.b16 %v196
    %v310 = vunpack.c.l.b16 %v197
    %v311 = vunpack.c.h.b16 %v197
    %v312 = vunpack.c.l.b16 %v198
    %v313 = vunpack.c.h.b16 %v198
    %v314 = vunpack.c.l.b16 %v199
    %v315 = vunpack.c.h.b16 %v199
    %v316 = vunpack.c.l.b16 %v200
    %v317 = vunpack.c.l.b16 %v201
    %v318 = vunpack.c.h.b16 %v201
    %v319 = vunpack.c.l.b16 %v202
    %v320 = vunpack.c.h.b16 %v202
    %v321 = vunpack.c.l.b16 %v203
    %v322 = vunpack.c.h.b16 %v203
    %v323 = vunpack.c.l.b16 %v204
    %v324 = vunpack.c.l.b16 %v205
    %v325 = vunpack.c.h.b16 %v205
    %v326 = vunpack.c.l.b16 %v206
    %v327 = vunpack.c.h.b16 %v206
    %v328 = vunpack.c.l.b16 %v207
    %v329 = vunpack.c.h.b16 %v207
    %v330 = vunpack.c.l.b16 %v208
    %v331 = vunpack.c.l.b16 %v209
    %v332 = vunpack.c.h.b16 %v209
    %v333 = vunpack.c.l.b16 %v210
    %v334 = vunpack.c.h.b16 %v210
    %v335 = vunpack.c.l.b16 %v211
    %v336 = vunpack.c.h.b16 %v211
    %v337 = vunpack.c.l.b16 %v212
    %v338 = vunpack.c.l.b16 %v213
    %v339 = vunpack.c.h.b16 %v213
    %v340 = vunpack.c.l.b16 %v214
    %v341 = vunpack.c.h.b16 %v214
    %v342 = vunpack.c.l.b16 %v215
    %v343 = vunpack.c.h.b16 %v215
    %v344 = vunpack.c.l.b16 %v216
    %v345 = vunpack.c.l.b16 %v217
    %v346 = vunpack.c.h.b16 %v217
    %v347 = vunpack.c.l.b16 %v218
    %v348 = vunpack.c.h.b16 %v218
    %v349 = vunpack.c.l.b16 %v219
    %v350 = vunpack.c.h.b16 %v219
    %v351 = vunpack.c.l.b16 %v220
    %v352 = vunpack.c.l.b16 %v221
    %v353 = vunpack.c.h.b16 %v221
    %v354 = vunpack.c.l.b16 %v222
    %v355 = vunpack.c.h.b16 %v222
    %v356 = vunpack.c.l.b16 %v223
    %v357 = vunpack.c.h.b16 %v223
    %v358 = vunpack.c.l.b16 %v224
    %v359 = vunpack.c.l.b16 %v225
    %v360 = vunpack.c.h.b16 %v225
    %v361 = vunpack.c.l.b16 %v226
    %v362 = vunpack.c.h.b16 %v226
    %v363 = vunpack.c.l.b16 %v227
    %v364 = vunpack.c.h.b16 %v227
    %v365 = vunpack.c.l.b16 %v228
    %v366 = vpack.c.b16 %v296, %v289
    %v367 = vpack.c.b16 %v297, %v290
    %v368 = vpack.c.b16 %v298, %v291
    %v369 = vpack.c.b16 %v299, %v292
    %v370 = vpack.c.b16 %v300, %v293
    %v371 = vpack.c.b16 %v301, %v294
    %v372 = vpack.c.b16 %v302, %v295
    %v373 = vpack.c.b16 %v310, %v303
    %v374 = vpack.c.b16 %v311, %v304
    %v375 = vpack.c.b16 %v312, %v305
    %v376 = vpack.c.b16 %v313, %v306
    %v377 = vpack.c.b16 %v314, %v307
    %v378 = vpack.c.b16 %v315, %v308
    %v379 = vpack.c.b16 %v316, %v309
    %v380 = vpack.c.b16 %v324, %v317
    %v381 = vpack.c.b16 %v325, %v318
    %v382 = vpack.c.b16 %v326, %v319
    %v383 = vpack.c.b16 %v327, %v320
    %v384 = vpack.c.b16 %v328, %v321
    %v385 = vpack.c.b16 %v329, %v322
    %v386 = vpack.c.b16 %v330, %v323
    %v387 = vpack.c.b16 %v338, %v331
    %v388 = vpack.c.b16 %v339, %v332
    %v389 = vpack.c.b16 %v340, %v333
    %v390 = vpack.c.b16 %v341, %v334
    %v391 = vpack.c.b16 %v342, %v335
    %v392 = vpack.c.b16 %v343, %v336
    %v393 = vpack.c.b16 %v344, %v337
    %v394 = vpack.c.b16 %v352, %v345
    %v395 = vpack.c.b16 %v353, %v346
    %v396 = vpack.c.b16 %v354, %v347
    %v397 = vpack.c.b16 %v355, %v348
    %v398 = vpack.c.b16 %v356, %v349
    %v399 = vpack.c.b16 %v357, %v350
    %v400 = vpack.c.b16 %v358, %v351
    %v401 = vpack.c.b16 %v359, %v359
    %v402 = vpack.c.b16 %v360, %v360
    %v403 = vpack.c.b16 %v361, %v361
    %v404 = vpack.c.b16 %v362, %v362
    %v405 = vpack.c.b16 %v363, %v363
    %v406 = vpack.c.b16 %v364, %v364
    %v407 = vpack.c.b16 %v365, %v365
    %vm443 = vcmask 687104
    %v444 = vsel %vm443, %v178, 0
    %v446 = vsel %vm443, %v180, 0
    %v448 = vsel %vm443, %v182, 0
    %v450 = vsel %vm443, %v184, 0
    %vm452 = vcmask 1041408
    %v454 = vsel %vm452, %v401, 0
    %v457 = vsel %vm452, %v402, 0
    %v460 = vsel %vm452, %v403, 0
    %v463 = vsel %vm452, %v404, 0
    %v466 = vsel %vm452, %v405, 0
    %v469 = vsel %vm452, %v406, 0
    %v472 = vsel %vm452, %v407, 0
    %474 = vmatpush.bf16.msra.mxu0 0
    %475 = vmatpush.bf16.msra.mxu0 0
    %476 = vmatpush.bf16.msra.mxu0 %v454
    %477 = vmatpush.bf16.msra.mxu0 %v394
    %478 = vmatpush.bf16.msra.mxu0 %v387
    %479 = vmatpush.bf16.msra.mxu0 %v380
    %480 = vmatpush.bf16.msra.mxu0 %v373
    %481 = vmatpush.bf16.msra.mxu0 %v366
    %482 = vmatmul.bf16.gmra.mxu0 %v444
    %v483 = vpop.f32.mrf.mxu0
    %v484 = vadd.f32 %v231, %v483
    %v485 = vpop.f32.mrf.mxu0
    %v486 = vadd.f32 %v231, %v485
    %487 = vmatmul.bf16.gmra.mxu0 %v446
    %v488 = vpop.f32.mrf.mxu0
    %v489 = vadd.f32 %v231, %v488
    %v490 = vpop.f32.mrf.mxu0
    %v491 = vadd.f32 %v231, %v490
    %492 = vmatmul.bf16.gmra.mxu0 %v448
    %v493 = vpop.f32.mrf.mxu0
    %v494 = vadd.f32 %v231, %v493
    %v495 = vpop.f32.mrf.mxu0
    %v496 = vadd.f32 %v231, %v495
    %497 = vmatmul.bf16.gmra.mxu0 %v450
    %v498 = vpop.f32.mrf.mxu0
    %v499 = vadd.f32 %v231, %v498
    %v500 = vpop.f32.mrf.mxu0
    %501 = vdwg.mxu0
    %502 = vmatpush.bf16.msra.mxu0 0
    %503 = vmatpush.bf16.msra.mxu0 0
    %504 = vmatpush.bf16.msra.mxu0 %v457
    %505 = vmatpush.bf16.msra.mxu0 %v395
    %506 = vmatpush.bf16.msra.mxu0 %v388
    %507 = vmatpush.bf16.msra.mxu0 %v381
    %508 = vmatpush.bf16.msra.mxu0 %v374
    %509 = vmatpush.bf16.msra.mxu0 %v367
    %510 = vmatmul.bf16.gmra.mxu0 %v444
    %v511 = vpop.f32.mrf.mxu0
    %v512 = vadd.f32 %v232, %v511
    %v513 = vpop.f32.mrf.mxu0
    %v514 = vadd.f32 %v232, %v513
    %515 = vmatmul.bf16.gmra.mxu0 %v446
    %v516 = vpop.f32.mrf.mxu0
    %v517 = vadd.f32 %v232, %v516
    %v518 = vpop.f32.mrf.mxu0
    %v519 = vadd.f32 %v232, %v518
    %520 = vmatmul.bf16.gmra.mxu0 %v448
    %v521 = vpop.f32.mrf.mxu0
    %v522 = vadd.f32 %v232, %v521
    %v523 = vpop.f32.mrf.mxu0
    %v524 = vadd.f32 %v232, %v523
    %525 = vmatmul.bf16.gmra.mxu0 %v450
    %v526 = vpop.f32.mrf.mxu0
    %v527 = vadd.f32 %v232, %v526
    %v528 = vpop.f32.mrf.mxu0
    %529 = vdwg.mxu0
    %530 = vmatpush.bf16.msra.mxu0 0
    %531 = vmatpush.bf16.msra.mxu0 0
    %532 = vmatpush.bf16.msra.mxu0 %v460
    %533 = vmatpush.bf16.msra.mxu0 %v396
    %534 = vmatpush.bf16.msra.mxu0 %v389
    %535 = vmatpush.bf16.msra.mxu0 %v382
    %536 = vmatpush.bf16.msra.mxu0 %v375
    %537 = vmatpush.bf16.msra.mxu0 %v368
    %538 = vmatmul.bf16.gmra.mxu0 %v444
    %v539 = vpop.f32.mrf.mxu0
    %v540 = vadd.f32 %v233, %v539
    %v541 = vpop.f32.mrf.mxu0
    %v542 = vadd.f32 %v233, %v541
    %543 = vmatmul.bf16.gmra.mxu0 %v446
    %v544 = vpop.f32.mrf.mxu0
    %v545 = vadd.f32 %v233, %v544
    %v546 = vpop.f32.mrf.mxu0
    %v547 = vadd.f32 %v233, %v546
    %548 = vmatmul.bf16.gmra.mxu0 %v448
    %v549 = vpop.f32.mrf.mxu0
    %v550 = vadd.f32 %v233, %v549
    %v551 = vpop.f32.mrf.mxu0
    %v552 = vadd.f32 %v233, %v551
    %553 = vmatmul.bf16.gmra.mxu0 %v450
    %v554 = vpop.f32.mrf.mxu0
    %v555 = vadd.f32 %v233, %v554
    %v556 = vpop.f32.mrf.mxu0
    %557 = vdwg.mxu0
    %558 = vmatpush.bf16.msra.mxu0 0
    %559 = vmatpush.bf16.msra.mxu0 0
    %560 = vmatpush.bf16.msra.mxu0 %v463
    %561 = vmatpush.bf16.msra.mxu0 %v397
    %562 = vmatpush.bf16.msra.mxu0 %v390
    %563 = vmatpush.bf16.msra.mxu0 %v383
    %564 = vmatpush.bf16.msra.mxu0 %v376
    %565 = vmatpush.bf16.msra.mxu0 %v369
    %566 = vmatmul.bf16.gmra.mxu0 %v444
    %v567 = vpop.f32.mrf.mxu0
    %v568 = vadd.f32 %v234, %v567
    %v569 = vpop.f32.mrf.mxu0
    %v570 = vadd.f32 %v234, %v569
    %571 = vmatmul.bf16.gmra.mxu0 %v446
    %v572 = vpop.f32.mrf.mxu0
    %v573 = vadd.f32 %v234, %v572
    %v574 = vpop.f32.mrf.mxu0
    %v575 = vadd.f32 %v234, %v574
    %576 = vmatmul.bf16.gmra.mxu0 %v448
    %v577 = vpop.f32.mrf.mxu0
    %v578 = vadd.f32 %v234, %v577
    %v579 = vpop.f32.mrf.mxu0
    %v580 = vadd.f32 %v234, %v579
    %581 = vmatmul.bf16.gmra.mxu0 %v450
    %v582 = vpop.f32.mrf.mxu0
    %v583 = vadd.f32 %v234, %v582
    %v584 = vpop.f32.mrf.mxu0
    %585 = vdwg.mxu0
    %586 = vmatpush.bf16.msra.mxu0 0
    %587 = vmatpush.bf16.msra.mxu0 0
    %588 = vmatpush.bf16.msra.mxu0 %v466
    %589 = vmatpush.bf16.msra.mxu0 %v398
    %590 = vmatpush.bf16.msra.mxu0 %v391
    %591 = vmatpush.bf16.msra.mxu0 %v384
    %592 = vmatpush.bf16.msra.mxu0 %v377
    %593 = vmatpush.bf16.msra.mxu0 %v370
    %594 = vmatmul.bf16.gmra.mxu0 %v444
    %v595 = vpop.f32.mrf.mxu0
    %v596 = vadd.f32 %v235, %v595
    %v597 = vpop.f32.mrf.mxu0
    %v598 = vadd.f32 %v235, %v597
    %599 = vmatmul.bf16.gmra.mxu0 %v446
    %v600 = vpop.f32.mrf.mxu0
    %v601 = vadd.f32 %v235, %v600
    %v602 = vpop.f32.mrf.mxu0
    %v603 = vadd.f32 %v235, %v602
    %604 = vmatmul.bf16.gmra.mxu0 %v448
    %v605 = vpop.f32.mrf.mxu0
    %v606 = vadd.f32 %v235, %v605
    %v607 = vpop.f32.mrf.mxu0
    %v608 = vadd.f32 %v235, %v607
    %609 = vmatmul.bf16.gmra.mxu0 %v450
    %v610 = vpop.f32.mrf.mxu0
    %v611 = vadd.f32 %v235, %v610
    %v612 = vpop.f32.mrf.mxu0
    %613 = vdwg.mxu0
    %614 = vmatpush.bf16.msra.mxu0 0
    %615 = vmatpush.bf16.msra.mxu0 0
    %616 = vmatpush.bf16.msra.mxu0 %v469
    %617 = vmatpush.bf16.msra.mxu0 %v399
    %618 = vmatpush.bf16.msra.mxu0 %v392
    %619 = vmatpush.bf16.msra.mxu0 %v385
    %620 = vmatpush.bf16.msra.mxu0 %v378
    %621 = vmatpush.bf16.msra.mxu0 %v371
    %622 = vmatmul.bf16.gmra.mxu0 %v444
    %v623 = vpop.f32.mrf.mxu0
    %v624 = vadd.f32 %v236, %v623
    %v625 = vpop.f32.mrf.mxu0
    %v626 = vadd.f32 %v236, %v625
    %627 = vmatmul.bf16.gmra.mxu0 %v446
    %v628 = vpop.f32.mrf.mxu0
    %v629 = vadd.f32 %v236, %v628
    %v630 = vpop.f32.mrf.mxu0
    %v631 = vadd.f32 %v236, %v630
    %632 = vmatmul.bf16.gmra.mxu0 %v448
    %v633 = vpop.f32.mrf.mxu0
    %v634 = vadd.f32 %v236, %v633
    %v635 = vpop.f32.mrf.mxu0
    %v636 = vadd.f32 %v236, %v635
    %637 = vmatmul.bf16.gmra.mxu0 %v450
    %v638 = vpop.f32.mrf.mxu0
    %v639 = vadd.f32 %v236, %v638
    %v640 = vpop.f32.mrf.mxu0
    %641 = vdwg.mxu0
    %642 = vmatpush.bf16.msra.mxu0 0
    %643 = vmatpush.bf16.msra.mxu0 0
    %644 = vmatpush.bf16.msra.mxu0 %v472
    %645 = vmatpush.bf16.msra.mxu0 %v400
    %646 = vmatpush.bf16.msra.mxu0 %v393
    %647 = vmatpush.bf16.msra.mxu0 %v386
    %648 = vmatpush.bf16.msra.mxu0 %v379
    %649 = vmatpush.bf16.msra.mxu0 %v372
    %650 = vmatmul.bf16.gmra.mxu0 %v444
    %v651 = vpop.f32.mrf.mxu0
    %v652 = vadd.f32 %v237, %v651
    %v653 = vpop.f32.mrf.mxu0
    %v654 = vadd.f32 %v237, %v653
    %655 = vmatmul.bf16.gmra.mxu0 %v446
    %v656 = vpop.f32.mrf.mxu0
    %v657 = vadd.f32 %v237, %v656
    %v658 = vpop.f32.mrf.mxu0
    %v659 = vadd.f32 %v237, %v658
    %660 = vmatmul.bf16.gmra.mxu0 %v448
    %v661 = vpop.f32.mrf.mxu0
    %v662 = vadd.f32 %v237, %v661
    %v663 = vpop.f32.mrf.mxu0
    %v664 = vadd.f32 %v237, %v663
    %665 = vmatmul.bf16.gmra.mxu0 %v450
    %v666 = vpop.f32.mrf.mxu0
    %v667 = vadd.f32 %v237, %v666
    %v668 = vpop.f32.mrf.mxu0
    %669 = vdwg.mxu0
    %v670 = vmax.f32 %v484, 0.0
    %v671 = vmax.f32 %v512, 0.0
    %v672 = vmax.f32 %v540, 0.0
    %v673 = vmax.f32 %v568, 0.0
    %v674 = vmax.f32 %v596, 0.0
    %v675 = vmax.f32 %v624, 0.0
    %v676 = vmax.f32 %v652, 0.0
    %v677 = vmax.f32 %v486, 0.0
    %v678 = vmax.f32 %v514, 0.0
    %v679 = vmax.f32 %v542, 0.0
    %v680 = vmax.f32 %v570, 0.0
    %v681 = vmax.f32 %v598, 0.0
    %v682 = vmax.f32 %v626, 0.0
    %v683 = vmax.f32 %v654, 0.0
    %v684 = vmax.f32 %v489, 0.0
    %v685 = vmax.f32 %v517, 0.0
    %v686 = vmax.f32 %v545, 0.0
    %v687 = vmax.f32 %v573, 0.0
    %v688 = vmax.f32 %v601, 0.0
    %v689 = vmax.f32 %v629, 0.0
    %v690 = vmax.f32 %v657, 0.0
    %v691 = vmax.f32 %v491, 0.0
    %v692 = vmax.f32 %v519, 0.0
    %v693 = vmax.f32 %v547, 0.0
    %v694 = vmax.f32 %v575, 0.0
    %v695 = vmax.f32 %v603, 0.0
    %v696 = vmax.f32 %v631, 0.0
    %v697 = vmax.f32 %v659, 0.0
    %v698 = vmax.f32 %v494, 0.0
    %v699 = vmax.f32 %v522, 0.0
    %v700 = vmax.f32 %v550, 0.0
    %v701 = vmax.f32 %v578, 0.0
    %v702 = vmax.f32 %v606, 0.0
    %v703 = vmax.f32 %v634, 0.0
    %v704 = vmax.f32 %v662, 0.0
    %v705 = vmax.f32 %v496, 0.0
    %v706 = vmax.f32 %v524, 0.0
    %v707 = vmax.f32 %v552, 0.0
    %v708 = vmax.f32 %v580, 0.0
    %v709 = vmax.f32 %v608, 0.0
    %v710 = vmax.f32 %v636, 0.0
    %v711 = vmax.f32 %v664, 0.0
    %v712 = vmax.f32 %v499, 0.0
    %v713 = vmax.f32 %v527, 0.0
    %v714 = vmax.f32 %v555, 0.0
    %v715 = vmax.f32 %v583, 0.0
    %v716 = vmax.f32 %v611, 0.0
    %v717 = vmax.f32 %v639, 0.0
    %v718 = vmax.f32 %v667, 0.0
    %747 = vrot.lane.b32.xlu0 %v673, 96
    %v748 = vpop.permute.xlu0 %747
    %749 = vrot.lane.b32.xlu0 %v674, 96
    %v750 = vpop.permute.xlu0 %749
    %751 = vrot.lane.b32.xlu0 %v675, 96
    %v752 = vpop.permute.xlu0 %751
    %753 = vrot.lane.b32.xlu0 %v676, 96
    %v754 = vpop.permute.xlu0 %753
    %755 = vrot.lane.b32.xlu0 %v680, 96
    %v756 = vpop.permute.xlu0 %755
    %757 = vrot.lane.b32.xlu0 %v681, 96
    %v758 = vpop.permute.xlu0 %757
    %759 = vrot.lane.b32.xlu0 %v682, 96
    %v760 = vpop.permute.xlu0 %759
    %761 = vrot.lane.b32.xlu0 %v683, 96
    %v762 = vpop.permute.xlu0 %761
    %763 = vrot.lane.b32.xlu0 %v687, 96
    %v764 = vpop.permute.xlu0 %763
    %765 = vrot.lane.b32.xlu0 %v688, 96
    %v766 = vpop.permute.xlu0 %765
    %767 = vrot.lane.b32.xlu0 %v689, 96
    %v768 = vpop.permute.xlu0 %767
    %769 = vrot.lane.b32.xlu0 %v690, 96
    %v770 = vpop.permute.xlu0 %769
    %771 = vrot.lane.b32.xlu0 %v694, 96
    %v772 = vpop.permute.xlu0 %771
    %773 = vrot.lane.b32.xlu0 %v695, 96
    %v774 = vpop.permute.xlu0 %773
    %775 = vrot.lane.b32.xlu0 %v696, 96
    %v776 = vpop.permute.xlu0 %775
    %777 = vrot.lane.b32.xlu0 %v697, 96
    %v778 = vpop.permute.xlu0 %777
    %779 = vrot.lane.b32.xlu0 %v701, 96
    %v780 = vpop.permute.xlu0 %779
    %781 = vrot.lane.b32.xlu0 %v702, 96
    %v782 = vpop.permute.xlu0 %781
    %783 = vrot.lane.b32.xlu0 %v703, 96
    %v784 = vpop.permute.xlu0 %783
    %785 = vrot.lane.b32.xlu0 %v704, 96
    %v786 = vpop.permute.xlu0 %785
    %787 = vrot.lane.b32.xlu0 %v708, 96
    %v788 = vpop.permute.xlu0 %787
    %789 = vrot.lane.b32.xlu0 %v709, 96
    %v790 = vpop.permute.xlu0 %789
    %791 = vrot.lane.b32.xlu0 %v710, 96
    %v792 = vpop.permute.xlu0 %791
    %793 = vrot.lane.b32.xlu0 %v711, 96
    %v794 = vpop.permute.xlu0 %793
    %795 = vrot.lane.b32.xlu0 %v715, 96
    %v796 = vpop.permute.xlu0 %795
    %797 = vrot.lane.b32.xlu0 %v716, 96
    %v798 = vpop.permute.xlu0 %797
    %799 = vrot.lane.b32.xlu0 %v717, 96
    %v800 = vpop.permute.xlu0 %799
    %801 = vrot.lane.b32.xlu0 %v718, 96
    %v802 = vpop.permute.xlu0 %801
    %vm803 = vcmask 785408
    %v804 = vsel %vm803, %v748, %v750
    %v805 = vsel %vm803, %v750, %v752
    %v806 = vsel %vm803, %v752, %v754
    %v807 = vsel %vm803, %v756, %v758
    %v808 = vsel %vm803, %v758, %v760
    %v809 = vsel %vm803, %v760, %v762
    %v810 = vsel %vm803, %v764, %v766
    %v811 = vsel %vm803, %v766, %v768
    %v812 = vsel %vm803, %v768, %v770
    %v813 = vsel %vm803, %v772, %v774
    %v814 = vsel %vm803, %v774, %v776
    %v815 = vsel %vm803, %v776, %v778
    %v816 = vsel %vm803, %v780, %v782
    %v817 = vsel %vm803, %v782, %v784
    %v818 = vsel %vm803, %v784, %v786
    %v819 = vsel %vm803, %v788, %v790
    %v820 = vsel %vm803, %v790, %v792
    %v821 = vsel %vm803, %v792, %v794
    %v822 = vsel %vm803, %v796, %v798
    %v823 = vsel %vm803, %v798, %v800
    %v824 = vsel %vm803, %v800, %v802
    %v853 = vmax.f32 %v670, %v804
    %v854 = vmax.f32 %v671, %v805
    %v855 = vmax.f32 %v672, %v806
    %v856 = vmax.f32 %v673, %v754
    %v857 = vmax.f32 %v677, %v807
    %v858 = vmax.f32 %v678, %v808
    %v859 = vmax.f32 %v679, %v809
    %v860 = vmax.f32 %v680, %v762
    %v861 = vmax.f32 %v684, %v810
    %v862 = vmax.f32 %v685, %v811
    %v863 = vmax.f32 %v686, %v812
    %v864 = vmax.f32 %v687, %v770
    %v865 = vmax.f32 %v691, %v813
    %v866 = vmax.f32 %v692, %v814
    %v867 = vmax.f32 %v693, %v815
    %v868 = vmax.f32 %v694, %v778
    %v869 = vmax.f32 %v698, %v816
    %v870 = vmax.f32 %v699, %v817
    %v871 = vmax.f32 %v700, %v818
    %v872 = vmax.f32 %v701, %v786
    %v873 = vmax.f32 %v705, %v819
    %v874 = vmax.f32 %v706, %v820
    %v875 = vmax.f32 %v707, %v821
    %v876 = vmax.f32 %v708, %v794
    %v877 = vmax.f32 %v712, %v822
    %v878 = vmax.f32 %v713, %v823
    %v879 = vmax.f32 %v714, %v824
    %v880 = vmax.f32 %v715, %v802
    %vm909 = vcmask 1046528
    %v910 = vrot.slane %v853, 1
    %v911 = vrot.slane %v857, 1
    %v912 = vsel %vm909, %v910, %v911
    %v913 = vrot.slane %v854, 1
    %v914 = vrot.slane %v858, 1
    %v915 = vsel %vm909, %v913, %v914
    %v916 = vrot.slane %v855, 1
    %v917 = vrot.slane %v859, 1
    %v918 = vsel %vm909, %v916, %v917
    %v919 = vrot.slane %v856, 1
    %v920 = vrot.slane %v860, 1
    %v921 = vsel %vm909, %v919, %v920
    %v922 = vrot.slane %v861, 1
    %v923 = vsel %vm909, %v911, %v922
    %v924 = vrot.slane %v862, 1
    %v925 = vsel %vm909, %v914, %v924
    %v926 = vrot.slane %v863, 1
    %v927 = vsel %vm909, %v917, %v926
    %v928 = vrot.slane %v864, 1
    %v929 = vsel %vm909, %v920, %v928
    %v930 = vrot.slane %v865, 1
    %v931 = vsel %vm909, %v922, %v930
    %v932 = vrot.slane %v866, 1
    %v933 = vsel %vm909, %v924, %v932
    %v934 = vrot.slane %v867, 1
    %v935 = vsel %vm909, %v926, %v934
    %v936 = vrot.slane %v868, 1
    %v937 = vsel %vm909, %v928, %v936
    %v938 = vrot.slane %v869, 1
    %v939 = vsel %vm909, %v930, %v938
    %v940 = vrot.slane %v870, 1
    %v941 = vsel %vm909, %v932, %v940
    %v942 = vrot.slane %v871, 1
    %v943 = vsel %vm909, %v934, %v942
    %v944 = vrot.slane %v872, 1
    %v945 = vsel %vm909, %v936, %v944
    %v946 = vrot.slane %v873, 1
    %v947 = vsel %vm909, %v938, %v946
    %v948 = vrot.slane %v874, 1
    %v949 = vsel %vm909, %v940, %v948
    %v950 = vrot.slane %v875, 1
    %v951 = vsel %vm909, %v942, %v950
    %v952 = vrot.slane %v876, 1
    %v953 = vsel %vm909, %v944, %v952
    %v954 = vrot.slane %v877, 1
    %v955 = vsel %vm909, %v946, %v954
    %v956 = vrot.slane %v878, 1
    %v957 = vsel %vm909, %v948, %v956
    %v958 = vrot.slane %v879, 1
    %v959 = vsel %vm909, %v950, %v958
    %v960 = vrot.slane %v880, 1
    %v961 = vsel %vm909, %v952, %v960
    %vm990 = vcmask 1044480
    %v991 = vsel %vm990, %v954, %v877
    %v992 = vsel %vm990, %v956, %v878
    %v993 = vsel %vm990, %v958, %v879
    %v994 = vsel %vm990, %v960, %v880
    %v995 = vmax.f32 %v853, %v912
    %v996 = vmax.f32 %v854, %v915
    %v997 = vmax.f32 %v855, %v918
    %v998 = vmax.f32 %v856, %v921
    %v999 = vmax.f32 %v857, %v923
    %v1000 = vmax.f32 %v858, %v925
    %v1001 = vmax.f32 %v859, %v927
    %v1002 = vmax.f32 %v860, %v929
    %v1003 = vmax.f32 %v861, %v931
    %v1004 = vmax.f32 %v862, %v933
    %v1005 = vmax.f32 %v863, %v935
    %v1006 = vmax.f32 %v864, %v937
    %v1007 = vmax.f32 %v865, %v939
    %v1008 = vmax.f32 %v866, %v941
    %v1009 = vmax.f32 %v867, %v943
    %v1010 = vmax.f32 %v868, %v945
    %v1011 = vmax.f32 %v869, %v947
    %v1012 = vmax.f32 %v870, %v949
    %v1013 = vmax.f32 %v871, %v951
    %v1014 = vmax.f32 %v872, %v953
    %v1015 = vmax.f32 %v873, %v955
    %v1016 = vmax.f32 %v874, %v957
    %v1017 = vmax.f32 %v875, %v959
    %v1018 = vmax.f32 %v876, %v961
    %v1019 = vmax.f32 %v877, %v991
    %v1020 = vmax.f32 %v878, %v992
    %v1021 = vmax.f32 %v879, %v993
    %v1022 = vmax.f32 %v880, %v994
    %v1023 = vld [vmem:[#allocation7] sm:$0xff]
    %v1024 = vld [vmem:[#allocation7 + $0x8] sm:$0x1f]
    %vm1025 = vcmask 211968
    %v1027 = vsel %vm1025, %v1023, 0
    %v1030 = vsel %vm1025, %v1024, 0
    %v1033 = vsel %vm452, %v1007, 0
    %v1036 = vsel %vm452, %v1008, 0
    %v1039 = vsel %vm452, %v1009, 0
    %v1042 = vsel %vm452, %v1010, 0
    %1044 = vmatpush.msra.mxu0 0.0
    %1045 = vmatpush.msra.mxu0 0.0
    %1046 = vmatpush.msra.mxu0 0.0
    %1047 = vmatpush.msra.mxu0 0.0
    %1048 = vmatpush.msra.mxu0 0.0
    %1049 = vmatpush.msra.mxu0 0.0
    %1050 = vmatpush.msra.mxu0 0.0
    %1051 = vmatpush.msra.mxu0 0.0
    %1052 = vmatpush.msra.mxu0 0.0
    %1053 = vmatpush.msra.mxu0 0.0
    %1054 = vmatpush.msra.mxu0 0.0
    %1055 = vmatpush.msra.mxu0 0.0
    %1056 = vmatpush.msra.mxu0 %v1033
    %1057 = vmatpush.msra.mxu0 %v1003
    %1058 = vmatpush.msra.mxu0 %v999
    %1059 = vmatpush.msra.mxu0 %v995
    %1060 = vmatmul.f32.gmra.mxu0 %v1027
    %v1061 = vpop.f32.mrf.mxu0
    %v1062 = vadd.f32 0.0, %v1061
    %1063 = vmatmul.f32.gmra.mxu0 %v1030
    %v1064 = vpop.f32.mrf.mxu0
    %v1065 = vadd.f32 0.0, %v1064
    %1066 = vdwg.mxu0
    %1067 = vmatpush.msra.mxu0 0.0
    %1068 = vmatpush.msra.mxu0 0.0
    %1069 = vmatpush.msra.mxu0 0.0
    %1070 = vmatpush.msra.mxu0 0.0
    %1071 = vmatpush.msra.mxu0 0.0
    %1072 = vmatpush.msra.mxu0 0.0
    %1073 = vmatpush.msra.mxu0 0.0
    %1074 = vmatpush.msra.mxu0 0.0
    %1075 = vmatpush.msra.mxu0 0.0
    %1076 = vmatpush.msra.mxu0 0.0
    %1077 = vmatpush.msra.mxu0 0.0
    %1078 = vmatpush.msra.mxu0 0.0
    %1079 = vmatpush.msra.mxu0 %v1036
    %1080 = vmatpush.msra.mxu0 %v1004
    %1081 = vmatpush.msra.mxu0 %v1000
    %1082 = vmatpush.msra.mxu0 %v996
    %1083 = vmatmul.f32.gmra.mxu0 %v1027
    %v1084 = vpop.f32.mrf.mxu0
    %v1085 = vadd.f32 0.0, %v1084
    %1086 = vmatmul.f32.gmra.mxu0 %v1030
    %v1087 = vpop.f32.mrf.mxu0
    %v1088 = vadd.f32 0.0, %v1087
    %1089 = vdwg.mxu0
    %1090 = vmatpush.msra.mxu0 0.0
    %1091 = vmatpush.msra.mxu0 0.0
    %1092 = vmatpush.msra.mxu0 0.0
    %1093 = vmatpush.msra.mxu0 0.0
    %1094 = vmatpush.msra.mxu0 0.0
    %1095 = vmatpush.msra.mxu0 0.0
    %1096 = vmatpush.msra.mxu0 0.0
    %1097 = vmatpush.msra.mxu0 0.0
    %1098 = vmatpush.msra.mxu0 0.0
    %1099 = vmatpush.msra.mxu0 0.0
    %1100 = vmatpush.msra.mxu0 0.0
    %1101 = vmatpush.msra.mxu0 0.0
    %1102 = vmatpush.msra.mxu0 %v1039
    %1103 = vmatpush.msra.mxu0 %v1005
    %1104 = vmatpush.msra.mxu0 %v1001
    %1105 = vmatpush.msra.mxu0 %v997
    %1106 = vmatmul.f32.gmra.mxu0 %v1027
    %v1107 = vpop.f32.mrf.mxu0
    %v1108 = vadd.f32 0.0, %v1107
    %1109 = vmatmul.f32.gmra.mxu0 %v1030
    %v1110 = vpop.f32.mrf.mxu0
    %v1111 = vadd.f32 0.0, %v1110
    %1112 = vdwg.mxu0
    %1113 = vmatpush.msra.mxu0 0.0
    %1114 = vmatpush.msra.mxu0 0.0
    %1115 = vmatpush.msra.mxu0 0.0
    %1116 = vmatpush.msra.mxu0 0.0
    %1117 = vmatpush.msra.mxu0 0.0
    %1118 = vmatpush.msra.mxu0 0.0
    %1119 = vmatpush.msra.mxu0 0.0
    %1120 = vmatpush.msra.mxu0 0.0
    %1121 = vmatpush.msra.mxu0 0.0
    %1122 = vmatpush.msra.mxu0 0.0
    %1123 = vmatpush.msra.mxu0 0.0
    %1124 = vmatpush.msra.mxu0 0.0
    %1125 = vmatpush.msra.mxu0 %v1042
    %1126 = vmatpush.msra.mxu0 %v1006
    %1127 = vmatpush.msra.mxu0 %v1002
    %1128 = vmatpush.msra.mxu0 %v998
    %1129 = vmatmul.f32.gmra.mxu0 %v1027
    %v1130 = vpop.f32.mrf.mxu0
    %v1131 = vadd.f32 0.0, %v1130
    %1132 = vmatmul.f32.gmra.mxu0 %v1030
    %v1133 = vpop.f32.mrf.mxu0
    %v1134 = vadd.f32 0.0, %v1133
    %1135 = vdwg.mxu0
    %1136 = vst [vmem:[%s4] sm:$0xff] %v1062
    %1137 = vst [vmem:[%s4 + $0x8] sm:$0xff] %v1085
    %1138 = vst [vmem:[%s4 + $0x10] sm:$0xff] %v1108
    %vm1139 = vcmask 261120
    %1140 = vst.msk [vmem:[%s4 + $0x18] sm:$0xff] %vm1139, %v1131
    %1141 = vst [vmem:[%s4 + $0x20] sm:$0x1f] %v1065
    %1142 = vst [vmem:[%s4 + $0x28] sm:$0x1f] %v1088
    %1143 = vst [vmem:[%s4 + $0x30] sm:$0x1f] %v1111
    %vm1144 = vcmask 258048
    %1145 = vst.msk [vmem:[%s4 + $0x38] sm:$0x1f] %vm1144, %v1134
    %v1146 = vld [vmem:[#allocation7] sm:$0xff]
    %v1147 = vld [vmem:[#allocation7 + $0x8] sm:$0x1f]
    %vm1160 = vcmask 1043456
    %v1161 = vrot.slane %v1007, 4
    %v1162 = vrot.slane %v1011, 4
    %v1163 = vsel %vm1160, %v1161, %v1162
    %v1164 = vrot.slane %v1008, 4
    %v1165 = vrot.slane %v1012, 4
    %v1166 = vsel %vm1160, %v1164, %v1165
    %v1167 = vrot.slane %v1009, 4
    %v1168 = vrot.slane %v1013, 4
    %v1169 = vsel %vm1160, %v1167, %v1168
    %v1170 = vrot.slane %v1010, 4
    %v1171 = vrot.slane %v1014, 4
    %v1172 = vsel %vm1160, %v1170, %v1171
    %v1173 = vrot.slane %v1015, 4
    %v1174 = vsel %vm1160, %v1162, %v1173
    %v1175 = vrot.slane %v1016, 4
    %v1176 = vsel %vm1160, %v1165, %v1175
    %v1177 = vrot.slane %v1017, 4
    %v1178 = vsel %vm1160, %v1168, %v1177
    %v1179 = vrot.slane %v1018, 4
    %v1180 = vsel %vm1160, %v1171, %v1179
    %v1181 = vrot.slane %v1019, 4
    %v1182 = vsel %vm1160, %v1173, %v1181
    %v1183 = vrot.slane %v1020, 4
    %v1184 = vsel %vm1160, %v1175, %v1183
    %v1185 = vrot.slane %v1021, 4
    %v1186 = vsel %vm1160, %v1177, %v1185
    %v1187 = vrot.slane %v1022, 4
    %v1188 = vsel %vm1160, %v1179, %v1187
    %v1202 = vsel %vm1025, %v1146, 0
    %v1205 = vsel %vm1025, %v1147, 0
    %v1207 = vsel %vm452, %v1181, 0
    %v1209 = vsel %vm452, %v1183, 0
    %v1211 = vsel %vm452, %v1185, 0
    %v1213 = vsel %vm452, %v1187, 0
    %1215 = vmatpush.msra.mxu0 0.0
    %1216 = vmatpush.msra.mxu0 0.0
    %1217 = vmatpush.msra.mxu0 0.0
    %1218 = vmatpush.msra.mxu0 0.0
    %1219 = vmatpush.msra.mxu0 0.0
    %1220 = vmatpush.msra.mxu0 0.0
    %1221 = vmatpush.msra.mxu0 0.0
    %1222 = vmatpush.msra.mxu0 0.0
    %1223 = vmatpush.msra.mxu0 0.0
    %1224 = vmatpush.msra.mxu0 0.0
    %1225 = vmatpush.msra.mxu0 0.0
    %1226 = vmatpush.msra.mxu0 0.0
    %1227 = vmatpush.msra.mxu0 %v1207
    %1228 = vmatpush.msra.mxu0 %v1182
    %1229 = vmatpush.msra.mxu0 %v1174
    %1230 = vmatpush.msra.mxu0 %v1163
    %1231 = vmatmul.f32.gmra.mxu0 %v1202
    %v1232 = vpop.f32.mrf.mxu0
    %v1233 = vadd.f32 0.0, %v1232
    %1234 = vmatmul.f32.gmra.mxu0 %v1205
    %v1235 = vpop.f32.mrf.mxu0
    %v1236 = vadd.f32 0.0, %v1235
    %1237 = vdwg.mxu0
    %1238 = vmatpush.msra.mxu0 0.0
    %1239 = vmatpush.msra.mxu0 0.0
    %1240 = vmatpush.msra.mxu0 0.0
    %1241 = vmatpush.msra.mxu0 0.0
    %1242 = vmatpush.msra.mxu0 0.0
    %1243 = vmatpush.msra.mxu0 0.0
    %1244 = vmatpush.msra.mxu0 0.0
    %1245 = vmatpush.msra.mxu0 0.0
    %1246 = vmatpush.msra.mxu0 0.0
    %1247 = vmatpush.msra.mxu0 0.0
    %1248 = vmatpush.msra.mxu0 0.0
    %1249 = vmatpush.msra.mxu0 0.0
    %1250 = vmatpush.msra.mxu0 %v1209
    %1251 = vmatpush.msra.mxu0 %v1184
    %1252 = vmatpush.msra.mxu0 %v1176
    %1253 = vmatpush.msra.mxu0 %v1166
    %1254 = vmatmul.f32.gmra.mxu0 %v1202
    %v1255 = vpop.f32.mrf.mxu0
    %v1256 = vadd.f32 0.0, %v1255
    %1257 = vmatmul.f32.gmra.mxu0 %v1205
    %v1258 = vpop.f32.mrf.mxu0
    %v1259 = vadd.f32 0.0, %v1258
    %1260 = vdwg.mxu0
    %1261 = vmatpush.msra.mxu0 0.0
    %1262 = vmatpush.msra.mxu0 0.0
    %1263 = vmatpush.msra.mxu0 0.0
    %1264 = vmatpush.msra.mxu0 0.0
    %1265 = vmatpush.msra.mxu0 0.0
    %1266 = vmatpush.msra.mxu0 0.0
    %1267 = vmatpush.msra.mxu0 0.0
    %1268 = vmatpush.msra.mxu0 0.0
    %1269 = vmatpush.msra.mxu0 0.0
    %1270 = vmatpush.msra.mxu0 0.0
    %1271 = vmatpush.msra.mxu0 0.0
    %1272 = vmatpush.msra.mxu0 0.0
    %1273 = vmatpush.msra.mxu0 %v1211
    %1274 = vmatpush.msra.mxu0 %v1186
    %1275 = vmatpush.msra.mxu0 %v1178
    %1276 = vmatpush.msra.mxu0 %v1169
    %1277 = vmatmul.f32.gmra.mxu0 %v1202
    %v1278 = vpop.f32.mrf.mxu0
    %v1279 = vadd.f32 0.0, %v1278
    %1280 = vmatmul.f32.gmra.mxu0 %v1205
    %v1281 = vpop.f32.mrf.mxu0
    %v1282 = vadd.f32 0.0, %v1281
    %1283 = vdwg.mxu0
    %1284 = vmatpush.msra.mxu0 0.0
    %1285 = vmatpush.msra.mxu0 0.0
    %1286 = vmatpush.msra.mxu0 0.0
    %1287 = vmatpush.msra.mxu0 0.0
    %1288 = vmatpush.msra.mxu0 0.0
    %1289 = vmatpush.msra.mxu0 0.0
    %1290 = vmatpush.msra.mxu0 0.0
    %1291 = vmatpush.msra.mxu0 0.0
    %1292 = vmatpush.msra.mxu0 0.0
    %1293 = vmatpush.msra.mxu0 0.0
    %1294 = vmatpush.msra.mxu0 0.0
    %1295 = vmatpush.msra.mxu0 0.0
    %1296 = vmatpush.msra.mxu0 %v1213
    %1297 = vmatpush.msra.mxu0 %v1188
    %1298 = vmatpush.msra.mxu0 %v1180
    %1299 = vmatpush.msra.mxu0 %v1172
    %1300 = vmatmul.f32.gmra.mxu0 %v1202
    %v1301 = vpop.f32.mrf.mxu0
    %v1302 = vadd.f32 0.0, %v1301
    %1303 = vmatmul.f32.gmra.mxu0 %v1205
    %v1304 = vpop.f32.mrf.mxu0
    %v1305 = vadd.f32 0.0, %v1304
    %1306 = vdwg.mxu0
    %v1315 = vrot.slane %v1233, 3
    %v1316 = vrot.slane %v1256, 3
    %v1317 = vrot.slane %v1279, 3
    %v1318 = vrot.slane %v1302, 3
    %v1319 = vrot.slane %v1236, 3
    %v1320 = vsel %vm990, %v1315, %v1319
    %v1321 = vrot.slane %v1259, 3
    %v1322 = vsel %vm990, %v1316, %v1321
    %v1323 = vrot.slane %v1282, 3
    %v1324 = vsel %vm990, %v1317, %v1323
    %v1325 = vrot.slane %v1305, 3
    %v1326 = vsel %vm990, %v1318, %v1325
    %1339 = vst [vmem:[%s4 + $0x20] sm:$0xe0] %v1315
    %1340 = vst [vmem:[%s4 + $0x28] sm:$0xe0] %v1316
    %1341 = vst [vmem:[%s4 + $0x30] sm:$0xe0] %v1317
    %vm1342 = vcmask 261125
    %1343 = vst.msk [vmem:[%s4 + $0x38] sm:$0xe0] %vm1342, %v1318
    %1344 = vst [vmem:[%s4 + $0x40] sm:$0xff] %v1320
    %1345 = vst [vmem:[%s4 + $0x48] sm:$0xff] %v1322
    %1346 = vst [vmem:[%s4 + $0x50] sm:$0xff] %v1324
    %1347 = vst.msk [vmem:[%s4 + $0x58] sm:$0xff] %vm1139, %v1326
    %1348 = vst [vmem:[%s4 + $0x60] sm:$0x3] %v1319
    %1349 = vst [vmem:[%s4 + $0x68] sm:$0x3] %v1321
    %1350 = vst [vmem:[%s4 + $0x70] sm:$0x3] %v1323
    %vm1351 = vcmask 254976
    %1352 = vst.msk [vmem:[%s4 + $0x78] sm:$0x3] %vm1351, %v1325
    // Predicated region
    $region34: #{cnn_mnist_forward.3} parent=1 // pred_check
      _
    $region35: #{cnn_mnist_forward.3} parent=1 // pred_check_branch
      %1354 = sbr.rel (0) target = $region37
    $region36: #{cnn_mnist_forward.3} parent=1 // pred_region
      _
    $region37: #{cnn_mnist_forward.3} parent=1 // pred_fallthru
      _
    // Predicated region
    $region38: #{cnn_mnist_forward.3} parent=1 // pred_check
      _
    $region39: #{cnn_mnist_forward.3} parent=1 // pred_check_branch
      %1356 = sbr.rel (0) target = $region41
    $region40: #{cnn_mnist_forward.3} parent=1 // pred_region
      _
    $region41: #{cnn_mnist_forward.3} parent=1 // pred_fallthru
      _
    %1357 = vsyncpa [#allocation3], 1
    %1358 = vsyncpa [#allocation5], 1
    %1359 = vsyncpa [#allocation8], 1

// kernel: cnn_mnist_forward.5
$region0: #{cnn_mnist_forward.5}
  #allocation0 [shape = 'u32[]', space=smem, size = 0x4, offset = 0x4, fixed_abs, tag = 'smem constant byte address 0x4 - core index']
  #allocation1 [shape = 'u32[72,128]{1,0:T(1,128)}', space=vmem, size = 0x9000, scoped, tag = 'internal scratch']
  %s0 = inlined_call_operand.vmem [shape: f32[2,1600], index: 0, kind: input, shape index: {}]
  %s1 = inlined_call_operand.hbm [shape: bf16[1600,128], index: 1, kind: input, shape index: {}]
  %s2 = inlined_call_operand.hbm [shape: f32[1,128], index: 2, kind: input, shape index: {}]
  %s3 = inlined_call_operand.hbm [shape: bf16[128,128], index: 3, kind: input, shape index: {}]
  %s4 = inlined_call_operand.hbm [shape: f32[1,128], index: 4, kind: input, shape index: {}]
  %s5 = inlined_call_operand.hbm [shape: f32[2,128], index: 5, kind: output, shape index: {}]
  %s6 = sld [smem:[#allocation0]]
  $region46: #{cnn_mnist_forward.5} parent=0
    _
  %s8 = ssub.s32 1, %s6
  %s9 = scalar_select 0, %s8, %s6
  $region1: #{cnn_mnist_forward.5} parent=0
    #allocation2 [shape = 'u8[409600]{0}', space=vmem, size = 0x64000, scoped, tag = 'input window, operand 1, single buffered']
    #allocation3 [shape = 's32[1]{0}', space=sflag, size = 0x4, scoped, tag = 'scoped memory for cnn_mnist_forward.5']
    #allocation4 [shape = 's32[1]{0}', space=sflag, size = 0x4, scoped, tag = 'scoped memory for cnn_mnist_forward.5']
    #allocation5 [shape = 'u8[512]{0}', space=vmem, size = 0x400, scoped, tag = 'input window, operand 2, single buffered']
    #allocation6 [shape = 's32[1]{0}', space=sflag, size = 0x4, scoped, tag = 'scoped memory for cnn_mnist_forward.5']
    #allocation7 [shape = 'u8[32768]{0}', space=vmem, size = 0x8000, scoped, tag = 'input window, operand 3, single buffered']
    #allocation8 [shape = 'u8[512]{0}', space=vmem, size = 0x400, scoped, tag = 'input window, operand 4, single buffered']
    #allocation9 [shape = 's32[1]{0}', space=sflag, size = 0x4, scoped, tag = 'scoped memory for cnn_mnist_forward.5']
    #allocation10 [shape = 'u8[1024]{0}', space=vmem, size = 0x400, scoped, tag = 'output window, operand 0, single buffered']
    %10 = vsyncpa [#allocation3], 0
    %11 = vsyncpa [#allocation6], 0
    %12 = vsyncpa [#allocation9], 0
    %13 = vsyncpa [#allocation4], 0
    // Predicated region
    $region2: #{cnn_mnist_forward.5} parent=1 // pred_check
      _
    $region3: #{cnn_mnist_forward.5} parent=1 // pred_check_branch
      %15 = sbr.rel (0) target = $region5
    $region4: #{cnn_mnist_forward.5} parent=1 // pred_region
      _
    $region5: #{cnn_mnist_forward.5} parent=1 // pred_fallthru
      _
    // Predicated region
    $region6: #{cnn_mnist_forward.5} parent=1 // pred_check
      _
    $region7: #{cnn_mnist_forward.5} parent=1 // pred_check_branch
      %17 = sbr.rel (0) target = $region9
    $region8: #{cnn_mnist_forward.5} parent=1 // pred_region
      %19 = vsyncadd [#allocation3], 0
      %s20 = sshll.u32 %s1, 4
      %s21 = int_to_ptr.hbm [resolvable:$true] %s20
      %s22 = sshll.u32 [#allocation2], 4
      %s23 = int_to_ptr.vmem [resolvable:$true] %s22
      %28 = dma.hbm_to_vmem [thread:$0]  %s21, 12800, %s23, [#allocation3], 64, 64, 4
    $region9: #{cnn_mnist_forward.5} parent=1 // pred_fallthru
      _
    // Predicated region
    $region10: #{cnn_mnist_forward.5} parent=1 // pred_check
      _
    $region11: #{cnn_mnist_forward.5} parent=1 // pred_check_branch
      %30 = sbr.rel (0) target = $region13
    $region12: #{cnn_mnist_forward.5} parent=1 // pred_region
      %32 = vsyncadd [#allocation6], 0
      %s34 = sshll.u32 %s2, 4
      %s35 = int_to_ptr.hbm [resolvable:$true] %s34
      %s36 = sshll.u32 [#allocation5], 4
      %s37 = int_to_ptr.vmem [resolvable:$true] %s36
      %39 = dma.hbm_to_vmem [thread:$0]  %s35, 16, %s37, [#allocation6]
    $region13: #{cnn_mnist_forward.5} parent=1 // pred_fallthru
      _
    // Predicated region
    $region14: #{cnn_mnist_forward.5} parent=1 // pred_check
      _
    $region15: #{cnn_mnist_forward.5} parent=1 // pred_check_branch
      %41 = sbr.rel (0) target = $region17
    $region16: #{cnn_mnist_forward.5} parent=1 // pred_region
      %43 = vsyncadd [#allocation6], 0
      %s44 = sshll.u32 %s3, 4
      %s45 = int_to_ptr.hbm [resolvable:$true] %s44
      %s46 = sshll.u32 [#allocation7], 4
      %s47 = int_to_ptr.vmem [resolvable:$true] %s46
      %52 = dma.hbm_to_vmem [thread:$0]  %s45, 1024, %s47, [#allocation6], 64, 64, 4
    $region17: #{cnn_mnist_forward.5} parent=1 // pred_fallthru
      _
    // Predicated region
    $region18: #{cnn_mnist_forward.5} parent=1 // pred_check
      _
    $region19: #{cnn_mnist_forward.5} parent=1 // pred_check_branch
      %54 = sbr.rel (0) target = $region21
    $region20: #{cnn_mnist_forward.5} parent=1 // pred_region
      %56 = vsyncadd [#allocation9], 0
      %s58 = sshll.u32 %s4, 4
      %s59 = int_to_ptr.hbm [resolvable:$true] %s58
      %s60 = sshll.u32 [#allocation8], 4
      %s61 = int_to_ptr.vmem [resolvable:$true] %s60
      %63 = dma.hbm_to_vmem [thread:$0]  %s59, 16, %s61, [#allocation9]
    $region21: #{cnn_mnist_forward.5} parent=1 // pred_fallthru
      _
    // Predicated region
    $region22: #{cnn_mnist_forward.5} parent=1 // pred_check
      _
    $region23: #{cnn_mnist_forward.5} parent=1 // pred_check_branch
      %65 = sbr.rel (0) target = $region25
    $region24: #{cnn_mnist_forward.5} parent=1 // pred_region
      %67 = dma.done [#allocation3], 12800
    $region25: #{cnn_mnist_forward.5} parent=1 // pred_fallthru
      _
    // Predicated region
    $region26: #{cnn_mnist_forward.5} parent=1 // pred_check
      _
    $region27: #{cnn_mnist_forward.5} parent=1 // pred_check_branch
      %69 = sbr.rel (0) target = $region29
    $region28: #{cnn_mnist_forward.5} parent=1 // pred_region
      %71 = dma.done [#allocation6], 16
    $region29: #{cnn_mnist_forward.5} parent=1 // pred_fallthru
      _
    // Predicated region
    $region30: #{cnn_mnist_forward.5} parent=1 // pred_check
      _
    $region31: #{cnn_mnist_forward.5} parent=1 // pred_check_branch
      %73 = sbr.rel (0) target = $region33
    $region32: #{cnn_mnist_forward.5} parent=1 // pred_region
      %75 = dma.done [#allocation6], 1024
    $region33: #{cnn_mnist_forward.5} parent=1 // pred_fallthru
      _
    // Predicated region
    $region34: #{cnn_mnist_forward.5} parent=1 // pred_check
      _
    $region35: #{cnn_mnist_forward.5} parent=1 // pred_check_branch
      %77 = sbr.rel (0) target = $region37
    $region36: #{cnn_mnist_forward.5} parent=1 // pred_region
      %79 = dma.done [#allocation9], 16
    $region37: #{cnn_mnist_forward.5} parent=1 // pred_fallthru
      _
    %v81 = vld [vmem:[%s0] sm:$0xff]
    %v82 = vld [vmem:[%s0 + $0x8] sm:$0xff]
    %v83 = vld [vmem:[%s0 + $0x10] sm:$0xff]
    %v84 = vld [vmem:[%s0 + $0x18] sm:$0x3]
    %89 = vst [vmem:[#allocation1] ss:$4 sm:$0xff] %v81
    %s90 = scalar_lea.vmem [#allocation1], 32
    %91 = vst [vmem:[%s90] ss:$4 sm:$0xff] %v82
    %v92 = vld.sshfl [vmem:[#allocation1] sm:$0xff pattern:$0x73625140]
    %v93 = vld.sshfl [vmem:[#allocation1 + $0x8] sm:$0xff pattern:$0x73625140]
    %v94 = vld.sshfl [vmem:[#allocation1 + $0x10] sm:$0xff pattern:$0x73625140]
    %v95 = vld.sshfl [vmem:[#allocation1 + $0x18] sm:$0xff pattern:$0x73625140]
    %v96 = vld.sshfl [vmem:[#allocation1 + $0x20] sm:$0xff pattern:$0x73625140]
    %v97 = vld.sshfl [vmem:[#allocation1 + $0x28] sm:$0xff pattern:$0x73625140]
    %v98 = vld.sshfl [vmem:[#allocation1 + $0x30] sm:$0xff pattern:$0x73625140]
    %v99 = vld.sshfl [vmem:[#allocation1 + $0x38] sm:$0xff pattern:$0x73625140]
    %100 = vst [vmem:[#allocation1] ss:$4 sm:$0xff] %v83
    %101 = vst [vmem:[%s90] ss:$4 sm:$0xff] %v84
    %v102 = vld.sshfl [vmem:[#allocation1] sm:$0xff pattern:$0x73625140]
    %v103 = vld.sshfl [vmem:[#allocation1 + $0x8] sm:$0xff pattern:$0x73625140]
    %v104 = vld.sshfl [vmem:[#allocation1 + $0x10] sm:$0xff pattern:$0x73625140]
    %v105 = vld.sshfl [vmem:[#allocation1 + $0x18] sm:$0xff pattern:$0x73625140]
    %v106 = vld.sshfl [vmem:[#allocation1 + $0x20] sm:$0xff pattern:$0x73625140]
    %v120 = vpack.c.bf16 %v92, %v92
    %v121 = vpack.c.bf16 %v93, %v93
    %v122 = vpack.c.bf16 %v94, %v94
    %v123 = vpack.c.bf16 %v95, %v95
    %v124 = vpack.c.bf16 %v96, %v96
    %v125 = vpack.c.bf16 %v97, %v97
    %v126 = vpack.c.bf16 %v98, %v98
    %v127 = vpack.c.bf16 %v99, %v99
    %v128 = vpack.c.bf16 %v102, %v102
    %v129 = vpack.c.bf16 %v103, %v103
    %v130 = vpack.c.bf16 %v104, %v104
    %v131 = vpack.c.bf16 %v105, %v105
    %v132 = vpack.c.bf16 %v106, %v106
    %v133 = vld [vmem:[#allocation2] sm:$0xf]
    %v134 = vld [vmem:[#allocation2 + $0x4] sm:$0xf]
    %v135 = vld [vmem:[#allocation2 + $0x8] sm:$0xf]
    %v136 = vld [vmem:[#allocation2 + $0xc] sm:$0xf]
    %v137 = vld [vmem:[#allocation2 + $0x10] sm:$0xf]
    %v138 = vld [vmem:[#allocation2 + $0x14] sm:$0xf]
    %v139 = vld [vmem:[#allocation2 + $0x18] sm:$0xf]
    %v140 = vld [vmem:[#allocation2 + $0x1c] sm:$0xf]
    %v141 = vld [vmem:[#allocation2 + $0x20] sm:$0xf]
    %v142 = vld [vmem:[#allocation2 + $0x24] sm:$0xf]
    %v143 = vld [vmem:[#allocation2 + $0x28] sm:$0xf]
    %v144 = vld [vmem:[#allocation2 + $0x2c] sm:$0xf]
    %v145 = vld [vmem:[#allocation2 + $0x30] sm:$0xf]
    %v146 = vld [vmem:[#allocation2 + $0x34] sm:$0xf]
    %v147 = vld [vmem:[#allocation2 + $0x38] sm:$0xf]
    %v148 = vld [vmem:[#allocation2 + $0x3c] sm:$0xf]
    %v149 = vld [vmem:[#allocation2 + $0x40] sm:$0xf]
    %v150 = vld [vmem:[#allocation2 + $0x44] sm:$0xf]
    %v151 = vld [vmem:[#allocation2 + $0x48] sm:$0xf]
    %v152 = vld [vmem:[#allocation2 + $0x4c] sm:$0xf]
    %v153 = vld [vmem:[#allocation2 + $0x50] sm:$0xf]
    %v154 = vld [vmem:[#allocation2 + $0x54] sm:$0xf]
    %v155 = vld [vmem:[#allocation2 + $0x58] sm:$0xf]
    %v156 = vld [vmem:[#allocation2 + $0x5c] sm:$0xf]
    %v157 = vld [vmem:[#allocation2 + $0x60] sm:$0xf]
    %v158 = vld [vmem:[#allocation2 + $0x64] sm:$0xf]
    %v159 = vld [vmem:[#allocation2 + $0x68] sm:$0xf]
    %v160 = vld [vmem:[#allocation2 + $0x6c] sm:$0xf]
    %v161 = vld [vmem:[#allocation2 + $0x70] sm:$0xf]
    %v162 = vld [vmem:[#allocation2 + $0x74] sm:$0xf]
    %v163 = vld [vmem:[#allocation2 + $0x78] sm:$0xf]
    %v164 = vld [vmem:[#allocation2 + $0x7c] sm:$0xf]
    %v165 = vld [vmem:[#allocation2 + $0x80] sm:$0xf]
    %v166 = vld [vmem:[#allocation2 + $0x84] sm:$0xf]
    %v167 = vld [vmem:[#allocation2 + $0x88] sm:$0xf]
    %v168 = vld [vmem:[#allocation2 + $0x8c] sm:$0xf]
    %v169 = vld [vmem:[#allocation2 + $0x90] sm:$0xf]
    %v170 = vld [vmem:[#allocation2 + $0x94] sm:$0xf]
    %v171 = vld [vmem:[#allocation2 + $0x98] sm:$0xf]
    %v172 = vld [vmem:[#allocation2 + $0x9c] sm:$0xf]
    %v173 = vld [vmem:[#allocation2 + $0xa0] sm:$0xf]
    %v174 = vld [vmem:[#allocation2 + $0xa4] sm:$0xf]
    %v175 = vld [vmem:[#allocation2 + $0xa8] sm:$0xf]
    %v176 = vld [vmem:[#allocation2 + $0xac] sm:$0xf]
    %v177 = vld [vmem:[#allocation2 + $0xb0] sm:$0xf]
    %v178 = vld [vmem:[#allocation2 + $0xb4] sm:$0xf]
    %v179 = vld [vmem:[#allocation2 + $0xb8] sm:$0xf]
    %v180 = vld [vmem:[#allocation2 + $0xbc] sm:$0xf]
    %v181 = vld [vmem:[#allocation2 + $0xc0] sm:$0xf]
    %v182 = vld [vmem:[#allocation2 + $0xc4] sm:$0xf]
    %v183 = vld [vmem:[#allocation2 + $0xc8] sm:$0xf]
    %v184 = vld [vmem:[#allocation2 + $0xcc] sm:$0xf]
    %v185 = vld [vmem:[#allocation2 + $0xd0] sm:$0xf]
    %v186 = vld [vmem:[#allocation2 + $0xd4] sm:$0xf]
    %v187 = vld [vmem:[#allocation2 + $0xd8] sm:$0xf]
    %v188 = vld [vmem:[#allocation2 + $0xdc] sm:$0xf]
    %v189 = vld [vmem:[#allocation2 + $0xe0] sm:$0xf]
    %v190 = vld [vmem:[#allocation2 + $0xe4] sm:$0xf]
    %v191 = vld [vmem:[#allocation2 + $0xe8] sm:$0xf]
    %v192 = vld [vmem:[#allocation2 + $0xec] sm:$0xf]
    %v193 = vld [vmem:[#allocation2 + $0xf0] sm:$0xf]
    %v194 = vld [vmem:[#allocation2 + $0xf4] sm:$0xf]
    %v195 = vld [vmem:[#allocation2 + $0xf8] sm:$0xf]
    %v196 = vld [vmem:[#allocation2 + $0xfc] sm:$0xf]
    %v197 = vld [vmem:[#allocation2 + $0x100] sm:$0xf]
    %v198 = vld [vmem:[#allocation2 + $0x104] sm:$0xf]
    %v199 = vld [vmem:[#allocation2 + $0x108] sm:$0xf]
    %v200 = vld [vmem:[#allocation2 + $0x10c] sm:$0xf]
    %v201 = vld [vmem:[#allocation2 + $0x110] sm:$0xf]
    %v202 = vld [vmem:[#allocation2 + $0x114] sm:$0xf]
    %v203 = vld [vmem:[#allocation2 + $0x118] sm:$0xf]
    %v204 = vld [vmem:[#allocation2 + $0x11c] sm:$0xf]
    %v205 = vld [vmem:[#allocation2 + $0x120] sm:$0xf]
    %v206 = vld [vmem:[#allocation2 + $0x124] sm:$0xf]
    %v207 = vld [vmem:[#allocation2 + $0x128] sm:$0xf]
    %v208 = vld [vmem:[#allocation2 + $0x12c] sm:$0xf]
    %v209 = vld [vmem:[#allocation2 + $0x130] sm:$0xf]
    %v210 = vld [vmem:[#allocation2 + $0x134] sm:$0xf]
    %v211 = vld [vmem:[#allocation2 + $0x138] sm:$0xf]
    %v212 = vld [vmem:[#allocation2 + $0x13c] sm:$0xf]
    %v213 = vld [vmem:[#allocation2 + $0x140] sm:$0xf]
    %v214 = vld [vmem:[#allocation2 + $0x144] sm:$0xf]
    %v215 = vld [vmem:[#allocation2 + $0x148] sm:$0xf]
    %v216 = vld [vmem:[#allocation2 + $0x14c] sm:$0xf]
    %v217 = vld [vmem:[#allocation2 + $0x150] sm:$0xf]
    %v218 = vld [vmem:[#allocation2 + $0x154] sm:$0xf]
    %v219 = vld [vmem:[#allocation2 + $0x158] sm:$0xf]
    %v220 = vld [vmem:[#allocation2 + $0x15c] sm:$0xf]
    %v221 = vld [vmem:[#allocation2 + $0x160] sm:$0xf]
    %v222 = vld [vmem:[#allocation2 + $0x164] sm:$0xf]
    %v223 = vld [vmem:[#allocation2 + $0x168] sm:$0xf]
    %v224 = vld [vmem:[#allocation2 + $0x16c] sm:$0xf]
    %v225 = vld [vmem:[#allocation2 + $0x170] sm:$0xf]
    %v226 = vld [vmem:[#allocation2 + $0x174] sm:$0xf]
    %v227 = vld [vmem:[#allocation2 + $0x178] sm:$0xf]
    %v228 = vld [vmem:[#allocation2 + $0x17c] sm:$0xf]
    %v229 = vld [vmem:[#allocation2 + $0x180] sm:$0xf]
    %v230 = vld [vmem:[#allocation2 + $0x184] sm:$0xf]
    %v231 = vld [vmem:[#allocation2 + $0x188] sm:$0xf]
    %v232 = vld [vmem:[#allocation2 + $0x18c] sm:$0xf]
    %v233 = vld [vmem:[#allocation2 + $0x190] sm:$0xf]
    %v234 = vld [vmem:[#allocation2 + $0x194] sm:$0xf]
    %v235 = vld [vmem:[#allocation2 + $0x198] sm:$0xf]
    %v236 = vld [vmem:[#allocation2 + $0x19c] sm:$0xf]
    %v237 = vld [vmem:[#allocation2 + $0x1a0] sm:$0xf]
    %v238 = vld [vmem:[#allocation2 + $0x1a4] sm:$0xf]
    %v239 = vld [vmem:[#allocation2 + $0x1a8] sm:$0xf]
    %v240 = vld [vmem:[#allocation2 + $0x1ac] sm:$0xf]
    %v241 = vld [vmem:[#allocation2 + $0x1b0] sm:$0xf]
    %v242 = vld [vmem:[#allocation2 + $0x1b4] sm:$0xf]
    %v243 = vld [vmem:[#allocation2 + $0x1b8] sm:$0xf]
    %v244 = vld [vmem:[#allocation2 + $0x1bc] sm:$0xf]
    %v245 = vld [vmem:[#allocation2 + $0x1c0] sm:$0xf]
    %v246 = vld [vmem:[#allocation2 + $0x1c4] sm:$0xf]
    %v247 = vld [vmem:[#allocation2 + $0x1c8] sm:$0xf]
    %v248 = vld [vmem:[#allocation2 + $0x1cc] sm:$0xf]
    %v249 = vld [vmem:[#allocation2 + $0x1d0] sm:$0xf]
    %v250 = vld [vmem:[#allocation2 + $0x1d4] sm:$0xf]
    %v251 = vld [vmem:[#allocation2 + $0x1d8] sm:$0xf]
    %v252 = vld [vmem:[#allocation2 + $0x1dc] sm:$0xf]
    %v253 = vld [vmem:[#allocation2 + $0x1e0] sm:$0xf]
    %v254 = vld [vmem:[#allocation2 + $0x1e4] sm:$0xf]
    %v255 = vld [vmem:[#allocation2 + $0x1e8] sm:$0xf]
    %v256 = vld [vmem:[#allocation2 + $0x1ec] sm:$0xf]
    %v257 = vld [vmem:[#allocation2 + $0x1f0] sm:$0xf]
    %v258 = vld [vmem:[#allocation2 + $0x1f4] sm:$0xf]
    %v259 = vld [vmem:[#allocation2 + $0x1f8] sm:$0xf]
    %v260 = vld [vmem:[#allocation2 + $0x1fc] sm:$0xf]
    %v261 = vld [vmem:[#allocation2 + $0x200] sm:$0xf]
    %v262 = vld [vmem:[#allocation2 + $0x204] sm:$0xf]
    %v263 = vld [vmem:[#allocation2 + $0x208] sm:$0xf]
    %v264 = vld [vmem:[#allocation2 + $0x20c] sm:$0xf]
    %v265 = vld [vmem:[#allocation2 + $0x210] sm:$0xf]
    %v266 = vld [vmem:[#allocation2 + $0x214] sm:$0xf]
    %v267 = vld [vmem:[#allocation2 + $0x218] sm:$0xf]
    %v268 = vld [vmem:[#allocation2 + $0x21c] sm:$0xf]
    %v269 = vld [vmem:[#allocation2 + $0x220] sm:$0xf]
    %v270 = vld [vmem:[#allocation2 + $0x224] sm:$0xf]
    %v271 = vld [vmem:[#allocation2 + $0x228] sm:$0xf]
    %v272 = vld [vmem:[#allocation2 + $0x22c] sm:$0xf]
    %v273 = vld [vmem:[#allocation2 + $0x230] sm:$0xf]
    %v274 = vld [vmem:[#allocation2 + $0x234] sm:$0xf]
    %v275 = vld [vmem:[#allocation2 + $0x238] sm:$0xf]
    %v276 = vld [vmem:[#allocation2 + $0x23c] sm:$0xf]
    %v277 = vld [vmem:[#allocation2 + $0x240] sm:$0xf]
    %v278 = vld [vmem:[#allocation2 + $0x244] sm:$0xf]
    %v279 = vld [vmem:[#allocation2 + $0x248] sm:$0xf]
    %v280 = vld [vmem:[#allocation2 + $0x24c] sm:$0xf]
    %v281 = vld [vmem:[#allocation2 + $0x250] sm:$0xf]
    %v282 = vld [vmem:[#allocation2 + $0x254] sm:$0xf]
    %v283 = vld [vmem:[#allocation2 + $0x258] sm:$0xf]
    %v284 = vld [vmem:[#allocation2 + $0x25c] sm:$0xf]
    %v285 = vld [vmem:[#allocation2 + $0x260] sm:$0xf]
    %v286 = vld [vmem:[#allocation2 + $0x264] sm:$0xf]
    %v287 = vld [vmem:[#allocation2 + $0x268] sm:$0xf]
    %v288 = vld [vmem:[#allocation2 + $0x26c] sm:$0xf]
    %v289 = vld [vmem:[#allocation2 + $0x270] sm:$0xf]
    %v290 = vld [vmem:[#allocation2 + $0x274] sm:$0xf]
    %v291 = vld [vmem:[#allocation2 + $0x278] sm:$0xf]
    %v292 = vld [vmem:[#allocation2 + $0x27c] sm:$0xf]
    %v293 = vld [vmem:[#allocation2 + $0x280] sm:$0xf]
    %v294 = vld [vmem:[#allocation2 + $0x284] sm:$0xf]
    %v295 = vld [vmem:[#allocation2 + $0x288] sm:$0xf]
    %v296 = vld [vmem:[#allocation2 + $0x28c] sm:$0xf]
    %v297 = vld [vmem:[#allocation2 + $0x290] sm:$0xf]
    %v298 = vld [vmem:[#allocation2 + $0x294] sm:$0xf]
    %v299 = vld [vmem:[#allocation2 + $0x298] sm:$0xf]
    %v300 = vld [vmem:[#allocation2 + $0x29c] sm:$0xf]
    %v301 = vld [vmem:[#allocation2 + $0x2a0] sm:$0xf]
    %v302 = vld [vmem:[#allocation2 + $0x2a4] sm:$0xf]
    %v303 = vld [vmem:[#allocation2 + $0x2a8] sm:$0xf]
    %v304 = vld [vmem:[#allocation2 + $0x2ac] sm:$0xf]
    %v305 = vld [vmem:[#allocation2 + $0x2b0] sm:$0xf]
    %v306 = vld [vmem:[#allocation2 + $0x2b4] sm:$0xf]
    %v307 = vld [vmem:[#allocation2 + $0x2b8] sm:$0xf]
    %v308 = vld [vmem:[#allocation2 + $0x2bc] sm:$0xf]
    %v309 = vld [vmem:[#allocation2 + $0x2c0] sm:$0xf]
    %v310 = vld [vmem:[#allocation2 + $0x2c4] sm:$0xf]
    %v311 = vld [vmem:[#allocation2 + $0x2c8] sm:$0xf]
    %v312 = vld [vmem:[#allocation2 + $0x2cc] sm:$0xf]
    %v313 = vld [vmem:[#allocation2 + $0x2d0] sm:$0xf]
    %v314 = vld [vmem:[#allocation2 + $0x2d4] sm:$0xf]
    %v315 = vld [vmem:[#allocation2 + $0x2d8] sm:$0xf]
    %v316 = vld [vmem:[#allocation2 + $0x2dc] sm:$0xf]
    %v317 = vld [vmem:[#allocation2 + $0x2e0] sm:$0xf]
    %v318 = vld [vmem:[#allocation2 + $0x2e4] sm:$0xf]
    %v319 = vld [vmem:[#allocation2 + $0x2e8] sm:$0xf]
    %v320 = vld [vmem:[#allocation2 + $0x2ec] sm:$0xf]
    %v321 = vld [vmem:[#allocation2 + $0x2f0] sm:$0xf]
    %v322 = vld [vmem:[#allocation2 + $0x2f4] sm:$0xf]
    %v323 = vld [vmem:[#allocation2 + $0x2f8] sm:$0xf]
    %v324 = vld [vmem:[#allocation2 + $0x2fc] sm:$0xf]
    %v325 = vld [vmem:[#allocation2 + $0x300] sm:$0xf]
    %v326 = vld [vmem:[#allocation2 + $0x304] sm:$0xf]
    %v327 = vld [vmem:[#allocation2 + $0x308] sm:$0xf]
    %v328 = vld [vmem:[#allocation2 + $0x30c] sm:$0xf]
    %v329 = vld [vmem:[#allocation2 + $0x310] sm:$0xf]
    %v330 = vld [vmem:[#allocation2 + $0x314] sm:$0xf]
    %v331 = vld [vmem:[#allocation2 + $0x318] sm:$0xf]
    %v332 = vld [vmem:[#allocation2 + $0x31c] sm:$0xf]
    %v333 = vld [vmem:[#allocation5] sm:$0x1]
    %v335 = vperm.slane %v333, 0
    %v537 = vunpack.c.l.b16 %v133
    %v538 = vunpack.c.l.b16 %v134
    %v539 = vunpack.c.l.b16 %v135
    %v540 = vunpack.c.l.b16 %v136
    %v541 = vunpack.c.l.b16 %v137
    %v542 = vunpack.c.l.b16 %v138
    %v543 = vunpack.c.l.b16 %v139
    %v544 = vunpack.c.l.b16 %v140
    %v545 = vunpack.c.l.b16 %v141
    %v546 = vunpack.c.l.b16 %v142
    %v547 = vunpack.c.l.b16 %v143
    %v548 = vunpack.c.l.b16 %v144
    %v549 = vunpack.c.l.b16 %v145
    %v550 = vunpack.c.l.b16 %v146
    %v551 = vunpack.c.l.b16 %v147
    %v552 = vunpack.c.l.b16 %v148
    %v553 = vunpack.c.l.b16 %v149
    %v554 = vunpack.c.l.b16 %v150
    %v555 = vunpack.c.l.b16 %v151
    %v556 = vunpack.c.l.b16 %v152
    %v557 = vunpack.c.l.b16 %v153
    %v558 = vunpack.c.l.b16 %v154
    %v559 = vunpack.c.l.b16 %v155
    %v560 = vunpack.c.l.b16 %v156
    %v561 = vunpack.c.l.b16 %v157
    %v562 = vunpack.c.l.b16 %v158
    %v563 = vunpack.c.l.b16 %v159
    %v564 = vunpack.c.l.b16 %v160
    %v565 = vunpack.c.l.b16 %v161
    %v566 = vunpack.c.l.b16 %v162
    %v567 = vunpack.c.l.b16 %v163
    %v568 = vunpack.c.l.b16 %v164
    %v569 = vunpack.c.l.b16 %v165
    %v570 = vunpack.c.l.b16 %v166
    %v571 = vunpack.c.l.b16 %v167
    %v572 = vunpack.c.l.b16 %v168
    %v573 = vunpack.c.l.b16 %v169
    %v574 = vunpack.c.l.b16 %v170
    %v575 = vunpack.c.l.b16 %v171
    %v576 = vunpack.c.l.b16 %v172
    %v577 = vunpack.c.l.b16 %v173
    %v578 = vunpack.c.l.b16 %v174
    %v579 = vunpack.c.l.b16 %v175
    %v580 = vunpack.c.l.b16 %v176
    %v581 = vunpack.c.l.b16 %v177
    %v582 = vunpack.c.l.b16 %v178
    %v583 = vunpack.c.l.b16 %v179
    %v584 = vunpack.c.l.b16 %v180
    %v585 = vunpack.c.l.b16 %v181
    %v586 = vunpack.c.l.b16 %v182
    %v587 = vunpack.c.l.b16 %v183
    %v588 = vunpack.c.l.b16 %v184
    %v589 = vunpack.c.l.b16 %v185
    %v590 = vunpack.c.l.b16 %v186
    %v591 = vunpack.c.l.b16 %v187
    %v592 = vunpack.c.l.b16 %v188
    %v593 = vunpack.c.l.b16 %v189
    %v594 = vunpack.c.l.b16 %v190
    %v595 = vunpack.c.l.b16 %v191
    %v596 = vunpack.c.l.b16 %v192
    %v597 = vunpack.c.l.b16 %v193
    %v598 = vunpack.c.l.b16 %v194
    %v599 = vunpack.c.l.b16 %v195
    %v600 = vunpack.c.l.b16 %v196
    %v601 = vunpack.c.l.b16 %v197
    %v602 = vunpack.c.l.b16 %v198
    %v603 = vunpack.c.l.b16 %v199
    %v604 = vunpack.c.l.b16 %v200
    %v605 = vunpack.c.l.b16 %v201
    %v606 = vunpack.c.l.b16 %v202
    %v607 = vunpack.c.l.b16 %v203
    %v608 = vunpack.c.l.b16 %v204
    %v609 = vunpack.c.l.b16 %v205
    %v610 = vunpack.c.l.b16 %v206
    %v611 = vunpack.c.l.b16 %v207
    %v612 = vunpack.c.l.b16 %v208
    %v613 = vunpack.c.l.b16 %v209
    %v614 = vunpack.c.l.b16 %v210
    %v615 = vunpack.c.l.b16 %v211
    %v616 = vunpack.c.l.b16 %v212
    %v617 = vunpack.c.l.b16 %v213
    %v618 = vunpack.c.l.b16 %v214
    %v619 = vunpack.c.l.b16 %v215
    %v620 = vunpack.c.l.b16 %v216
    %v621 = vunpack.c.l.b16 %v217
    %v622 = vunpack.c.l.b16 %v218
    %v623 = vunpack.c.l.b16 %v219
    %v624 = vunpack.c.l.b16 %v220
    %v625 = vunpack.c.l.b16 %v221
    %v626 = vunpack.c.l.b16 %v222
    %v627 = vunpack.c.l.b16 %v223
    %v628 = vunpack.c.l.b16 %v224
    %v629 = vunpack.c.l.b16 %v225
    %v630 = vunpack.c.l.b16 %v226
    %v631 = vunpack.c.l.b16 %v227
    %v632 = vunpack.c.l.b16 %v228
    %v633 = vunpack.c.l.b16 %v229
    %v634 = vunpack.c.l.b16 %v230
    %v635 = vunpack.c.l.b16 %v231
    %v636 = vunpack.c.l.b16 %v232
    %v637 = vunpack.c.l.b16 %v233
    %v638 = vunpack.c.l.b16 %v234
    %v639 = vunpack.c.l.b16 %v235
    %v640 = vunpack.c.l.b16 %v236
    %v641 = vunpack.c.l.b16 %v237
    %v642 = vunpack.c.l.b16 %v238
    %v643 = vunpack.c.l.b16 %v239
    %v644 = vunpack.c.l.b16 %v240
    %v645 = vunpack.c.l.b16 %v241
    %v646 = vunpack.c.l.b16 %v242
    %v647 = vunpack.c.l.b16 %v243
    %v648 = vunpack.c.l.b16 %v244
    %v649 = vunpack.c.l.b16 %v245
    %v650 = vunpack.c.l.b16 %v246
    %v651 = vunpack.c.l.b16 %v247
    %v652 = vunpack.c.l.b16 %v248
    %v653 = vunpack.c.l.b16 %v249
    %v654 = vunpack.c.l.b16 %v250
    %v655 = vunpack.c.l.b16 %v251
    %v656 = vunpack.c.l.b16 %v252
    %v657 = vunpack.c.l.b16 %v253
    %v658 = vunpack.c.l.b16 %v254
    %v659 = vunpack.c.l.b16 %v255
    %v660 = vunpack.c.l.b16 %v256
    %v661 = vunpack.c.l.b16 %v257
    %v662 = vunpack.c.l.b16 %v258
    %v663 = vunpack.c.l.b16 %v259
    %v664 = vunpack.c.l.b16 %v260
    %v665 = vunpack.c.l.b16 %v261
    %v666 = vunpack.c.l.b16 %v262
    %v667 = vunpack.c.l.b16 %v263
    %v668 = vunpack.c.l.b16 %v264
    %v669 = vunpack.c.l.b16 %v265
    %v670 = vunpack.c.l.b16 %v266
    %v671 = vunpack.c.l.b16 %v267
    %v672 = vunpack.c.l.b16 %v268
    %v673 = vunpack.c.l.b16 %v269
    %v674 = vunpack.c.l.b16 %v270
    %v675 = vunpack.c.l.b16 %v271
    %v676 = vunpack.c.l.b16 %v272
    %v677 = vunpack.c.l.b16 %v273
    %v678 = vunpack.c.l.b16 %v274
    %v679 = vunpack.c.l.b16 %v275
    %v680 = vunpack.c.l.b16 %v276
    %v681 = vunpack.c.l.b16 %v277
    %v682 = vunpack.c.l.b16 %v278
    %v683 = vunpack.c.l.b16 %v279
    %v684 = vunpack.c.l.b16 %v280
    %v685 = vunpack.c.l.b16 %v281
    %v686 = vunpack.c.l.b16 %v282
    %v687 = vunpack.c.l.b16 %v283
    %v688 = vunpack.c.l.b16 %v284
    %v689 = vunpack.c.l.b16 %v285
    %v690 = vunpack.c.l.b16 %v286
    %v691 = vunpack.c.l.b16 %v287
    %v692 = vunpack.c.l.b16 %v288
    %v693 = vunpack.c.l.b16 %v289
    %v694 = vunpack.c.l.b16 %v290
    %v695 = vunpack.c.l.b16 %v291
    %v696 = vunpack.c.l.b16 %v292
    %v697 = vunpack.c.l.b16 %v293
    %v698 = vunpack.c.l.b16 %v294
    %v699 = vunpack.c.l.b16 %v295
    %v700 = vunpack.c.l.b16 %v296
    %v701 = vunpack.c.l.b16 %v297
    %v702 = vunpack.c.l.b16 %v298
    %v703 = vunpack.c.l.b16 %v299
    %v704 = vunpack.c.l.b16 %v300
    %v705 = vunpack.c.l.b16 %v301
    %v706 = vunpack.c.l.b16 %v302
    %v707 = vunpack.c.l.b16 %v303
    %v708 = vunpack.c.l.b16 %v304
    %v709 = vunpack.c.l.b16 %v305
    %v710 = vunpack.c.l.b16 %v306
    %v711 = vunpack.c.l.b16 %v307
    %v712 = vunpack.c.l.b16 %v308
    %v713 = vunpack.c.l.b16 %v309
    %v714 = vunpack.c.l.b16 %v310
    %v715 = vunpack.c.l.b16 %v311
    %v716 = vunpack.c.l.b16 %v312
    %v717 = vunpack.c.l.b16 %v313
    %v718 = vunpack.c.l.b16 %v314
    %v719 = vunpack.c.l.b16 %v315
    %v720 = vunpack.c.l.b16 %v316
    %v721 = vunpack.c.l.b16 %v317
    %v722 = vunpack.c.l.b16 %v318
    %v723 = vunpack.c.l.b16 %v319
    %v724 = vunpack.c.l.b16 %v320
    %v725 = vunpack.c.l.b16 %v321
    %v726 = vunpack.c.l.b16 %v322
    %v727 = vunpack.c.l.b16 %v323
    %v728 = vunpack.c.l.b16 %v324
    %v729 = vunpack.c.l.b16 %v325
    %v730 = vunpack.c.l.b16 %v326
    %v731 = vunpack.c.l.b16 %v327
    %v732 = vunpack.c.l.b16 %v328
    %v733 = vunpack.c.l.b16 %v329
    %v734 = vunpack.c.l.b16 %v330
    %v735 = vunpack.c.l.b16 %v331
    %v736 = vunpack.c.l.b16 %v332
    %v737 = vpack.c.b16 %v538, %v537
    %v738 = vpack.c.b16 %v540, %v539
    %v739 = vpack.c.b16 %v542, %v541
    %v740 = vpack.c.b16 %v544, %v543
    %v741 = vpack.c.b16 %v546, %v545
    %v742 = vpack.c.b16 %v548, %v547
    %v743 = vpack.c.b16 %v550, %v549
    %v744 = vpack.c.b16 %v552, %v551
    %v745 = vpack.c.b16 %v554, %v553
    %v746 = vpack.c.b16 %v556, %v555
    %v747 = vpack.c.b16 %v558, %v557
    %v748 = vpack.c.b16 %v560, %v559
    %v749 = vpack.c.b16 %v562, %v561
    %v750 = vpack.c.b16 %v564, %v563
    %v751 = vpack.c.b16 %v566, %v565
    %v752 = vpack.c.b16 %v568, %v567
    %v753 = vpack.c.b16 %v570, %v569
    %v754 = vpack.c.b16 %v572, %v571
    %v755 = vpack.c.b16 %v574, %v573
    %v756 = vpack.c.b16 %v576, %v575
    %v757 = vpack.c.b16 %v578, %v577
    %v758 = vpack.c.b16 %v580, %v579
    %v759 = vpack.c.b16 %v582, %v581
    %v760 = vpack.c.b16 %v584, %v583
    %v761 = vpack.c.b16 %v586, %v585
    %v762 = vpack.c.b16 %v588, %v587
    %v763 = vpack.c.b16 %v590, %v589
    %v764 = vpack.c.b16 %v592, %v591
    %v765 = vpack.c.b16 %v594, %v593
    %v766 = vpack.c.b16 %v596, %v595
    %v767 = vpack.c.b16 %v598, %v597
    %v768 = vpack.c.b16 %v600, %v599
    %v769 = vpack.c.b16 %v602, %v601
    %v770 = vpack.c.b16 %v604, %v603
    %v771 = vpack.c.b16 %v606, %v605
    %v772 = vpack.c.b16 %v608, %v607
    %v773 = vpack.c.b16 %v610, %v609
    %v774 = vpack.c.b16 %v612, %v611
    %v775 = vpack.c.b16 %v614, %v613
    %v776 = vpack.c.b16 %v616, %v615
    %v777 = vpack.c.b16 %v618, %v617
    %v778 = vpack.c.b16 %v620, %v619
    %v779 = vpack.c.b16 %v622, %v621
    %v780 = vpack.c.b16 %v624, %v623
    %v781 = vpack.c.b16 %v626, %v625
    %v782 = vpack.c.b16 %v628, %v627
    %v783 = vpack.c.b16 %v630, %v629
    %v784 = vpack.c.b16 %v632, %v631
    %v785 = vpack.c.b16 %v634, %v633
    %v786 = vpack.c.b16 %v636, %v635
    %v787 = vpack.c.b16 %v638, %v637
    %v788 = vpack.c.b16 %v640, %v639
    %v789 = vpack.c.b16 %v642, %v641
    %v790 = vpack.c.b16 %v644, %v643
    %v791 = vpack.c.b16 %v646, %v645
    %v792 = vpack.c.b16 %v648, %v647
    %v793 = vpack.c.b16 %v650, %v649
    %v794 = vpack.c.b16 %v652, %v651
    %v795 = vpack.c.b16 %v654, %v653
    %v796 = vpack.c.b16 %v656, %v655
    %v797 = vpack.c.b16 %v658, %v657
    %v798 = vpack.c.b16 %v660, %v659
    %v799 = vpack.c.b16 %v662, %v661
    %v800 = vpack.c.b16 %v664, %v663
    %v801 = vpack.c.b16 %v666, %v665
    %v802 = vpack.c.b16 %v668, %v667
    %v803 = vpack.c.b16 %v670, %v669
    %v804 = vpack.c.b16 %v672, %v671
    %v805 = vpack.c.b16 %v674, %v673
    %v806 = vpack.c.b16 %v676, %v675
    %v807 = vpack.c.b16 %v678, %v677
    %v808 = vpack.c.b16 %v680, %v679
    %v809 = vpack.c.b16 %v682, %v681
    %v810 = vpack.c.b16 %v684, %v683
    %v811 = vpack.c.b16 %v686, %v685
    %v812 = vpack.c.b16 %v688, %v687
    %v813 = vpack.c.b16 %v690, %v689
    %v814 = vpack.c.b16 %v692, %v691
    %v815 = vpack.c.b16 %v694, %v693
    %v816 = vpack.c.b16 %v696, %v695
    %v817 = vpack.c.b16 %v698, %v697
    %v818 = vpack.c.b16 %v700, %v699
    %v819 = vpack.c.b16 %v702, %v701
    %v820 = vpack.c.b16 %v704, %v703
    %v821 = vpack.c.b16 %v706, %v705
    %v822 = vpack.c.b16 %v708, %v707
    %v823 = vpack.c.b16 %v710, %v709
    %v824 = vpack.c.b16 %v712, %v711
    %v825 = vpack.c.b16 %v714, %v713
    %v826 = vpack.c.b16 %v716, %v715
    %v827 = vpack.c.b16 %v718, %v717
    %v828 = vpack.c.b16 %v720, %v719
    %v829 = vpack.c.b16 %v722, %v721
    %v830 = vpack.c.b16 %v724, %v723
    %v831 = vpack.c.b16 %v726, %v725
    %v832 = vpack.c.b16 %v728, %v727
    %v833 = vpack.c.b16 %v730, %v729
    %v834 = vpack.c.b16 %v732, %v731
    %v835 = vpack.c.b16 %v734, %v733
    %v836 = vpack.c.b16 %v736, %v735
    %vm937 = vcmask 523264
    %v939 = vsel %vm937, %v132, 0
    %941 = vmatpush.bf16.msra.mxu0 %v744
    %942 = vmatpush.bf16.msra.mxu0 %v743
    %943 = vmatpush.bf16.msra.mxu0 %v742
    %944 = vmatpush.bf16.msra.mxu0 %v741
    %945 = vmatpush.bf16.msra.mxu0 %v740
    %946 = vmatpush.bf16.msra.mxu0 %v739
    %947 = vmatpush.bf16.msra.mxu0 %v738
    %948 = vmatpush.bf16.msra.mxu0 %v737
    %949 = vmatmul.bf16.gmra.mxu0 %v120
    %v950 = vpop.f32.mrf.mxu0
    %v951 = vadd.f32 %v335, %v950
    %v952 = vpop.f32.mrf.mxu0
    %953 = vdwg.mxu0
    %954 = vmatpush.bf16.msra.mxu0 %v752
    %955 = vmatpush.bf16.msra.mxu0 %v751
    %956 = vmatpush.bf16.msra.mxu0 %v750
    %957 = vmatpush.bf16.msra.mxu0 %v749
    %958 = vmatpush.bf16.msra.mxu0 %v748
    %959 = vmatpush.bf16.msra.mxu0 %v747
    %960 = vmatpush.bf16.msra.mxu0 %v746
    %961 = vmatpush.bf16.msra.mxu0 %v745
    %962 = vmatmul.bf16.gmra.mxu0 %v121
    %v963 = vpop.f32.mrf.mxu0
    %v964 = vadd.f32 %v951, %v963
    %v965 = vpop.f32.mrf.mxu0
    %966 = vdwg.mxu0
    %967 = vmatpush.bf16.msra.mxu0 %v760
    %968 = vmatpush.bf16.msra.mxu0 %v759
    %969 = vmatpush.bf16.msra.mxu0 %v758
    %970 = vmatpush.bf16.msra.mxu0 %v757
    %971 = vmatpush.bf16.msra.mxu0 %v756
    %972 = vmatpush.bf16.msra.mxu0 %v755
    %973 = vmatpush.bf16.msra.mxu0 %v754
    %974 = vmatpush.bf16.msra.mxu0 %v753
    %975 = vmatmul.bf16.gmra.mxu0 %v122
    %v976 = vpop.f32.mrf.mxu0
    %v977 = vadd.f32 %v964, %v976
    %v978 = vpop.f32.mrf.mxu0
    %979 = vdwg.mxu0
    %980 = vmatpush.bf16.msra.mxu0 %v768
    %981 = vmatpush.bf16.msra.mxu0 %v767
    %982 = vmatpush.bf16.msra.mxu0 %v766
    %983 = vmatpush.bf16.msra.mxu0 %v765
    %984 = vmatpush.bf16.msra.mxu0 %v764
    %985 = vmatpush.bf16.msra.mxu0 %v763
    %986 = vmatpush.bf16.msra.mxu0 %v762
    %987 = vmatpush.bf16.msra.mxu0 %v761
    %988 = vmatmul.bf16.gmra.mxu0 %v123
    %v989 = vpop.f32.mrf.mxu0
    %v990 = vadd.f32 %v977, %v989
    %v991 = vpop.f32.mrf.mxu0
    %992 = vdwg.mxu0
    %993 = vmatpush.bf16.msra.mxu0 %v776
    %994 = vmatpush.bf16.msra.mxu0 %v775
    %995 = vmatpush.bf16.msra.mxu0 %v774
    %996 = vmatpush.bf16.msra.mxu0 %v773
    %997 = vmatpush.bf16.msra.mxu0 %v772
    %998 = vmatpush.bf16.msra.mxu0 %v771
    %999 = vmatpush.bf16.msra.mxu0 %v770
    %1000 = vmatpush.bf16.msra.mxu0 %v769
    %1001 = vmatmul.bf16.gmra.mxu0 %v124
    %v1002 = vpop.f32.mrf.mxu0
    %v1003 = vadd.f32 %v990, %v1002
    %v1004 = vpop.f32.mrf.mxu0
    %1005 = vdwg.mxu0
    %1006 = vmatpush.bf16.msra.mxu0 %v784
    %1007 = vmatpush.bf16.msra.mxu0 %v783
    %1008 = vmatpush.bf16.msra.mxu0 %v782
    %1009 = vmatpush.bf16.msra.mxu0 %v781
    %1010 = vmatpush.bf16.msra.mxu0 %v780
    %1011 = vmatpush.bf16.msra.mxu0 %v779
    %1012 = vmatpush.bf16.msra.mxu0 %v778
    %1013 = vmatpush.bf16.msra.mxu0 %v777
    %1014 = vmatmul.bf16.gmra.mxu0 %v125
    %v1015 = vpop.f32.mrf.mxu0
    %v1016 = vadd.f32 %v1003, %v1015
    %v1017 = vpop.f32.mrf.mxu0
    %1018 = vdwg.mxu0
    %1019 = vmatpush.bf16.msra.mxu0 %v792
    %1020 = vmatpush.bf16.msra.mxu0 %v791
    %1021 = vmatpush.bf16.msra.mxu0 %v790
    %1022 = vmatpush.bf16.msra.mxu0 %v789
    %1023 = vmatpush.bf16.msra.mxu0 %v788
    %1024 = vmatpush.bf16.msra.mxu0 %v787
    %1025 = vmatpush.bf16.msra.mxu0 %v786
    %1026 = vmatpush.bf16.msra.mxu0 %v785
    %1027 = vmatmul.bf16.gmra.mxu0 %v126
    %v1028 = vpop.f32.mrf.mxu0
    %v1029 = vadd.f32 %v1016, %v1028
    %v1030 = vpop.f32.mrf.mxu0
    %1031 = vdwg.mxu0
    %1032 = vmatpush.bf16.msra.mxu0 %v800
    %1033 = vmatpush.bf16.msra.mxu0 %v799
    %1034 = vmatpush.bf16.msra.mxu0 %v798
    %1035 = vmatpush.bf16.msra.mxu0 %v797
    %1036 = vmatpush.bf16.msra.mxu0 %v796
    %1037 = vmatpush.bf16.msra.mxu0 %v795
    %1038 = vmatpush.bf16.msra.mxu0 %v794
    %1039 = vmatpush.bf16.msra.mxu0 %v793
    %1040 = vmatmul.bf16.gmra.mxu0 %v127
    %v1041 = vpop.f32.mrf.mxu0
    %v1042 = vadd.f32 %v1029, %v1041
    %v1043 = vpop.f32.mrf.mxu0
    %1044 = vdwg.mxu0
    %1045 = vmatpush.bf16.msra.mxu0 %v808
    %1046 = vmatpush.bf16.msra.mxu0 %v807
    %1047 = vmatpush.bf16.msra.mxu0 %v806
    %1048 = vmatpush.bf16.msra.mxu0 %v805
    %1049 = vmatpush.bf16.msra.mxu0 %v804
    %1050 = vmatpush.bf16.msra.mxu0 %v803
    %1051 = vmatpush.bf16.msra.mxu0 %v802
    %1052 = vmatpush.bf16.msra.mxu0 %v801
    %1053 = vmatmul.bf16.gmra.mxu0 %v128
    %v1054 = vpop.f32.mrf.mxu0
    %v1055 = vadd.f32 %v1042, %v1054
    %v1056 = vpop.f32.mrf.mxu0
    %1057 = vdwg.mxu0
    %1058 = vmatpush.bf16.msra.mxu0 %v816
    %1059 = vmatpush.bf16.msra.mxu0 %v815
    %1060 = vmatpush.bf16.msra.mxu0 %v814
    %1061 = vmatpush.bf16.msra.mxu0 %v813
    %1062 = vmatpush.bf16.msra.mxu0 %v812
    %1063 = vmatpush.bf16.msra.mxu0 %v811
    %1064 = vmatpush.bf16.msra.mxu0 %v810
    %1065 = vmatpush.bf16.msra.mxu0 %v809
    %1066 = vmatmul.bf16.gmra.mxu0 %v129
    %v1067 = vpop.f32.mrf.mxu0
    %v1068 = vadd.f32 %v1055, %v1067
    %v1069 = vpop.f32.mrf.mxu0
    %1070 = vdwg.mxu0
    %1071 = vmatpush.bf16.msra.mxu0 %v824
    %1072 = vmatpush.bf16.msra.mxu0 %v823
    %1073 = vmatpush.bf16.msra.mxu0 %v822
    %1074 = vmatpush.bf16.msra.mxu0 %v821
    %1075 = vmatpush.bf16.msra.mxu0 %v820
    %1076 = vmatpush.bf16.msra.mxu0 %v819
    %1077 = vmatpush.bf16.msra.mxu0 %v818
    %1078 = vmatpush.bf16.msra.mxu0 %v817
    %1079 = vmatmul.bf16.gmra.mxu0 %v130
    %v1080 = vpop.f32.mrf.mxu0
    %v1081 = vadd.f32 %v1068, %v1080
    %v1082 = vpop.f32.mrf.mxu0
    %1083 = vdwg.mxu0
    %1084 = vmatpush.bf16.msra.mxu0 %v832
    %1085 = vmatpush.bf16.msra.mxu0 %v831
    %1086 = vmatpush.bf16.msra.mxu0 %v830
    %1087 = vmatpush.bf16.msra.mxu0 %v829
    %1088 = vmatpush.bf16.msra.mxu0 %v828
    %1089 = vmatpush.bf16.msra.mxu0 %v827
    %1090 = vmatpush.bf16.msra.mxu0 %v826
    %1091 = vmatpush.bf16.msra.mxu0 %v825
    %1092 = vmatmul.bf16.gmra.mxu0 %v131
    %v1093 = vpop.f32.mrf.mxu0
    %v1094 = vadd.f32 %v1081, %v1093
    %v1095 = vpop.f32.mrf.mxu0
    %1096 = vdwg.mxu0
    %1097 = vmatpush.bf16.msra.mxu0 0
    %1098 = vmatpush.bf16.msra.mxu0 0
    %1099 = vmatpush.bf16.msra.mxu0 0
    %1100 = vmatpush.bf16.msra.mxu0 0
    %1101 = vmatpush.bf16.msra.mxu0 %v836
    %1102 = vmatpush.bf16.msra.mxu0 %v835
    %1103 = vmatpush.bf16.msra.mxu0 %v834
    %1104 = vmatpush.bf16.msra.mxu0 %v833
    %1105 = vmatmul.bf16.gmra.mxu0 %v939
    %v1106 = vpop.f32.mrf.mxu0
    %v1107 = vadd.f32 %v1094, %v1106
    %v1108 = vpop.f32.mrf.mxu0
    %1109 = vdwg.mxu0
    %v1110 = vmax.f32 %v1107, 0.0
    %v1111 = vpack.c.bf16 %v1110, %v1110
    %v1112 = vld [vmem:[#allocation7] sm:$0xf]
    %v1113 = vld [vmem:[#allocation7 + $0x4] sm:$0xf]
    %v1114 = vld [vmem:[#allocation7 + $0x8] sm:$0xf]
    %v1115 = vld [vmem:[#allocation7 + $0xc] sm:$0xf]
    %v1116 = vld [vmem:[#allocation7 + $0x10] sm:$0xf]
    %v1117 = vld [vmem:[#allocation7 + $0x14] sm:$0xf]
    %v1118 = vld [vmem:[#allocation7 + $0x18] sm:$0xf]
    %v1119 = vld [vmem:[#allocation7 + $0x1c] sm:$0xf]
    %v1120 = vld [vmem:[#allocation7 + $0x20] sm:$0xf]
    %v1121 = vld [vmem:[#allocation7 + $0x24] sm:$0xf]
    %v1122 = vld [vmem:[#allocation7 + $0x28] sm:$0xf]
    %v1123 = vld [vmem:[#allocation7 + $0x2c] sm:$0xf]
    %v1124 = vld [vmem:[#allocation7 + $0x30] sm:$0xf]
    %v1125 = vld [vmem:[#allocation7 + $0x34] sm:$0xf]
    %v1126 = vld [vmem:[#allocation7 + $0x38] sm:$0xf]
    %v1127 = vld [vmem:[#allocation7 + $0x3c] sm:$0xf]
    %v1128 = vld [vmem:[#allocation8] sm:$0x1]
    %v1130 = vperm.slane %v1128, 0
    %v1148 = vunpack.c.l.b16 %v1112
    %v1149 = vunpack.c.l.b16 %v1113
    %v1150 = vunpack.c.l.b16 %v1114
    %v1151 = vunpack.c.l.b16 %v1115
    %v1152 = vunpack.c.l.b16 %v1116
    %v1153 = vunpack.c.l.b16 %v1117
    %v1154 = vunpack.c.l.b16 %v1118
    %v1155 = vunpack.c.l.b16 %v1119
    %v1156 = vunpack.c.l.b16 %v1120
    %v1157 = vunpack.c.l.b16 %v1121
    %v1158 = vunpack.c.l.b16 %v1122
    %v1159 = vunpack.c.l.b16 %v1123
    %v1160 = vunpack.c.l.b16 %v1124
    %v1161 = vunpack.c.l.b16 %v1125
    %v1162 = vunpack.c.l.b16 %v1126
    %v1163 = vunpack.c.l.b16 %v1127
    %v1164 = vpack.c.b16 %v1149, %v1148
    %v1165 = vpack.c.b16 %v1151, %v1150
    %v1166 = vpack.c.b16 %v1153, %v1152
    %v1167 = vpack.c.b16 %v1155, %v1154
    %v1168 = vpack.c.b16 %v1157, %v1156
    %v1169 = vpack.c.b16 %v1159, %v1158
    %v1170 = vpack.c.b16 %v1161, %v1160
    %v1171 = vpack.c.b16 %v1163, %v1162
    %1180 = vmatpush.bf16.msra.mxu0 %v1171
    %1181 = vmatpush.bf16.msra.mxu0 %v1170
    %1182 = vmatpush.bf16.msra.mxu0 %v1169
    %1183 = vmatpush.bf16.msra.mxu0 %v1168
    %1184 = vmatpush.bf16.msra.mxu0 %v1167
    %1185 = vmatpush.bf16.msra.mxu0 %v1166
    %1186 = vmatpush.bf16.msra.mxu0 %v1165
    %1187 = vmatpush.bf16.msra.mxu0 %v1164
    %1188 = vmatmul.bf16.gmra.mxu0 %v1111
    %v1189 = vpop.f32.mrf.mxu0
    %v1190 = vadd.f32 %v1130, %v1189
    %v1191 = vpop.f32.mrf.mxu0
    %1192 = vdwg.mxu0
    %1193 = vst [vmem:[#allocation10] sm:$0x3] %v1190
    // Predicated region
    $region38: #{cnn_mnist_forward.5} parent=1 // pred_check
      _
    $region39: #{cnn_mnist_forward.5} parent=1 // pred_check_branch
      %1195 = sbr.rel (0) target = $region41
    $region40: #{cnn_mnist_forward.5} parent=1 // pred_region
      %1197 = vsyncadd [#allocation4], 0
      %s1199 = sshll.u32 [#allocation10], 4
      %s1200 = int_to_ptr.vmem [resolvable:$true] %s1199
      %s1201 = sshll.u32 %s5, 4
      %s1202 = int_to_ptr.hbm [resolvable:$true] %s1201
      %1204 = dma.vmem_to_hbm [thread:$0]  %s1200, 32, %s1202, [#allocation4]
    $region41: #{cnn_mnist_forward.5} parent=1 // pred_fallthru
      _
    // Predicated region
    $region42: #{cnn_mnist_forward.5} parent=1 // pred_check
      _
    $region43: #{cnn_mnist_forward.5} parent=1 // pred_check_branch
      %1206 = sbr.rel (0) target = $region45
    $region44: #{cnn_mnist_forward.5} parent=1 // pred_region
      %1208 = dma.done [#allocation4], 32
    $region45: #{cnn_mnist_forward.5} parent=1 // pred_fallthru
      _
    %1209 = vsyncpa [#allocation3], 1
    %1210 = vsyncpa [#allocation6], 1
    %1211 = vsyncpa [#allocation9], 1
    %1212 = vsyncpa [#allocation4], 1

// kernel: cnn_mnist_forward.4
$region0: #{cnn_mnist_forward.4}
  #allocation0 [shape = 'u32[]', space=smem, size = 0x4, offset = 0x4, fixed_abs, tag = 'smem constant byte address 0x4 - core index']
  #allocation1 [shape = 'u32[72,128]{1,0:T(1,128)}', space=vmem, size = 0x9000, scoped, tag = 'internal scratch']
  %s0 = inlined_call_operand.vmem [shape: f32[26,416], index: 0, kind: input, shape index: {}]
  %s1 = inlined_call_operand.hbm [shape: bf16[1248,640], index: 1, kind: input, shape index: {}]
  %s2 = inlined_call_operand.hbm [shape: f32[1,640], index: 2, kind: input, shape index: {}]
  %s3 = inlined_call_operand.hbm [shape: f32[5,10], index: 3, kind: input, shape index: {}]
  %s4 = inlined_call_operand.vmem [shape: f32[10,320], index: 4, kind: output, shape index: {}]
  %s5 = sld [smem:[#allocation0]]
  $region38: #{cnn_mnist_forward.4} parent=0
    _
  %s7 = ssub.s32 1, %s5
  %s8 = scalar_select 0, %s7, %s5
  $region1: #{cnn_mnist_forward.4} parent=0
    #allocation2 [shape = 'u8[1597440]{0}', space=vmem, size = 0x186000, scoped, tag = 'input window, operand 1, single buffered']
    #allocation3 [shape = 's32[1]{0}', space=sflag, size = 0x4, scoped, tag = 'scoped memory for cnn_mnist_forward.4']
    #allocation4 [shape = 'u8[2560]{0}', space=vmem, size = 0xc00, scoped, tag = 'input window, operand 2, single buffered']
    #allocation5 [shape = 's32[1]{0}', space=sflag, size = 0x4, scoped, tag = 'scoped memory for cnn_mnist_forward.4']
    #allocation6 [shape = 'u8[4096]{0}', space=vmem, size = 0x1000, scoped, tag = 'input window, operand 3, single buffered']
    %9 = vsyncpa [#allocation3], 0
    %10 = vsyncpa [#allocation5], 0
    // Predicated region
    $region2: #{cnn_mnist_forward.4} parent=1 // pred_check
      _
    $region3: #{cnn_mnist_forward.4} parent=1 // pred_check_branch
      %12 = sbr.rel (0) target = $region5
    $region4: #{cnn_mnist_forward.4} parent=1 // pred_region
      _
    $region5: #{cnn_mnist_forward.4} parent=1 // pred_fallthru
      _
    // Predicated region
    $region6: #{cnn_mnist_forward.4} parent=1 // pred_check
      _
    $region7: #{cnn_mnist_forward.4} parent=1 // pred_check_branch
      %14 = sbr.rel (0) target = $region9
    $region8: #{cnn_mnist_forward.4} parent=1 // pred_region
      %16 = vsyncadd [#allocation3], 0
      %s17 = sshll.u32 %s1, 4
      %s18 = int_to_ptr.hbm [resolvable:$true] %s17
      %s19 = sshll.u32 [#allocation2], 4
      %s20 = int_to_ptr.vmem [resolvable:$true] %s19
      %25 = dma.hbm_to_vmem [thread:$0]  %s18, 49920, %s20, [#allocation3], 320, 320, 20
    $region9: #{cnn_mnist_forward.4} parent=1 // pred_fallthru
      _
    // Predicated region
    $region10: #{cnn_mnist_forward.4} parent=1 // pred_check
      _
    $region11: #{cnn_mnist_forward.4} parent=1 // pred_check_branch
      %27 = sbr.rel (0) target = $region13
    $region12: #{cnn_mnist_forward.4} parent=1 // pred_region
      %29 = vsyncadd [#allocation5], 0
      %s31 = sshll.u32 %s2, 4
      %s32 = int_to_ptr.hbm [resolvable:$true] %s31
      %s33 = sshll.u32 [#allocation4], 4
      %s34 = int_to_ptr.vmem [resolvable:$true] %s33
      %36 = dma.hbm_to_vmem [thread:$0]  %s32, 80, %s34, [#allocation5]
    $region13: #{cnn_mnist_forward.4} parent=1 // pred_fallthru
      _
    // Predicated region
    $region14: #{cnn_mnist_forward.4} parent=1 // pred_check
      _
    $region15: #{cnn_mnist_forward.4} parent=1 // pred_check_branch
      %38 = sbr.rel (0) target = $region17
    $region16: #{cnn_mnist_forward.4} parent=1 // pred_region
      %40 = vsyncadd [#allocation5], 0
      %s42 = sshll.u32 %s3, 4
      %s43 = int_to_ptr.hbm [resolvable:$true] %s42
      %s44 = sshll.u32 [#allocation6], 4
      %s45 = int_to_ptr.vmem [resolvable:$true] %s44
      %47 = dma.hbm_to_vmem [thread:$0]  %s43, 128, %s45, [#allocation5]
    $region17: #{cnn_mnist_forward.4} parent=1 // pred_fallthru
      _
    // Predicated region
    $region18: #{cnn_mnist_forward.4} parent=1 // pred_check
      _
    $region19: #{cnn_mnist_forward.4} parent=1 // pred_check_branch
      %49 = sbr.rel (0) target = $region21
    $region20: #{cnn_mnist_forward.4} parent=1 // pred_region
      %51 = dma.done [#allocation3], 49920
    $region21: #{cnn_mnist_forward.4} parent=1 // pred_fallthru
      _
    // Predicated region
    $region22: #{cnn_mnist_forward.4} parent=1 // pred_check
      _
    $region23: #{cnn_mnist_forward.4} parent=1 // pred_check_branch
      %53 = sbr.rel (0) target = $region25
    $region24: #{cnn_mnist_forward.4} parent=1 // pred_region
      %55 = dma.done [#allocation5], 80
    $region25: #{cnn_mnist_forward.4} parent=1 // pred_fallthru
      _
    // Predicated region
    $region26: #{cnn_mnist_forward.4} parent=1 // pred_check
      _
    $region27: #{cnn_mnist_forward.4} parent=1 // pred_check_branch
      %57 = sbr.rel (0) target = $region29
    $region28: #{cnn_mnist_forward.4} parent=1 // pred_region
      %59 = dma.done [#allocation5], 128
    $region29: #{cnn_mnist_forward.4} parent=1 // pred_fallthru
      _
    %v61 = vld [vmem:[%s0] sm:$0xff]
    %v62 = vld [vmem:[%s0 + $0x8] sm:$0xff]
    %v63 = vld [vmem:[%s0 + $0x10] sm:$0xff]
    %v64 = vld [vmem:[%s0 + $0x18] sm:$0xff]
    %v65 = vld [vmem:[%s0 + $0x20] sm:$0xff]
    %v66 = vld [vmem:[%s0 + $0x28] sm:$0xff]
    %v67 = vld [vmem:[%s0 + $0x30] sm:$0xff]
    %v68 = vld [vmem:[%s0 + $0x38] sm:$0xff]
    %v69 = vld [vmem:[%s0 + $0x40] sm:$0xff]
    %v70 = vld [vmem:[%s0 + $0x48] sm:$0xff]
    %v71 = vld [vmem:[%s0 + $0x50] sm:$0xff]
    %v72 = vld [vmem:[%s0 + $0x58] sm:$0xff]
    %v73 = vld [vmem:[%s0 + $0x60] sm:$0x3]
    %v74 = vld [vmem:[%s0 + $0x68] sm:$0x3]
    %v75 = vld [vmem:[%s0 + $0x70] sm:$0x3]
    %v76 = vld [vmem:[%s0 + $0x78] sm:$0x3]
    %v77 = vpack.c.bf16 %v62, %v61
    %v78 = vpack.c.bf16 %v64, %v63
    %v79 = vpack.c.bf16 %v66, %v65
    %v80 = vpack.c.bf16 %v68, %v67
    %v81 = vpack.c.bf16 %v70, %v69
    %v82 = vpack.c.bf16 %v72, %v71
    %v83 = vpack.c.bf16 %v74, %v73
    %v84 = vpack.c.bf16 %v76, %v75
    %v91 = vunpack.c.l.b16 %v77
    %v92 = vunpack.c.h.b16 %v77
    %v93 = vunpack.c.l.b16 %v78
    %v94 = vunpack.c.h.b16 %v78
    %v95 = vunpack.c.l.b16 %v79
    %v96 = vunpack.c.h.b16 %v79
    %v97 = vunpack.c.l.b16 %v80
    %v98 = vunpack.c.h.b16 %v80
    %v99 = vunpack.c.l.b16 %v81
    %v100 = vunpack.c.h.b16 %v81
    %v101 = vunpack.c.l.b16 %v82
    %v102 = vunpack.c.h.b16 %v82
    %v103 = vpack.c.b16 %v95, %v91
    %v104 = vpack.c.b16 %v96, %v92
    %v105 = vpack.c.b16 %v97, %v93
    %v106 = vpack.c.b16 %v98, %v94
    %v107 = vpack.c.b16 %v99, %v99
    %v108 = vpack.c.b16 %v100, %v100
    %v109 = vpack.c.b16 %v101, %v101
    %v110 = vpack.c.b16 %v102, %v102
    %v119 = vunpack.c.l.b16 %v83
    %v120 = vunpack.c.h.b16 %v83
    %v121 = vunpack.c.l.b16 %v84
    %v122 = vunpack.c.h.b16 %v84
    %v123 = vpack.c.b16 %v119, %v99
    %v124 = vpack.c.b16 %v120, %v100
    %v125 = vpack.c.b16 %v121, %v101
    %v126 = vpack.c.b16 %v122, %v102
    %vm127 = vsmask.f32 7424
    %v129 = vshrl.u32 %v103, 16
    %v131 = vshll.u32 %v103, 16
    %v133 = vrot.slane %v131, 1
    %v134 = vor.u32 %v129, %v133
    %v136 = vshll.u32 %v123, 16
    %v138 = vrot.slane %v136, 1
    %v139 = vsel %vm127, %v134, %v138
    %v141 = vshrl.u32 %v104, 16
    %v143 = vshll.u32 %v104, 16
    %v145 = vrot.slane %v143, 1
    %v146 = vor.u32 %v141, %v145
    %v148 = vshll.u32 %v124, 16
    %v150 = vrot.slane %v148, 1
    %v151 = vsel %vm127, %v146, %v150
    %v153 = vshrl.u32 %v105, 16
    %v155 = vshll.u32 %v105, 16
    %v157 = vrot.slane %v155, 1
    %v158 = vor.u32 %v153, %v157
    %v160 = vshll.u32 %v125, 16
    %v162 = vrot.slane %v160, 1
    %v163 = vsel %vm127, %v158, %v162
    %v165 = vshrl.u32 %v106, 16
    %v167 = vshll.u32 %v106, 16
    %v169 = vrot.slane %v167, 1
    %v170 = vor.u32 %v165, %v169
    %v172 = vshll.u32 %v126, 16
    %v174 = vrot.slane %v172, 1
    %v175 = vsel %vm127, %v170, %v174
    %v176 = vshrl.u32 %v123, 16
    %v178 = vor.u32 %v176, %v138
    %v179 = vshrl.u32 %v124, 16
    %v181 = vor.u32 %v179, %v150
    %v182 = vshrl.u32 %v125, 16
    %v184 = vor.u32 %v182, %v162
    %v185 = vshrl.u32 %v126, 16
    %v187 = vor.u32 %v185, %v174
    %188 = vrot.lane.b32.xlu0 %v139, 32
    %v189 = vpop.permute.xlu0 %188
    %190 = vrot.lane.b32.xlu0 %v151, 32
    %v191 = vpop.permute.xlu0 %190
    %192 = vrot.lane.b32.xlu0 %v163, 32
    %v193 = vpop.permute.xlu0 %192
    %194 = vrot.lane.b32.xlu0 %v175, 32
    %v195 = vpop.permute.xlu0 %194
    %196 = vrot.lane.b32.xlu0 %v178, 32
    %v197 = vpop.permute.xlu0 %196
    %198 = vrot.lane.b32.xlu0 %v181, 32
    %v199 = vpop.permute.xlu0 %198
    %200 = vrot.lane.b32.xlu0 %v184, 32
    %v201 = vpop.permute.xlu0 %200
    %202 = vrot.lane.b32.xlu0 %v187, 32
    %v203 = vpop.permute.xlu0 %202
    %vm204 = vcmask 261120
    %v205 = vsel %vm204, %v189, %v191
    %v206 = vsel %vm204, %v191, %v193
    %v207 = vsel %vm204, %v193, %v195
    %v208 = vsel %vm204, %v197, %v199
    %v209 = vsel %vm204, %v199, %v201
    %v210 = vsel %vm204, %v201, %v203
    %vm215 = vcmask 1046528
    %v216 = vrot.slane %v103, 1
    %v217 = vrot.slane %v123, 1
    %v218 = vsel %vm215, %v216, %v217
    %v219 = vrot.slane %v104, 1
    %v220 = vrot.slane %v124, 1
    %v221 = vsel %vm215, %v219, %v220
    %v222 = vrot.slane %v105, 1
    %v223 = vrot.slane %v125, 1
    %v224 = vsel %vm215, %v222, %v223
    %v225 = vrot.slane %v106, 1
    %v226 = vrot.slane %v126, 1
    %v227 = vsel %vm215, %v225, %v226
    %228 = vrot.lane.b32.xlu0 %v218, 64
    %v229 = vpop.permute.xlu0 %228
    %230 = vrot.lane.b32.xlu0 %v221, 64
    %v231 = vpop.permute.xlu0 %230
    %232 = vrot.lane.b32.xlu0 %v224, 64
    %v233 = vpop.permute.xlu0 %232
    %234 = vrot.lane.b32.xlu0 %v227, 64
    %v235 = vpop.permute.xlu0 %234
    %236 = vrot.lane.b32.xlu0 %v217, 64
    %v237 = vpop.permute.xlu0 %236
    %238 = vrot.lane.b32.xlu0 %v220, 64
    %v239 = vpop.permute.xlu0 %238
    %240 = vrot.lane.b32.xlu0 %v223, 64
    %v241 = vpop.permute.xlu0 %240
    %242 = vrot.lane.b32.xlu0 %v226, 64
    %v243 = vpop.permute.xlu0 %242
    %vm244 = vcmask 523264
    %v245 = vsel %vm244, %v229, %v231
    %v246 = vsel %vm244, %v231, %v233
    %v247 = vsel %vm244, %v233, %v235
    %v248 = vsel %vm244, %v237, %v239
    %v249 = vsel %vm244, %v239, %v241
    %v250 = vsel %vm244, %v241, %v243
    %vm255 = vcmask 261120
    %v257 = vsel %vm255, %v106, %v189
    %v261 = vsel %vm255, %v110, %v197
    %vm263 = vcmask 523264
    %v266 = vsel %vm263, %v207, %v229
    %v270 = vsel %vm263, %v210, %v237
    %v272 = vld [vmem:[#allocation2] sm:$0xff]
    %v273 = vld [vmem:[#allocation2 + $0x8] sm:$0xff]
    %v274 = vld [vmem:[#allocation2 + $0x10] sm:$0xf]
    %v275 = vld [vmem:[#allocation2 + $0x14] sm:$0xff]
    %v276 = vld [vmem:[#allocation2 + $0x1c] sm:$0xff]
    %v277 = vld [vmem:[#allocation2 + $0x24] sm:$0xf]
    %v278 = vld [vmem:[#allocation2 + $0x28] sm:$0xff]
    %v279 = vld [vmem:[#allocation2 + $0x30] sm:$0xff]
    %v280 = vld [vmem:[#allocation2 + $0x38] sm:$0xf]
    %v281 = vld [vmem:[#allocation2 + $0x3c] sm:$0xff]
    %v282 = vld [vmem:[#allocation2 + $0x44] sm:$0xff]
    %v283 = vld [vmem:[#allocation2 + $0x4c] sm:$0xf]
    %v284 = vld [vmem:[#allocation2 + $0x50] sm:$0xff]
    %v285 = vld [vmem:[#allocation2 + $0x58] sm:$0xff]
    %v286 = vld [vmem:[#allocation2 + $0x60] sm:$0xf]
    %v287 = vld [vmem:[#allocation2 + $0x64] sm:$0xff]
    %v288 = vld [vmem:[#allocation2 + $0x6c] sm:$0xff]
    %v289 = vld [vmem:[#allocation2 + $0x74] sm:$0xf]
    %v290 = vld [vmem:[#allocation2 + $0x78] sm:$0xff]
    %v291 = vld [vmem:[#allocation2 + $0x80] sm:$0xff]
    %v292 = vld [vmem:[#allocation2 + $0x88] sm:$0xf]
    %v293 = vld [vmem:[#allocation2 + $0x8c] sm:$0xff]
    %v294 = vld [vmem:[#allocation2 + $0x94] sm:$0xff]
    %v295 = vld [vmem:[#allocation2 + $0x9c] sm:$0xf]
    %v296 = vld [vmem:[#allocation2 + $0xa0] sm:$0xff]
    %v297 = vld [vmem:[#allocation2 + $0xa8] sm:$0xff]
    %v298 = vld [vmem:[#allocation2 + $0xb0] sm:$0xf]
    %v299 = vld [vmem:[#allocation2 + $0xb4] sm:$0xff]
    %v300 = vld [vmem:[#allocation2 + $0xbc] sm:$0xff]
    %v301 = vld [vmem:[#allocation2 + $0xc4] sm:$0xf]
    %v302 = vld [vmem:[#allocation2 + $0xc8] sm:$0xff]
    %v303 = vld [vmem:[#allocation2 + $0xd0] sm:$0xff]
    %v304 = vld [vmem:[#allocation2 + $0xd8] sm:$0xf]
    %v305 = vld [vmem:[#allocation2 + $0xdc] sm:$0xff]
    %v306 = vld [vmem:[#allocation2 + $0xe4] sm:$0xff]
    %v307 = vld [vmem:[#allocation2 + $0xec] sm:$0xf]
    %v308 = vld [vmem:[#allocation2 + $0xf0] sm:$0xff]
    %v309 = vld [vmem:[#allocation2 + $0xf8] sm:$0xff]
    %v310 = vld [vmem:[#allocation2 + $0x100] sm:$0xf]
    %v311 = vld [vmem:[#allocation2 + $0x104] sm:$0xff]
    %v312 = vld [vmem:[#allocation2 + $0x10c] sm:$0xff]
    %v313 = vld [vmem:[#allocation2 + $0x114] sm:$0xf]
    %v314 = vld [vmem:[#allocation2 + $0x118] sm:$0xff]
    %v315 = vld [vmem:[#allocation2 + $0x120] sm:$0xff]
    %v316 = vld [vmem:[#allocation2 + $0x128] sm:$0xf]
    %v317 = vld [vmem:[#allocation2 + $0x12c] sm:$0xff]
    %v318 = vld [vmem:[#allocation2 + $0x134] sm:$0xff]
    %v319 = vld [vmem:[#allocation2 + $0x13c] sm:$0xf]
    %v320 = vld [vmem:[#allocation2 + $0x140] sm:$0xff]
    %v321 = vld [vmem:[#allocation2 + $0x148] sm:$0xff]
    %v322 = vld [vmem:[#allocation2 + $0x150] sm:$0xf]
    %v323 = vld [vmem:[#allocation2 + $0x154] sm:$0xff]
    %v324 = vld [vmem:[#allocation2 + $0x15c] sm:$0xff]
    %v325 = vld [vmem:[#allocation2 + $0x164] sm:$0xf]
    %v326 = vld [vmem:[#allocation2 + $0x168] sm:$0xff]
    %v327 = vld [vmem:[#allocation2 + $0x170] sm:$0xff]
    %v328 = vld [vmem:[#allocation2 + $0x178] sm:$0xf]
    %v329 = vld [vmem:[#allocation2 + $0x17c] sm:$0xff]
    %v330 = vld [vmem:[#allocation2 + $0x184] sm:$0xff]
    %v331 = vld [vmem:[#allocation2 + $0x18c] sm:$0xf]
    %v332 = vld [vmem:[#allocation2 + $0x190] sm:$0xff]
    %v333 = vld [vmem:[#allocation2 + $0x198] sm:$0xff]
    %v334 = vld [vmem:[#allocation2 + $0x1a0] sm:$0xf]
    %v335 = vld [vmem:[#allocation2 + $0x1a4] sm:$0xff]
    %v336 = vld [vmem:[#allocation2 + $0x1ac] sm:$0xff]
    %v337 = vld [vmem:[#allocation2 + $0x1b4] sm:$0xf]
    %v338 = vld [vmem:[#allocation2 + $0x1b8] sm:$0xff]
    %v339 = vld [vmem:[#allocation2 + $0x1c0] sm:$0xff]
    %v340 = vld [vmem:[#allocation2 + $0x1c8] sm:$0xf]
    %v341 = vld [vmem:[#allocation2 + $0x1cc] sm:$0xff]
    %v342 = vld [vmem:[#allocation2 + $0x1d4] sm:$0xff]
    %v343 = vld [vmem:[#allocation2 + $0x1dc] sm:$0xf]
    %v344 = vld [vmem:[#allocation2 + $0x1e0] sm:$0xff]
    %v345 = vld [vmem:[#allocation2 + $0x1e8] sm:$0xff]
    %v346 = vld [vmem:[#allocation2 + $0x1f0] sm:$0xf]
    %v347 = vld [vmem:[#allocation2 + $0x1f4] sm:$0xff]
    %v348 = vld [vmem:[#allocation2 + $0x1fc] sm:$0xff]
    %v349 = vld [vmem:[#allocation2 + $0x204] sm:$0xf]
    %v350 = vld [vmem:[#allocation2 + $0x208] sm:$0xff]
    %v351 = vld [vmem:[#allocation2 + $0x210] sm:$0xff]
    %v352 = vld [vmem:[#allocation2 + $0x218] sm:$0xf]
    %v353 = vld [vmem:[#allocation2 + $0x21c] sm:$0xff]
    %v354 = vld [vmem:[#allocation2 + $0x224] sm:$0xff]
    %v355 = vld [vmem:[#allocation2 + $0x22c] sm:$0xf]
    %v356 = vld [vmem:[#allocation2 + $0x230] sm:$0xff]
    %v357 = vld [vmem:[#allocation2 + $0x238] sm:$0xff]
    %v358 = vld [vmem:[#allocation2 + $0x240] sm:$0xf]
    %v359 = vld [vmem:[#allocation2 + $0x244] sm:$0xff]
    %v360 = vld [vmem:[#allocation2 + $0x24c] sm:$0xff]
    %v361 = vld [vmem:[#allocation2 + $0x254] sm:$0xf]
    %v362 = vld [vmem:[#allocation2 + $0x258] sm:$0xff]
    %v363 = vld [vmem:[#allocation2 + $0x260] sm:$0xff]
    %v364 = vld [vmem:[#allocation2 + $0x268] sm:$0xf]
    %v365 = vld [vmem:[#allocation2 + $0x26c] sm:$0xff]
    %v366 = vld [vmem:[#allocation2 + $0x274] sm:$0xff]
    %v367 = vld [vmem:[#allocation2 + $0x27c] sm:$0xf]
    %v368 = vld [vmem:[#allocation2 + $0x280] sm:$0xff]
    %v369 = vld [vmem:[#allocation2 + $0x288] sm:$0xff]
    %v370 = vld [vmem:[#allocation2 + $0x290] sm:$0xf]
    %v371 = vld [vmem:[#allocation2 + $0x294] sm:$0xff]
    %v372 = vld [vmem:[#allocation2 + $0x29c] sm:$0xff]
    %v373 = vld [vmem:[#allocation2 + $0x2a4] sm:$0xf]
    %v374 = vld [vmem:[#allocation2 + $0x2a8] sm:$0xff]
    %v375 = vld [vmem:[#allocation2 + $0x2b0] sm:$0xff]
    %v376 = vld [vmem:[#allocation2 + $0x2b8] sm:$0xf]
    %v377 = vld [vmem:[#allocation2 + $0x2bc] sm:$0xff]
    %v378 = vld [vmem:[#allocation2 + $0x2c4] sm:$0xff]
    %v379 = vld [vmem:[#allocation2 + $0x2cc] sm:$0xf]
    %v380 = vld [vmem:[#allocation2 + $0x2d0] sm:$0xff]
    %v381 = vld [vmem:[#allocation2 + $0x2d8] sm:$0xff]
    %v382 = vld [vmem:[#allocation2 + $0x2e0] sm:$0xf]
    %v383 = vld [vmem:[#allocation2 + $0x2e4] sm:$0xff]
    %v384 = vld [vmem:[#allocation2 + $0x2ec] sm:$0xff]
    %v385 = vld [vmem:[#allocation2 + $0x2f4] sm:$0xf]
    %v386 = vld [vmem:[#allocation2 + $0x2f8] sm:$0xff]
    %v387 = vld [vmem:[#allocation2 + $0x300] sm:$0xff]
    %v388 = vld [vmem:[#allocation2 + $0x308] sm:$0xf]
    %v389 = vld [vmem:[#allocation2 + $0x30c] sm:$0xff]
    %v390 = vld [vmem:[#allocation2 + $0x314] sm:$0xff]
    %v391 = vld [vmem:[#allocation2 + $0x31c] sm:$0xf]
    %v392 = vld [vmem:[#allocation2 + $0x320] sm:$0xff]
    %v393 = vld [vmem:[#allocation2 + $0x328] sm:$0xff]
    %v394 = vld [vmem:[#allocation2 + $0x330] sm:$0xf]
    %v395 = vld [vmem:[#allocation2 + $0x334] sm:$0xff]
    %v396 = vld [vmem:[#allocation2 + $0x33c] sm:$0xff]
    %v397 = vld [vmem:[#allocation2 + $0x344] sm:$0xf]
    %v398 = vld [vmem:[#allocation2 + $0x348] sm:$0xff]
    %v399 = vld [vmem:[#allocation2 + $0x350] sm:$0xff]
    %v400 = vld [vmem:[#allocation2 + $0x358] sm:$0xf]
    %v401 = vld [vmem:[#allocation2 + $0x35c] sm:$0xff]
    %v402 = vld [vmem:[#allocation2 + $0x364] sm:$0xff]
    %v403 = vld [vmem:[#allocation2 + $0x36c] sm:$0xf]
    %v404 = vld [vmem:[#allocation2 + $0x370] sm:$0xff]
    %v405 = vld [vmem:[#allocation2 + $0x378] sm:$0xff]
    %v406 = vld [vmem:[#allocation2 + $0x380] sm:$0xf]
    %v407 = vld [vmem:[#allocation2 + $0x384] sm:$0xff]
    %v408 = vld [vmem:[#allocation2 + $0x38c] sm:$0xff]
    %v409 = vld [vmem:[#allocation2 + $0x394] sm:$0xf]
    %v410 = vld [vmem:[#allocation2 + $0x398] sm:$0xff]
    %v411 = vld [vmem:[#allocation2 + $0x3a0] sm:$0xff]
    %v412 = vld [vmem:[#allocation2 + $0x3a8] sm:$0xf]
    %v413 = vld [vmem:[#allocation2 + $0x3ac] sm:$0xff]
    %v414 = vld [vmem:[#allocation2 + $0x3b4] sm:$0xff]
    %v415 = vld [vmem:[#allocation2 + $0x3bc] sm:$0xf]
    %v416 = vld [vmem:[#allocation2 + $0x3c0] sm:$0xff]
    %v417 = vld [vmem:[#allocation2 + $0x3c8] sm:$0xff]
    %v418 = vld [vmem:[#allocation2 + $0x3d0] sm:$0xf]
    %v419 = vld [vmem:[#allocation2 + $0x3d4] sm:$0xff]
    %v420 = vld [vmem:[#allocation2 + $0x3dc] sm:$0xff]
    %v421 = vld [vmem:[#allocation2 + $0x3e4] sm:$0xf]
    %v422 = vld [vmem:[#allocation2 + $0x3e8] sm:$0xff]
    %v423 = vld [vmem:[#allocation2 + $0x3f0] sm:$0xff]
    %v424 = vld [vmem:[#allocation2 + $0x3f8] sm:$0xf]
    %v425 = vld [vmem:[#allocation2 + $0x3fc] sm:$0xff]
    %v426 = vld [vmem:[#allocation2 + $0x404] sm:$0xff]
    %v427 = vld [vmem:[#allocation2 + $0x40c] sm:$0xf]
    %v428 = vld [vmem:[#allocation2 + $0x410] sm:$0xff]
    %v429 = vld [vmem:[#allocation2 + $0x418] sm:$0xff]
    %v430 = vld [vmem:[#allocation2 + $0x420] sm:$0xf]
    %v431 = vld [vmem:[#allocation2 + $0x424] sm:$0xff]
    %v432 = vld [vmem:[#allocation2 + $0x42c] sm:$0xff]
    %v433 = vld [vmem:[#allocation2 + $0x434] sm:$0xf]
    %v434 = vld [vmem:[#allocation2 + $0x438] sm:$0xff]
    %v435 = vld [vmem:[#allocation2 + $0x440] sm:$0xff]
    %v436 = vld [vmem:[#allocation2 + $0x448] sm:$0xf]
    %v437 = vld [vmem:[#allocation2 + $0x44c] sm:$0xff]
    %v438 = vld [vmem:[#allocation2 + $0x454] sm:$0xff]
    %v439 = vld [vmem:[#allocation2 + $0x45c] sm:$0xf]
    %v440 = vld [vmem:[#allocation2 + $0x460] sm:$0xff]
    %v441 = vld [vmem:[#allocation2 + $0x468] sm:$0xff]
    %v442 = vld [vmem:[#allocation2 + $0x470] sm:$0xf]
    %v443 = vld [vmem:[#allocation2 + $0x474] sm:$0xff]
    %v444 = vld [vmem:[#allocation2 + $0x47c] sm:$0xff]
    %v445 = vld [vmem:[#allocation2 + $0x484] sm:$0xf]
    %v446 = vld [vmem:[#allocation2 + $0x488] sm:$0xff]
    %v447 = vld [vmem:[#allocation2 + $0x490] sm:$0xff]
    %v448 = vld [vmem:[#allocation2 + $0x498] sm:$0xf]
    %v449 = vld [vmem:[#allocation2 + $0x49c] sm:$0xff]
    %v450 = vld [vmem:[#allocation2 + $0x4a4] sm:$0xff]
    %v451 = vld [vmem:[#allocation2 + $0x4ac] sm:$0xf]
    %v452 = vld [vmem:[#allocation2 + $0x4b0] sm:$0xff]
    %v453 = vld [vmem:[#allocation2 + $0x4b8] sm:$0xff]
    %v454 = vld [vmem:[#allocation2 + $0x4c0] sm:$0xf]
    %v455 = vld [vmem:[#allocation2 + $0x4c4] sm:$0xff]
    %v456 = vld [vmem:[#allocation2 + $0x4cc] sm:$0xff]
    %v457 = vld [vmem:[#allocation2 + $0x4d4] sm:$0xf]
    %v458 = vld [vmem:[#allocation2 + $0x4d8] sm:$0xff]
    %v459 = vld [vmem:[#allocation2 + $0x4e0] sm:$0xff]
    %v460 = vld [vmem:[#allocation2 + $0x4e8] sm:$0xf]
    %v461 = vld [vmem:[#allocation2 + $0x4ec] sm:$0xff]
    %v462 = vld [vmem:[#allocation2 + $0x4f4] sm:$0xff]
    %v463 = vld [vmem:[#allocation2 + $0x4fc] sm:$0xf]
    %v464 = vld [vmem:[#allocation2 + $0x500] sm:$0xff]
    %v465 = vld [vmem:[#allocation2 + $0x508] sm:$0xff]
    %v466 = vld [vmem:[#allocation2 + $0x510] sm:$0xf]
    %v467 = vld [vmem:[#allocation2 + $0x514] sm:$0xff]
    %v468 = vld [vmem:[#allocation2 + $0x51c] sm:$0xff]
    %v469 = vld [vmem:[#allocation2 + $0x524] sm:$0xf]
    %v470 = vld [vmem:[#allocation2 + $0x528] sm:$0xff]
    %v471 = vld [vmem:[#allocation2 + $0x530] sm:$0xff]
    %v472 = vld [vmem:[#allocation2 + $0x538] sm:$0xf]
    %v473 = vld [vmem:[#allocation2 + $0x53c] sm:$0xff]
    %v474 = vld [vmem:[#allocation2 + $0x544] sm:$0xff]
    %v475 = vld [vmem:[#allocation2 + $0x54c] sm:$0xf]
    %v476 = vld [vmem:[#allocation2 + $0x550] sm:$0xff]
    %v477 = vld [vmem:[#allocation2 + $0x558] sm:$0xff]
    %v478 = vld [vmem:[#allocation2 + $0x560] sm:$0xf]
    %v479 = vld [vmem:[#allocation2 + $0x564] sm:$0xff]
    %v480 = vld [vmem:[#allocation2 + $0x56c] sm:$0xff]
    %v481 = vld [vmem:[#allocation2 + $0x574] sm:$0xf]
    %v482 = vld [vmem:[#allocation2 + $0x578] sm:$0xff]
    %v483 = vld [vmem:[#allocation2 + $0x580] sm:$0xff]
    %v484 = vld [vmem:[#allocation2 + $0x588] sm:$0xf]
    %v485 = vld [vmem:[#allocation2 + $0x58c] sm:$0xff]
    %v486 = vld [vmem:[#allocation2 + $0x594] sm:$0xff]
    %v487 = vld [vmem:[#allocation2 + $0x59c] sm:$0xf]
    %v488 = vld [vmem:[#allocation2 + $0x5a0] sm:$0xff]
    %v489 = vld [vmem:[#allocation2 + $0x5a8] sm:$0xff]
    %v490 = vld [vmem:[#allocation2 + $0x5b0] sm:$0xf]
    %v491 = vld [vmem:[#allocation2 + $0x5b4] sm:$0xff]
    %v492 = vld [vmem:[#allocation2 + $0x5bc] sm:$0xff]
    %v493 = vld [vmem:[#allocation2 + $0x5c4] sm:$0xf]
    %v494 = vld [vmem:[#allocation2 + $0x5c8] sm:$0xff]
    %v495 = vld [vmem:[#allocation2 + $0x5d0] sm:$0xff]
    %v496 = vld [vmem:[#allocation2 + $0x5d8] sm:$0xf]
    %v497 = vld [vmem:[#allocation2 + $0x5dc] sm:$0xff]
    %v498 = vld [vmem:[#allocation2 + $0x5e4] sm:$0xff]
    %v499 = vld [vmem:[#allocation2 + $0x5ec] sm:$0xf]
    %v500 = vld [vmem:[#allocation2 + $0x5f0] sm:$0xff]
    %v501 = vld [vmem:[#allocation2 + $0x5f8] sm:$0xff]
    %v502 = vld [vmem:[#allocation2 + $0x600] sm:$0xf]
    %v503 = vld [vmem:[#allocation2 + $0x604] sm:$0xff]
    %v504 = vld [vmem:[#allocation2 + $0x60c] sm:$0xff]
    %v505 = vld [vmem:[#allocation2 + $0x614] sm:$0xf]
    %v506 = vld [vmem:[#allocation2 + $0x618] sm:$0xff]
    %v507 = vld [vmem:[#allocation2 + $0x620] sm:$0xff]
    %v508 = vld [vmem:[#allocation2 + $0x628] sm:$0xf]
    %v509 = vld [vmem:[#allocation2 + $0x62c] sm:$0xff]
    %v510 = vld [vmem:[#allocation2 + $0x634] sm:$0xff]
    %v511 = vld [vmem:[#allocation2 + $0x63c] sm:$0xf]
    %v512 = vld [vmem:[#allocation2 + $0x640] sm:$0xff]
    %v513 = vld [vmem:[#allocation2 + $0x648] sm:$0xff]
    %v514 = vld [vmem:[#allocation2 + $0x650] sm:$0xf]
    %v515 = vld [vmem:[#allocation2 + $0x654] sm:$0xff]
    %v516 = vld [vmem:[#allocation2 + $0x65c] sm:$0xff]
    %v517 = vld [vmem:[#allocation2 + $0x664] sm:$0xf]
    %v518 = vld [vmem:[#allocation2 + $0x668] sm:$0xff]
    %v519 = vld [vmem:[#allocation2 + $0x670] sm:$0xff]
    %v520 = vld [vmem:[#allocation2 + $0x678] sm:$0xf]
    %v521 = vld [vmem:[#allocation2 + $0x67c] sm:$0xff]
    %v522 = vld [vmem:[#allocation2 + $0x684] sm:$0xff]
    %v523 = vld [vmem:[#allocation2 + $0x68c] sm:$0xf]
    %v524 = vld [vmem:[#allocation2 + $0x690] sm:$0xff]
    %v525 = vld [vmem:[#allocation2 + $0x698] sm:$0xff]
    %v526 = vld [vmem:[#allocation2 + $0x6a0] sm:$0xf]
    %v527 = vld [vmem:[#allocation2 + $0x6a4] sm:$0xff]
    %v528 = vld [vmem:[#allocation2 + $0x6ac] sm:$0xff]
    %v529 = vld [vmem:[#allocation2 + $0x6b4] sm:$0xf]
    %v530 = vld [vmem:[#allocation2 + $0x6b8] sm:$0xff]
    %v531 = vld [vmem:[#allocation2 + $0x6c0] sm:$0xff]
    %v532 = vld [vmem:[#allocation2 + $0x6c8] sm:$0xf]
    %v533 = vld [vmem:[#allocation2 + $0x6cc] sm:$0xff]
    %v534 = vld [vmem:[#allocation2 + $0x6d4] sm:$0xff]
    %v535 = vld [vmem:[#allocation2 + $0x6dc] sm:$0xf]
    %v536 = vld [vmem:[#allocation2 + $0x6e0] sm:$0xff]
    %v537 = vld [vmem:[#allocation2 + $0x6e8] sm:$0xff]
    %v538 = vld [vmem:[#allocation2 + $0x6f0] sm:$0xf]
    %v539 = vld [vmem:[#allocation2 + $0x6f4] sm:$0xff]
    %v540 = vld [vmem:[#allocation2 + $0x6fc] sm:$0xff]
    %v541 = vld [vmem:[#allocation2 + $0x704] sm:$0xf]
    %v542 = vld [vmem:[#allocation2 + $0x708] sm:$0xff]
    %v543 = vld [vmem:[#allocation2 + $0x710] sm:$0xff]
    %v544 = vld [vmem:[#allocation2 + $0x718] sm:$0xf]
    %v545 = vld [vmem:[#allocation2 + $0x71c] sm:$0xff]
    %v546 = vld [vmem:[#allocation2 + $0x724] sm:$0xff]
    %v547 = vld [vmem:[#allocation2 + $0x72c] sm:$0xf]
    %v548 = vld [vmem:[#allocation2 + $0x730] sm:$0xff]
    %v549 = vld [vmem:[#allocation2 + $0x738] sm:$0xff]
    %v550 = vld [vmem:[#allocation2 + $0x740] sm:$0xf]
    %v551 = vld [vmem:[#allocation2 + $0x744] sm:$0xff]
    %v552 = vld [vmem:[#allocation2 + $0x74c] sm:$0xff]
    %v553 = vld [vmem:[#allocation2 + $0x754] sm:$0xf]
    %v554 = vld [vmem:[#allocation2 + $0x758] sm:$0xff]
    %v555 = vld [vmem:[#allocation2 + $0x760] sm:$0xff]
    %v556 = vld [vmem:[#allocation2 + $0x768] sm:$0xf]
    %v557 = vld [vmem:[#allocation2 + $0x76c] sm:$0xff]
    %v558 = vld [vmem:[#allocation2 + $0x774] sm:$0xff]
    %v559 = vld [vmem:[#allocation2 + $0x77c] sm:$0xf]
    %v560 = vld [vmem:[#allocation2 + $0x780] sm:$0xff]
    %v561 = vld [vmem:[#allocation2 + $0x788] sm:$0xff]
    %v562 = vld [vmem:[#allocation2 + $0x790] sm:$0xf]
    %v563 = vld [vmem:[#allocation2 + $0x794] sm:$0xff]
    %v564 = vld [vmem:[#allocation2 + $0x79c] sm:$0xff]
    %v565 = vld [vmem:[#allocation2 + $0x7a4] sm:$0xf]
    %v566 = vld [vmem:[#allocation2 + $0x7a8] sm:$0xff]
    %v567 = vld [vmem:[#allocation2 + $0x7b0] sm:$0xff]
    %v568 = vld [vmem:[#allocation2 + $0x7b8] sm:$0xf]
    %v569 = vld [vmem:[#allocation2 + $0x7bc] sm:$0xff]
    %v570 = vld [vmem:[#allocation2 + $0x7c4] sm:$0xff]
    %v571 = vld [vmem:[#allocation2 + $0x7cc] sm:$0xf]
    %v572 = vld [vmem:[#allocation2 + $0x7d0] sm:$0xff]
    %v573 = vld [vmem:[#allocation2 + $0x7d8] sm:$0xff]
    %v574 = vld [vmem:[#allocation2 + $0x7e0] sm:$0xf]
    %v575 = vld [vmem:[#allocation2 + $0x7e4] sm:$0xff]
    %v576 = vld [vmem:[#allocation2 + $0x7ec] sm:$0xff]
    %v577 = vld [vmem:[#allocation2 + $0x7f4] sm:$0xf]
    %v578 = vld [vmem:[#allocation2 + $0x7f8] sm:$0xff]
    %v579 = vld [vmem:[#allocation2 + $0x800] sm:$0xff]
    %v580 = vld [vmem:[#allocation2 + $0x808] sm:$0xf]
    %v581 = vld [vmem:[#allocation2 + $0x80c] sm:$0xff]
    %v582 = vld [vmem:[#allocation2 + $0x814] sm:$0xff]
    %v583 = vld [vmem:[#allocation2 + $0x81c] sm:$0xf]
    %v584 = vld [vmem:[#allocation2 + $0x820] sm:$0xff]
    %v585 = vld [vmem:[#allocation2 + $0x828] sm:$0xff]
    %v586 = vld [vmem:[#allocation2 + $0x830] sm:$0xf]
    %v587 = vld [vmem:[#allocation2 + $0x834] sm:$0xff]
    %v588 = vld [vmem:[#allocation2 + $0x83c] sm:$0xff]
    %v589 = vld [vmem:[#allocation2 + $0x844] sm:$0xf]
    %v590 = vld [vmem:[#allocation2 + $0x848] sm:$0xff]
    %v591 = vld [vmem:[#allocation2 + $0x850] sm:$0xff]
    %v592 = vld [vmem:[#allocation2 + $0x858] sm:$0xf]
    %v593 = vld [vmem:[#allocation2 + $0x85c] sm:$0xff]
    %v594 = vld [vmem:[#allocation2 + $0x864] sm:$0xff]
    %v595 = vld [vmem:[#allocation2 + $0x86c] sm:$0xf]
    %v596 = vld [vmem:[#allocation2 + $0x870] sm:$0xff]
    %v597 = vld [vmem:[#allocation2 + $0x878] sm:$0xff]
    %v598 = vld [vmem:[#allocation2 + $0x880] sm:$0xf]
    %v599 = vld [vmem:[#allocation2 + $0x884] sm:$0xff]
    %v600 = vld [vmem:[#allocation2 + $0x88c] sm:$0xff]
    %v601 = vld [vmem:[#allocation2 + $0x894] sm:$0xf]
    %v602 = vld [vmem:[#allocation2 + $0x898] sm:$0xff]
    %v603 = vld [vmem:[#allocation2 + $0x8a0] sm:$0xff]
    %v604 = vld [vmem:[#allocation2 + $0x8a8] sm:$0xf]
    %v605 = vld [vmem:[#allocation2 + $0x8ac] sm:$0xff]
    %v606 = vld [vmem:[#allocation2 + $0x8b4] sm:$0xff]
    %v607 = vld [vmem:[#allocation2 + $0x8bc] sm:$0xf]
    %v608 = vld [vmem:[#allocation2 + $0x8c0] sm:$0xff]
    %v609 = vld [vmem:[#allocation2 + $0x8c8] sm:$0xff]
    %v610 = vld [vmem:[#allocation2 + $0x8d0] sm:$0xf]
    %v611 = vld [vmem:[#allocation2 + $0x8d4] sm:$0xff]
    %v612 = vld [vmem:[#allocation2 + $0x8dc] sm:$0xff]
    %v613 = vld [vmem:[#allocation2 + $0x8e4] sm:$0xf]
    %v614 = vld [vmem:[#allocation2 + $0x8e8] sm:$0xff]
    %v615 = vld [vmem:[#allocation2 + $0x8f0] sm:$0xff]
    %v616 = vld [vmem:[#allocation2 + $0x8f8] sm:$0xf]
    %v617 = vld [vmem:[#allocation2 + $0x8fc] sm:$0xff]
    %v618 = vld [vmem:[#allocation2 + $0x904] sm:$0xff]
    %v619 = vld [vmem:[#allocation2 + $0x90c] sm:$0xf]
    %v620 = vld [vmem:[#allocation2 + $0x910] sm:$0xff]
    %v621 = vld [vmem:[#allocation2 + $0x918] sm:$0xff]
    %v622 = vld [vmem:[#allocation2 + $0x920] sm:$0xf]
    %v623 = vld [vmem:[#allocation2 + $0x924] sm:$0xff]
    %v624 = vld [vmem:[#allocation2 + $0x92c] sm:$0xff]
    %v625 = vld [vmem:[#allocation2 + $0x934] sm:$0xf]
    %v626 = vld [vmem:[#allocation2 + $0x938] sm:$0xff]
    %v627 = vld [vmem:[#allocation2 + $0x940] sm:$0xff]
    %v628 = vld [vmem:[#allocation2 + $0x948] sm:$0xf]
    %v629 = vld [vmem:[#allocation2 + $0x94c] sm:$0xff]
    %v630 = vld [vmem:[#allocation2 + $0x954] sm:$0xff]
    %v631 = vld [vmem:[#allocation2 + $0x95c] sm:$0xf]
    %v632 = vld [vmem:[#allocation2 + $0x960] sm:$0xff]
    %v633 = vld [vmem:[#allocation2 + $0x968] sm:$0xff]
    %v634 = vld [vmem:[#allocation2 + $0x970] sm:$0xf]
    %v635 = vld [vmem:[#allocation2 + $0x974] sm:$0xff]
    %v636 = vld [vmem:[#allocation2 + $0x97c] sm:$0xff]
    %v637 = vld [vmem:[#allocation2 + $0x984] sm:$0xf]
    %v638 = vld [vmem:[#allocation2 + $0x988] sm:$0xff]
    %v639 = vld [vmem:[#allocation2 + $0x990] sm:$0xff]
    %v640 = vld [vmem:[#allocation2 + $0x998] sm:$0xf]
    %v641 = vld [vmem:[#allocation2 + $0x99c] sm:$0xff]
    %v642 = vld [vmem:[#allocation2 + $0x9a4] sm:$0xff]
    %v643 = vld [vmem:[#allocation2 + $0x9ac] sm:$0xf]
    %v644 = vld [vmem:[#allocation2 + $0x9b0] sm:$0xff]
    %v645 = vld [vmem:[#allocation2 + $0x9b8] sm:$0xff]
    %v646 = vld [vmem:[#allocation2 + $0x9c0] sm:$0xf]
    %v647 = vld [vmem:[#allocation2 + $0x9c4] sm:$0xff]
    %v648 = vld [vmem:[#allocation2 + $0x9cc] sm:$0xff]
    %v649 = vld [vmem:[#allocation2 + $0x9d4] sm:$0xf]
    %v650 = vld [vmem:[#allocation2 + $0x9d8] sm:$0xff]
    %v651 = vld [vmem:[#allocation2 + $0x9e0] sm:$0xff]
    %v652 = vld [vmem:[#allocation2 + $0x9e8] sm:$0xf]
    %v653 = vld [vmem:[#allocation2 + $0x9ec] sm:$0xff]
    %v654 = vld [vmem:[#allocation2 + $0x9f4] sm:$0xff]
    %v655 = vld [vmem:[#allocation2 + $0x9fc] sm:$0xf]
    %v656 = vld [vmem:[#allocation2 + $0xa00] sm:$0xff]
    %v657 = vld [vmem:[#allocation2 + $0xa08] sm:$0xff]
    %v658 = vld [vmem:[#allocation2 + $0xa10] sm:$0xf]
    %v659 = vld [vmem:[#allocation2 + $0xa14] sm:$0xff]
    %v660 = vld [vmem:[#allocation2 + $0xa1c] sm:$0xff]
    %v661 = vld [vmem:[#allocation2 + $0xa24] sm:$0xf]
    %v662 = vld [vmem:[#allocation2 + $0xa28] sm:$0xff]
    %v663 = vld [vmem:[#allocation2 + $0xa30] sm:$0xff]
    %v664 = vld [vmem:[#allocation2 + $0xa38] sm:$0xf]
    %v665 = vld [vmem:[#allocation2 + $0xa3c] sm:$0xff]
    %v666 = vld [vmem:[#allocation2 + $0xa44] sm:$0xff]
    %v667 = vld [vmem:[#allocation2 + $0xa4c] sm:$0xf]
    %v668 = vld [vmem:[#allocation2 + $0xa50] sm:$0xff]
    %v669 = vld [vmem:[#allocation2 + $0xa58] sm:$0xff]
    %v670 = vld [vmem:[#allocation2 + $0xa60] sm:$0xf]
    %v671 = vld [vmem:[#allocation2 + $0xa64] sm:$0xff]
    %v672 = vld [vmem:[#allocation2 + $0xa6c] sm:$0xff]
    %v673 = vld [vmem:[#allocation2 + $0xa74] sm:$0xf]
    %v674 = vld [vmem:[#allocation2 + $0xa78] sm:$0xff]
    %v675 = vld [vmem:[#allocation2 + $0xa80] sm:$0xff]
    %v676 = vld [vmem:[#allocation2 + $0xa88] sm:$0xf]
    %v677 = vld [vmem:[#allocation2 + $0xa8c] sm:$0xff]
    %v678 = vld [vmem:[#allocation2 + $0xa94] sm:$0xff]
    %v679 = vld [vmem:[#allocation2 + $0xa9c] sm:$0xf]
    %v680 = vld [vmem:[#allocation2 + $0xaa0] sm:$0xff]
    %v681 = vld [vmem:[#allocation2 + $0xaa8] sm:$0xff]
    %v682 = vld [vmem:[#allocation2 + $0xab0] sm:$0xf]
    %v683 = vld [vmem:[#allocation2 + $0xab4] sm:$0xff]
    %v684 = vld [vmem:[#allocation2 + $0xabc] sm:$0xff]
    %v685 = vld [vmem:[#allocation2 + $0xac4] sm:$0xf]
    %v686 = vld [vmem:[#allocation2 + $0xac8] sm:$0xff]
    %v687 = vld [vmem:[#allocation2 + $0xad0] sm:$0xff]
    %v688 = vld [vmem:[#allocation2 + $0xad8] sm:$0xf]
    %v689 = vld [vmem:[#allocation2 + $0xadc] sm:$0xff]
    %v690 = vld [vmem:[#allocation2 + $0xae4] sm:$0xff]
    %v691 = vld [vmem:[#allocation2 + $0xaec] sm:$0xf]
    %v692 = vld [vmem:[#allocation2 + $0xaf0] sm:$0xff]
    %v693 = vld [vmem:[#allocation2 + $0xaf8] sm:$0xff]
    %v694 = vld [vmem:[#allocation2 + $0xb00] sm:$0xf]
    %v695 = vld [vmem:[#allocation2 + $0xb04] sm:$0xff]
    %v696 = vld [vmem:[#allocation2 + $0xb0c] sm:$0xff]
    %v697 = vld [vmem:[#allocation2 + $0xb14] sm:$0xf]
    %v698 = vld [vmem:[#allocation2 + $0xb18] sm:$0xff]
    %v699 = vld [vmem:[#allocation2 + $0xb20] sm:$0xff]
    %v700 = vld [vmem:[#allocation2 + $0xb28] sm:$0xf]
    %v701 = vld [vmem:[#allocation2 + $0xb2c] sm:$0xff]
    %v702 = vld [vmem:[#allocation2 + $0xb34] sm:$0xff]
    %v703 = vld [vmem:[#allocation2 + $0xb3c] sm:$0xf]
    %v704 = vld [vmem:[#allocation2 + $0xb40] sm:$0xff]
    %v705 = vld [vmem:[#allocation2 + $0xb48] sm:$0xff]
    %v706 = vld [vmem:[#allocation2 + $0xb50] sm:$0xf]
    %v707 = vld [vmem:[#allocation2 + $0xb54] sm:$0xff]
    %v708 = vld [vmem:[#allocation2 + $0xb5c] sm:$0xff]
    %v709 = vld [vmem:[#allocation2 + $0xb64] sm:$0xf]
    %v710 = vld [vmem:[#allocation2 + $0xb68] sm:$0xff]
    %v711 = vld [vmem:[#allocation2 + $0xb70] sm:$0xff]
    %v712 = vld [vmem:[#allocation2 + $0xb78] sm:$0xf]
    %v713 = vld [vmem:[#allocation2 + $0xb7c] sm:$0xff]
    %v714 = vld [vmem:[#allocation2 + $0xb84] sm:$0xff]
    %v715 = vld [vmem:[#allocation2 + $0xb8c] sm:$0xf]
    %v716 = vld [vmem:[#allocation2 + $0xb90] sm:$0xff]
    %v717 = vld [vmem:[#allocation2 + $0xb98] sm:$0xff]
    %v718 = vld [vmem:[#allocation2 + $0xba0] sm:$0xf]
    %v719 = vld [vmem:[#allocation2 + $0xba4] sm:$0xff]
    %v720 = vld [vmem:[#allocation2 + $0xbac] sm:$0xff]
    %v721 = vld [vmem:[#allocation2 + $0xbb4] sm:$0xf]
    %v722 = vld [vmem:[#allocation2 + $0xbb8] sm:$0xff]
    %v723 = vld [vmem:[#allocation2 + $0xbc0] sm:$0xff]
    %v724 = vld [vmem:[#allocation2 + $0xbc8] sm:$0xf]
    %v725 = vld [vmem:[#allocation2 + $0xbcc] sm:$0xff]
    %v726 = vld [vmem:[#allocation2 + $0xbd4] sm:$0xff]
    %v727 = vld [vmem:[#allocation2 + $0xbdc] sm:$0xf]
    %v728 = vld [vmem:[#allocation2 + $0xbe0] sm:$0xff]
    %v729 = vld [vmem:[#allocation2 + $0xbe8] sm:$0xff]
    %v730 = vld [vmem:[#allocation2 + $0xbf0] sm:$0xf]
    %v731 = vld [vmem:[#allocation2 + $0xbf4] sm:$0xff]
    %v732 = vld [vmem:[#allocation2 + $0xbfc] sm:$0xff]
    %v733 = vld [vmem:[#allocation2 + $0xc04] sm:$0xf]
    %v734 = vld [vmem:[#allocation2 + $0xc08] sm:$0xff]
    %v735 = vld [vmem:[#allocation2 + $0xc10] sm:$0xff]
    %v736 = vld [vmem:[#allocation2 + $0xc18] sm:$0xf]
    %v737 = vld [vmem:[#allocation2 + $0xc1c] sm:$0xff]
    %v738 = vld [vmem:[#allocation2 + $0xc24] sm:$0xff]
    %v739 = vld [vmem:[#allocation2 + $0xc2c] sm:$0xf]
    %v740 = vld [vmem:[#allocation4] sm:$0x1f]
    %v742 = vperm.slane %v740, 0
    %v743 = vperm.slane %v740, 1
    %v744 = vperm.slane %v740, 2
    %v745 = vperm.slane %v740, 3
    %v746 = vperm.slane %v740, 4
    %v1220 = vunpack.c.l.b16 %v272
    %v1221 = vunpack.c.h.b16 %v272
    %v1222 = vunpack.c.l.b16 %v273
    %v1223 = vunpack.c.h.b16 %v273
    %v1224 = vunpack.c.l.b16 %v274
    %v1225 = vunpack.c.l.b16 %v275
    %v1226 = vunpack.c.h.b16 %v275
    %v1227 = vunpack.c.l.b16 %v276
    %v1228 = vunpack.c.h.b16 %v276
    %v1229 = vunpack.c.l.b16 %v277
    %v1230 = vunpack.c.l.b16 %v278
    %v1231 = vunpack.c.h.b16 %v278
    %v1232 = vunpack.c.l.b16 %v279
    %v1233 = vunpack.c.h.b16 %v279
    %v1234 = vunpack.c.l.b16 %v280
    %v1235 = vunpack.c.l.b16 %v281
    %v1236 = vunpack.c.h.b16 %v281
    %v1237 = vunpack.c.l.b16 %v282
    %v1238 = vunpack.c.h.b16 %v282
    %v1239 = vunpack.c.l.b16 %v283
    %v1240 = vunpack.c.l.b16 %v284
    %v1241 = vunpack.c.h.b16 %v284
    %v1242 = vunpack.c.l.b16 %v285
    %v1243 = vunpack.c.h.b16 %v285
    %v1244 = vunpack.c.l.b16 %v286
    %v1245 = vunpack.c.l.b16 %v287
    %v1246 = vunpack.c.h.b16 %v287
    %v1247 = vunpack.c.l.b16 %v288
    %v1248 = vunpack.c.h.b16 %v288
    %v1249 = vunpack.c.l.b16 %v289
    %v1250 = vunpack.c.l.b16 %v290
    %v1251 = vunpack.c.h.b16 %v290
    %v1252 = vunpack.c.l.b16 %v291
    %v1253 = vunpack.c.h.b16 %v291
    %v1254 = vunpack.c.l.b16 %v292
    %v1255 = vunpack.c.l.b16 %v293
    %v1256 = vunpack.c.h.b16 %v293
    %v1257 = vunpack.c.l.b16 %v294
    %v1258 = vunpack.c.h.b16 %v294
    %v1259 = vunpack.c.l.b16 %v295
    %v1260 = vunpack.c.l.b16 %v296
    %v1261 = vunpack.c.h.b16 %v296
    %v1262 = vunpack.c.l.b16 %v297
    %v1263 = vunpack.c.h.b16 %v297
    %v1264 = vunpack.c.l.b16 %v298
    %v1265 = vunpack.c.l.b16 %v299
    %v1266 = vunpack.c.h.b16 %v299
    %v1267 = vunpack.c.l.b16 %v300
    %v1268 = vunpack.c.h.b16 %v300
    %v1269 = vunpack.c.l.b16 %v301
    %v1270 = vunpack.c.l.b16 %v302
    %v1271 = vunpack.c.h.b16 %v302
    %v1272 = vunpack.c.l.b16 %v303
    %v1273 = vunpack.c.h.b16 %v303
    %v1274 = vunpack.c.l.b16 %v304
    %v1275 = vunpack.c.l.b16 %v305
    %v1276 = vunpack.c.h.b16 %v305
    %v1277 = vunpack.c.l.b16 %v306
    %v1278 = vunpack.c.h.b16 %v306
    %v1279 = vunpack.c.l.b16 %v307
    %v1280 = vunpack.c.l.b16 %v308
    %v1281 = vunpack.c.h.b16 %v308
    %v1282 = vunpack.c.l.b16 %v309
    %v1283 = vunpack.c.h.b16 %v309
    %v1284 = vunpack.c.l.b16 %v310
    %v1285 = vunpack.c.l.b16 %v311
    %v1286 = vunpack.c.h.b16 %v311
    %v1287 = vunpack.c.l.b16 %v312
    %v1288 = vunpack.c.h.b16 %v312
    %v1289 = vunpack.c.l.b16 %v313
    %v1290 = vunpack.c.l.b16 %v314
    %v1291 = vunpack.c.h.b16 %v314
    %v1292 = vunpack.c.l.b16 %v315
    %v1293 = vunpack.c.h.b16 %v315
    %v1294 = vunpack.c.l.b16 %v316
    %v1295 = vunpack.c.l.b16 %v317
    %v1296 = vunpack.c.h.b16 %v317
    %v1297 = vunpack.c.l.b16 %v318
    %v1298 = vunpack.c.h.b16 %v318
    %v1299 = vunpack.c.l.b16 %v319
    %v1300 = vunpack.c.l.b16 %v320
    %v1301 = vunpack.c.h.b16 %v320
    %v1302 = vunpack.c.l.b16 %v321
    %v1303 = vunpack.c.h.b16 %v321
    %v1304 = vunpack.c.l.b16 %v322
    %v1305 = vunpack.c.l.b16 %v323
    %v1306 = vunpack.c.h.b16 %v323
    %v1307 = vunpack.c.l.b16 %v324
    %v1308 = vunpack.c.h.b16 %v324
    %v1309 = vunpack.c.l.b16 %v325
    %v1310 = vunpack.c.l.b16 %v326
    %v1311 = vunpack.c.h.b16 %v326
    %v1312 = vunpack.c.l.b16 %v327
    %v1313 = vunpack.c.h.b16 %v327
    %v1314 = vunpack.c.l.b16 %v328
    %v1315 = vunpack.c.l.b16 %v329
    %v1316 = vunpack.c.h.b16 %v329
    %v1317 = vunpack.c.l.b16 %v330
    %v1318 = vunpack.c.h.b16 %v330
    %v1319 = vunpack.c.l.b16 %v331
    %v1320 = vunpack.c.l.b16 %v332
    %v1321 = vunpack.c.h.b16 %v332
    %v1322 = vunpack.c.l.b16 %v333
    %v1323 = vunpack.c.h.b16 %v333
    %v1324 = vunpack.c.l.b16 %v334
    %v1325 = vunpack.c.l.b16 %v335
    %v1326 = vunpack.c.h.b16 %v335
    %v1327 = vunpack.c.l.b16 %v336
    %v1328 = vunpack.c.h.b16 %v336
    %v1329 = vunpack.c.l.b16 %v337
    %v1330 = vunpack.c.l.b16 %v338
    %v1331 = vunpack.c.h.b16 %v338
    %v1332 = vunpack.c.l.b16 %v339
    %v1333 = vunpack.c.h.b16 %v339
    %v1334 = vunpack.c.l.b16 %v340
    %v1335 = vunpack.c.l.b16 %v341
    %v1336 = vunpack.c.h.b16 %v341
    %v1337 = vunpack.c.l.b16 %v342
    %v1338 = vunpack.c.h.b16 %v342
    %v1339 = vunpack.c.l.b16 %v343
    %v1340 = vunpack.c.l.b16 %v344
    %v1341 = vunpack.c.h.b16 %v344
    %v1342 = vunpack.c.l.b16 %v345
    %v1343 = vunpack.c.h.b16 %v345
    %v1344 = vunpack.c.l.b16 %v346
    %v1345 = vunpack.c.l.b16 %v347
    %v1346 = vunpack.c.h.b16 %v347
    %v1347 = vunpack.c.l.b16 %v348
    %v1348 = vunpack.c.h.b16 %v348
    %v1349 = vunpack.c.l.b16 %v349
    %v1350 = vunpack.c.l.b16 %v350
    %v1351 = vunpack.c.h.b16 %v350
    %v1352 = vunpack.c.l.b16 %v351
    %v1353 = vunpack.c.h.b16 %v351
    %v1354 = vunpack.c.l.b16 %v352
    %v1355 = vunpack.c.l.b16 %v353
    %v1356 = vunpack.c.h.b16 %v353
    %v1357 = vunpack.c.l.b16 %v354
    %v1358 = vunpack.c.h.b16 %v354
    %v1359 = vunpack.c.l.b16 %v355
    %v1360 = vunpack.c.l.b16 %v356
    %v1361 = vunpack.c.h.b16 %v356
    %v1362 = vunpack.c.l.b16 %v357
    %v1363 = vunpack.c.h.b16 %v357
    %v1364 = vunpack.c.l.b16 %v358
    %v1365 = vunpack.c.l.b16 %v359
    %v1366 = vunpack.c.h.b16 %v359
    %v1367 = vunpack.c.l.b16 %v360
    %v1368 = vunpack.c.h.b16 %v360
    %v1369 = vunpack.c.l.b16 %v361
    %v1370 = vunpack.c.l.b16 %v362
    %v1371 = vunpack.c.h.b16 %v362
    %v1372 = vunpack.c.l.b16 %v363
    %v1373 = vunpack.c.h.b16 %v363
    %v1374 = vunpack.c.l.b16 %v364
    %v1375 = vunpack.c.l.b16 %v365
    %v1376 = vunpack.c.h.b16 %v365
    %v1377 = vunpack.c.l.b16 %v366
    %v1378 = vunpack.c.h.b16 %v366
    %v1379 = vunpack.c.l.b16 %v367
    %v1380 = vunpack.c.l.b16 %v368
    %v1381 = vunpack.c.h.b16 %v368
    %v1382 = vunpack.c.l.b16 %v369
    %v1383 = vunpack.c.h.b16 %v369
    %v1384 = vunpack.c.l.b16 %v370
    %v1385 = vunpack.c.l.b16 %v371
    %v1386 = vunpack.c.h.b16 %v371
    %v1387 = vunpack.c.l.b16 %v372
    %v1388 = vunpack.c.h.b16 %v372
    %v1389 = vunpack.c.l.b16 %v373
    %v1390 = vunpack.c.l.b16 %v374
    %v1391 = vunpack.c.h.b16 %v374
    %v1392 = vunpack.c.l.b16 %v375
    %v1393 = vunpack.c.h.b16 %v375
    %v1394 = vunpack.c.l.b16 %v376
    %v1395 = vunpack.c.l.b16 %v377
    %v1396 = vunpack.c.h.b16 %v377
    %v1397 = vunpack.c.l.b16 %v378
    %v1398 = vunpack.c.h.b16 %v378
    %v1399 = vunpack.c.l.b16 %v379
    %v1400 = vunpack.c.l.b16 %v380
    %v1401 = vunpack.c.h.b16 %v380
    %v1402 = vunpack.c.l.b16 %v381
    %v1403 = vunpack.c.h.b16 %v381
    %v1404 = vunpack.c.l.b16 %v382
    %v1405 = vunpack.c.l.b16 %v383
    %v1406 = vunpack.c.h.b16 %v383
    %v1407 = vunpack.c.l.b16 %v384
    %v1408 = vunpack.c.h.b16 %v384
    %v1409 = vunpack.c.l.b16 %v385
    %v1410 = vunpack.c.l.b16 %v386
    %v1411 = vunpack.c.h.b16 %v386
    %v1412 = vunpack.c.l.b16 %v387
    %v1413 = vunpack.c.h.b16 %v387
    %v1414 = vunpack.c.l.b16 %v388
    %v1415 = vunpack.c.l.b16 %v389
    %v1416 = vunpack.c.h.b16 %v389
    %v1417 = vunpack.c.l.b16 %v390
    %v1418 = vunpack.c.h.b16 %v390
    %v1419 = vunpack.c.l.b16 %v391
    %v1420 = vunpack.c.l.b16 %v392
    %v1421 = vunpack.c.h.b16 %v392
    %v1422 = vunpack.c.l.b16 %v393
    %v1423 = vunpack.c.h.b16 %v393
    %v1424 = vunpack.c.l.b16 %v394
    %v1425 = vunpack.c.l.b16 %v395
    %v1426 = vunpack.c.h.b16 %v395
    %v1427 = vunpack.c.l.b16 %v396
    %v1428 = vunpack.c.h.b16 %v396
    %v1429 = vunpack.c.l.b16 %v397
    %v1430 = vunpack.c.l.b16 %v398
    %v1431 = vunpack.c.h.b16 %v398
    %v1432 = vunpack.c.l.b16 %v399
    %v1433 = vunpack.c.h.b16 %v399
    %v1434 = vunpack.c.l.b16 %v400
    %v1435 = vunpack.c.l.b16 %v401
    %v1436 = vunpack.c.h.b16 %v401
    %v1437 = vunpack.c.l.b16 %v402
    %v1438 = vunpack.c.h.b16 %v402
    %v1439 = vunpack.c.l.b16 %v403
    %v1440 = vunpack.c.l.b16 %v404
    %v1441 = vunpack.c.h.b16 %v404
    %v1442 = vunpack.c.l.b16 %v405
    %v1443 = vunpack.c.h.b16 %v405
    %v1444 = vunpack.c.l.b16 %v406
    %v1445 = vunpack.c.l.b16 %v407
    %v1446 = vunpack.c.h.b16 %v407
    %v1447 = vunpack.c.l.b16 %v408
    %v1448 = vunpack.c.h.b16 %v408
    %v1449 = vunpack.c.l.b16 %v409
    %v1450 = vunpack.c.l.b16 %v410
    %v1451 = vunpack.c.h.b16 %v410
    %v1452 = vunpack.c.l.b16 %v411
    %v1453 = vunpack.c.h.b16 %v411
    %v1454 = vunpack.c.l.b16 %v412
    %v1455 = vunpack.c.l.b16 %v413
    %v1456 = vunpack.c.h.b16 %v413
    %v1457 = vunpack.c.l.b16 %v414
    %v1458 = vunpack.c.h.b16 %v414
    %v1459 = vunpack.c.l.b16 %v415
    %v1460 = vunpack.c.l.b16 %v416
    %v1461 = vunpack.c.h.b16 %v416
    %v1462 = vunpack.c.l.b16 %v417
    %v1463 = vunpack.c.h.b16 %v417
    %v1464 = vunpack.c.l.b16 %v418
    %v1465 = vunpack.c.l.b16 %v419
    %v1466 = vunpack.c.h.b16 %v419
    %v1467 = vunpack.c.l.b16 %v420
    %v1468 = vunpack.c.h.b16 %v420
    %v1469 = vunpack.c.l.b16 %v421
    %v1470 = vunpack.c.l.b16 %v422
    %v1471 = vunpack.c.h.b16 %v422
    %v1472 = vunpack.c.l.b16 %v423
    %v1473 = vunpack.c.h.b16 %v423
    %v1474 = vunpack.c.l.b16 %v424
    %v1475 = vunpack.c.l.b16 %v425
    %v1476 = vunpack.c.h.b16 %v425
    %v1477 = vunpack.c.l.b16 %v426
    %v1478 = vunpack.c.h.b16 %v426
    %v1479 = vunpack.c.l.b16 %v427
    %v1480 = vunpack.c.l.b16 %v428
    %v1481 = vunpack.c.h.b16 %v428
    %v1482 = vunpack.c.l.b16 %v429
    %v1483 = vunpack.c.h.b16 %v429
    %v1484 = vunpack.c.l.b16 %v430
    %v1485 = vunpack.c.l.b16 %v431
    %v1486 = vunpack.c.h.b16 %v431
    %v1487 = vunpack.c.l.b16 %v432
    %v1488 = vunpack.c.h.b16 %v432
    %v1489 = vunpack.c.l.b16 %v433
    %v1490 = vunpack.c.l.b16 %v434
    %v1491 = vunpack.c.h.b16 %v434
    %v1492 = vunpack.c.l.b16 %v435
    %v1493 = vunpack.c.h.b16 %v435
    %v1494 = vunpack.c.l.b16 %v436
    %v1495 = vunpack.c.l.b16 %v437
    %v1496 = vunpack.c.h.b16 %v437
    %v1497 = vunpack.c.l.b16 %v438
    %v1498 = vunpack.c.h.b16 %v438
    %v1499 = vunpack.c.l.b16 %v439
    %v1500 = vunpack.c.l.b16 %v440
    %v1501 = vunpack.c.h.b16 %v440
    %v1502 = vunpack.c.l.b16 %v441
    %v1503 = vunpack.c.h.b16 %v441
    %v1504 = vunpack.c.l.b16 %v442
    %v1505 = vunpack.c.l.b16 %v443
    %v1506 = vunpack.c.h.b16 %v443
    %v1507 = vunpack.c.l.b16 %v444
    %v1508 = vunpack.c.h.b16 %v444
    %v1509 = vunpack.c.l.b16 %v445
    %v1510 = vunpack.c.l.b16 %v446
    %v1511 = vunpack.c.h.b16 %v446
    %v1512 = vunpack.c.l.b16 %v447
    %v1513 = vunpack.c.h.b16 %v447
    %v1514 = vunpack.c.l.b16 %v448
    %v1515 = vunpack.c.l.b16 %v449
    %v1516 = vunpack.c.h.b16 %v449
    %v1517 = vunpack.c.l.b16 %v450
    %v1518 = vunpack.c.h.b16 %v450
    %v1519 = vunpack.c.l.b16 %v451
    %v1520 = vunpack.c.l.b16 %v452
    %v1521 = vunpack.c.h.b16 %v452
    %v1522 = vunpack.c.l.b16 %v453
    %v1523 = vunpack.c.h.b16 %v453
    %v1524 = vunpack.c.l.b16 %v454
    %v1525 = vunpack.c.l.b16 %v455
    %v1526 = vunpack.c.h.b16 %v455
    %v1527 = vunpack.c.l.b16 %v456
    %v1528 = vunpack.c.h.b16 %v456
    %v1529 = vunpack.c.l.b16 %v457
    %v1530 = vunpack.c.l.b16 %v458
    %v1531 = vunpack.c.h.b16 %v458
    %v1532 = vunpack.c.l.b16 %v459
    %v1533 = vunpack.c.h.b16 %v459
    %v1534 = vunpack.c.l.b16 %v460
    %v1535 = vunpack.c.l.b16 %v461
    %v1536 = vunpack.c.h.b16 %v461
    %v1537 = vunpack.c.l.b16 %v462
    %v1538 = vunpack.c.h.b16 %v462
    %v1539 = vunpack.c.l.b16 %v463
    %v1540 = vunpack.c.l.b16 %v464
    %v1541 = vunpack.c.h.b16 %v464
    %v1542 = vunpack.c.l.b16 %v465
    %v1543 = vunpack.c.h.b16 %v465
    %v1544 = vunpack.c.l.b16 %v466
    %v1545 = vunpack.c.l.b16 %v467
    %v1546 = vunpack.c.h.b16 %v467
    %v1547 = vunpack.c.l.b16 %v468
    %v1548 = vunpack.c.h.b16 %v468
    %v1549 = vunpack.c.l.b16 %v469
    %v1550 = vunpack.c.l.b16 %v470
    %v1551 = vunpack.c.h.b16 %v470
    %v1552 = vunpack.c.l.b16 %v471
    %v1553 = vunpack.c.h.b16 %v471
    %v1554 = vunpack.c.l.b16 %v472
    %v1555 = vunpack.c.l.b16 %v473
    %v1556 = vunpack.c.h.b16 %v473
    %v1557 = vunpack.c.l.b16 %v474
    %v1558 = vunpack.c.h.b16 %v474
    %v1559 = vunpack.c.l.b16 %v475
    %v1560 = vunpack.c.l.b16 %v476
    %v1561 = vunpack.c.h.b16 %v476
    %v1562 = vunpack.c.l.b16 %v477
    %v1563 = vunpack.c.h.b16 %v477
    %v1564 = vunpack.c.l.b16 %v478
    %v1565 = vunpack.c.l.b16 %v479
    %v1566 = vunpack.c.h.b16 %v479
    %v1567 = vunpack.c.l.b16 %v480
    %v1568 = vunpack.c.h.b16 %v480
    %v1569 = vunpack.c.l.b16 %v481
    %v1570 = vunpack.c.l.b16 %v482
    %v1571 = vunpack.c.h.b16 %v482
    %v1572 = vunpack.c.l.b16 %v483
    %v1573 = vunpack.c.h.b16 %v483
    %v1574 = vunpack.c.l.b16 %v484
    %v1575 = vunpack.c.l.b16 %v485
    %v1576 = vunpack.c.h.b16 %v485
    %v1577 = vunpack.c.l.b16 %v486
    %v1578 = vunpack.c.h.b16 %v486
    %v1579 = vunpack.c.l.b16 %v487
    %v1580 = vunpack.c.l.b16 %v488
    %v1581 = vunpack.c.h.b16 %v488
    %v1582 = vunpack.c.l.b16 %v489
    %v1583 = vunpack.c.h.b16 %v489
    %v1584 = vunpack.c.l.b16 %v490
    %v1585 = vunpack.c.l.b16 %v491
    %v1586 = vunpack.c.h.b16 %v491
    %v1587 = vunpack.c.l.b16 %v492
    %v1588 = vunpack.c.h.b16 %v492
    %v1589 = vunpack.c.l.b16 %v493
    %v1590 = vunpack.c.l.b16 %v494
    %v1591 = vunpack.c.h.b16 %v494
    %v1592 = vunpack.c.l.b16 %v495
    %v1593 = vunpack.c.h.b16 %v495
    %v1594 = vunpack.c.l.b16 %v496
    %v1595 = vunpack.c.l.b16 %v497
    %v1596 = vunpack.c.h.b16 %v497
    %v1597 = vunpack.c.l.b16 %v498
    %v1598 = vunpack.c.h.b16 %v498
    %v1599 = vunpack.c.l.b16 %v499
    %v1600 = vunpack.c.l.b16 %v500
    %v1601 = vunpack.c.h.b16 %v500
    %v1602 = vunpack.c.l.b16 %v501
    %v1603 = vunpack.c.h.b16 %v501
    %v1604 = vunpack.c.l.b16 %v502
    %v1605 = vunpack.c.l.b16 %v503
    %v1606 = vunpack.c.h.b16 %v503
    %v1607 = vunpack.c.l.b16 %v504
    %v1608 = vunpack.c.h.b16 %v504
    %v1609 = vunpack.c.l.b16 %v505
    %v1610 = vunpack.c.l.b16 %v506
    %v1611 = vunpack.c.h.b16 %v506
    %v1612 = vunpack.c.l.b16 %v507
    %v1613 = vunpack.c.h.b16 %v507
    %v1614 = vunpack.c.l.b16 %v508
    %v1615 = vunpack.c.l.b16 %v509
    %v1616 = vunpack.c.h.b16 %v509
    %v1617 = vunpack.c.l.b16 %v510
    %v1618 = vunpack.c.h.b16 %v510
    %v1619 = vunpack.c.l.b16 %v511
    %v1620 = vunpack.c.l.b16 %v512
    %v1621 = vunpack.c.h.b16 %v512
    %v1622 = vunpack.c.l.b16 %v513
    %v1623 = vunpack.c.h.b16 %v513
    %v1624 = vunpack.c.l.b16 %v514
    %v1625 = vunpack.c.l.b16 %v515
    %v1626 = vunpack.c.h.b16 %v515
    %v1627 = vunpack.c.l.b16 %v516
    %v1628 = vunpack.c.h.b16 %v516
    %v1629 = vunpack.c.l.b16 %v517
    %v1630 = vunpack.c.l.b16 %v518
    %v1631 = vunpack.c.h.b16 %v518
    %v1632 = vunpack.c.l.b16 %v519
    %v1633 = vunpack.c.h.b16 %v519
    %v1634 = vunpack.c.l.b16 %v520
    %v1635 = vunpack.c.l.b16 %v521
    %v1636 = vunpack.c.h.b16 %v521
    %v1637 = vunpack.c.l.b16 %v522
    %v1638 = vunpack.c.h.b16 %v522
    %v1639 = vunpack.c.l.b16 %v523
    %v1640 = vunpack.c.l.b16 %v524
    %v1641 = vunpack.c.h.b16 %v524
    %v1642 = vunpack.c.l.b16 %v525
    %v1643 = vunpack.c.h.b16 %v525
    %v1644 = vunpack.c.l.b16 %v526
    %v1645 = vunpack.c.l.b16 %v527
    %v1646 = vunpack.c.h.b16 %v527
    %v1647 = vunpack.c.l.b16 %v528
    %v1648 = vunpack.c.h.b16 %v528
    %v1649 = vunpack.c.l.b16 %v529
    %v1650 = vunpack.c.l.b16 %v530
    %v1651 = vunpack.c.h.b16 %v530
    %v1652 = vunpack.c.l.b16 %v531
    %v1653 = vunpack.c.h.b16 %v531
    %v1654 = vunpack.c.l.b16 %v532
    %v1655 = vunpack.c.l.b16 %v533
    %v1656 = vunpack.c.h.b16 %v533
    %v1657 = vunpack.c.l.b16 %v534
    %v1658 = vunpack.c.h.b16 %v534
    %v1659 = vunpack.c.l.b16 %v535
    %v1660 = vunpack.c.l.b16 %v536
    %v1661 = vunpack.c.h.b16 %v536
    %v1662 = vunpack.c.l.b16 %v537
    %v1663 = vunpack.c.h.b16 %v537
    %v1664 = vunpack.c.l.b16 %v538
    %v1665 = vunpack.c.l.b16 %v539
    %v1666 = vunpack.c.h.b16 %v539
    %v1667 = vunpack.c.l.b16 %v540
    %v1668 = vunpack.c.h.b16 %v540
    %v1669 = vunpack.c.l.b16 %v541
    %v1670 = vunpack.c.l.b16 %v542
    %v1671 = vunpack.c.h.b16 %v542
    %v1672 = vunpack.c.l.b16 %v543
    %v1673 = vunpack.c.h.b16 %v543
    %v1674 = vunpack.c.l.b16 %v544
    %v1675 = vunpack.c.l.b16 %v545
    %v1676 = vunpack.c.h.b16 %v545
    %v1677 = vunpack.c.l.b16 %v546
    %v1678 = vunpack.c.h.b16 %v546
    %v1679 = vunpack.c.l.b16 %v547
    %v1680 = vunpack.c.l.b16 %v548
    %v1681 = vunpack.c.h.b16 %v548
    %v1682 = vunpack.c.l.b16 %v549
    %v1683 = vunpack.c.h.b16 %v549
    %v1684 = vunpack.c.l.b16 %v550
    %v1685 = vunpack.c.l.b16 %v551
    %v1686 = vunpack.c.h.b16 %v551
    %v1687 = vunpack.c.l.b16 %v552
    %v1688 = vunpack.c.h.b16 %v552
    %v1689 = vunpack.c.l.b16 %v553
    %v1690 = vunpack.c.l.b16 %v554
    %v1691 = vunpack.c.h.b16 %v554
    %v1692 = vunpack.c.l.b16 %v555
    %v1693 = vunpack.c.h.b16 %v555
    %v1694 = vunpack.c.l.b16 %v556
    %v1695 = vunpack.c.l.b16 %v557
    %v1696 = vunpack.c.h.b16 %v557
    %v1697 = vunpack.c.l.b16 %v558
    %v1698 = vunpack.c.h.b16 %v558
    %v1699 = vunpack.c.l.b16 %v559
    %v1700 = vunpack.c.l.b16 %v560
    %v1701 = vunpack.c.h.b16 %v560
    %v1702 = vunpack.c.l.b16 %v561
    %v1703 = vunpack.c.h.b16 %v561
    %v1704 = vunpack.c.l.b16 %v562
    %v1705 = vunpack.c.l.b16 %v563
    %v1706 = vunpack.c.h.b16 %v563
    %v1707 = vunpack.c.l.b16 %v564
    %v1708 = vunpack.c.h.b16 %v564
    %v1709 = vunpack.c.l.b16 %v565
    %v1710 = vunpack.c.l.b16 %v566
    %v1711 = vunpack.c.h.b16 %v566
    %v1712 = vunpack.c.l.b16 %v567
    %v1713 = vunpack.c.h.b16 %v567
    %v1714 = vunpack.c.l.b16 %v568
    %v1715 = vunpack.c.l.b16 %v569
    %v1716 = vunpack.c.h.b16 %v569
    %v1717 = vunpack.c.l.b16 %v570
    %v1718 = vunpack.c.h.b16 %v570
    %v1719 = vunpack.c.l.b16 %v571
    %v1720 = vunpack.c.l.b16 %v572
    %v1721 = vunpack.c.h.b16 %v572
    %v1722 = vunpack.c.l.b16 %v573
    %v1723 = vunpack.c.h.b16 %v573
    %v1724 = vunpack.c.l.b16 %v574
    %v1725 = vunpack.c.l.b16 %v575
    %v1726 = vunpack.c.h.b16 %v575
    %v1727 = vunpack.c.l.b16 %v576
    %v1728 = vunpack.c.h.b16 %v576
    %v1729 = vunpack.c.l.b16 %v577
    %v1730 = vunpack.c.l.b16 %v578
    %v1731 = vunpack.c.h.b16 %v578
    %v1732 = vunpack.c.l.b16 %v579
    %v1733 = vunpack.c.h.b16 %v579
    %v1734 = vunpack.c.l.b16 %v580
    %v1735 = vunpack.c.l.b16 %v581
    %v1736 = vunpack.c.h.b16 %v581
    %v1737 = vunpack.c.l.b16 %v582
    %v1738 = vunpack.c.h.b16 %v582
    %v1739 = vunpack.c.l.b16 %v583
    %v1740 = vunpack.c.l.b16 %v584
    %v1741 = vunpack.c.h.b16 %v584
    %v1742 = vunpack.c.l.b16 %v585
    %v1743 = vunpack.c.h.b16 %v585
    %v1744 = vunpack.c.l.b16 %v586
    %v1745 = vunpack.c.l.b16 %v587
    %v1746 = vunpack.c.h.b16 %v587
    %v1747 = vunpack.c.l.b16 %v588
    %v1748 = vunpack.c.h.b16 %v588
    %v1749 = vunpack.c.l.b16 %v589
    %v1750 = vunpack.c.l.b16 %v590
    %v1751 = vunpack.c.h.b16 %v590
    %v1752 = vunpack.c.l.b16 %v591
    %v1753 = vunpack.c.h.b16 %v591
    %v1754 = vunpack.c.l.b16 %v592
    %v1755 = vunpack.c.l.b16 %v593
    %v1756 = vunpack.c.h.b16 %v593
    %v1757 = vunpack.c.l.b16 %v594
    %v1758 = vunpack.c.h.b16 %v594
    %v1759 = vunpack.c.l.b16 %v595
    %v1760 = vunpack.c.l.b16 %v596
    %v1761 = vunpack.c.h.b16 %v596
    %v1762 = vunpack.c.l.b16 %v597
    %v1763 = vunpack.c.h.b16 %v597
    %v1764 = vunpack.c.l.b16 %v598
    %v1765 = vunpack.c.l.b16 %v599
    %v1766 = vunpack.c.h.b16 %v599
    %v1767 = vunpack.c.l.b16 %v600
    %v1768 = vunpack.c.h.b16 %v600
    %v1769 = vunpack.c.l.b16 %v601
    %v1770 = vunpack.c.l.b16 %v602
    %v1771 = vunpack.c.h.b16 %v602
    %v1772 = vunpack.c.l.b16 %v603
    %v1773 = vunpack.c.h.b16 %v603
    %v1774 = vunpack.c.l.b16 %v604
    %v1775 = vunpack.c.l.b16 %v605
    %v1776 = vunpack.c.h.b16 %v605
    %v1777 = vunpack.c.l.b16 %v606
    %v1778 = vunpack.c.h.b16 %v606
    %v1779 = vunpack.c.l.b16 %v607
    %v1780 = vunpack.c.l.b16 %v608
    %v1781 = vunpack.c.h.b16 %v608
    %v1782 = vunpack.c.l.b16 %v609
    %v1783 = vunpack.c.h.b16 %v609
    %v1784 = vunpack.c.l.b16 %v610
    %v1785 = vunpack.c.l.b16 %v611
    %v1786 = vunpack.c.h.b16 %v611
    %v1787 = vunpack.c.l.b16 %v612
    %v1788 = vunpack.c.h.b16 %v612
    %v1789 = vunpack.c.l.b16 %v613
    %v1790 = vunpack.c.l.b16 %v614
    %v1791 = vunpack.c.h.b16 %v614
    %v1792 = vunpack.c.l.b16 %v615
    %v1793 = vunpack.c.h.b16 %v615
    %v1794 = vunpack.c.l.b16 %v616
    %v1795 = vunpack.c.l.b16 %v617
    %v1796 = vunpack.c.h.b16 %v617
    %v1797 = vunpack.c.l.b16 %v618
    %v1798 = vunpack.c.h.b16 %v618
    %v1799 = vunpack.c.l.b16 %v619
    %v1800 = vunpack.c.l.b16 %v620
    %v1801 = vunpack.c.h.b16 %v620
    %v1802 = vunpack.c.l.b16 %v621
    %v1803 = vunpack.c.h.b16 %v621
    %v1804 = vunpack.c.l.b16 %v622
    %v1805 = vunpack.c.l.b16 %v623
    %v1806 = vunpack.c.h.b16 %v623
    %v1807 = vunpack.c.l.b16 %v624
    %v1808 = vunpack.c.h.b16 %v624
    %v1809 = vunpack.c.l.b16 %v625
    %v1810 = vunpack.c.l.b16 %v626
    %v1811 = vunpack.c.h.b16 %v626
    %v1812 = vunpack.c.l.b16 %v627
    %v1813 = vunpack.c.h.b16 %v627
    %v1814 = vunpack.c.l.b16 %v628
    %v1815 = vunpack.c.l.b16 %v629
    %v1816 = vunpack.c.h.b16 %v629
    %v1817 = vunpack.c.l.b16 %v630
    %v1818 = vunpack.c.h.b16 %v630
    %v1819 = vunpack.c.l.b16 %v631
    %v1820 = vunpack.c.l.b16 %v632
    %v1821 = vunpack.c.h.b16 %v632
    %v1822 = vunpack.c.l.b16 %v633
    %v1823 = vunpack.c.h.b16 %v633
    %v1824 = vunpack.c.l.b16 %v634
    %v1825 = vunpack.c.l.b16 %v635
    %v1826 = vunpack.c.h.b16 %v635
    %v1827 = vunpack.c.l.b16 %v636
    %v1828 = vunpack.c.h.b16 %v636
    %v1829 = vunpack.c.l.b16 %v637
    %v1830 = vunpack.c.l.b16 %v638
    %v1831 = vunpack.c.h.b16 %v638
    %v1832 = vunpack.c.l.b16 %v639
    %v1833 = vunpack.c.h.b16 %v639
    %v1834 = vunpack.c.l.b16 %v640
    %v1835 = vunpack.c.l.b16 %v641
    %v1836 = vunpack.c.h.b16 %v641
    %v1837 = vunpack.c.l.b16 %v642
    %v1838 = vunpack.c.h.b16 %v642
    %v1839 = vunpack.c.l.b16 %v643
    %v1840 = vunpack.c.l.b16 %v644
    %v1841 = vunpack.c.h.b16 %v644
    %v1842 = vunpack.c.l.b16 %v645
    %v1843 = vunpack.c.h.b16 %v645
    %v1844 = vunpack.c.l.b16 %v646
    %v1845 = vunpack.c.l.b16 %v647
    %v1846 = vunpack.c.h.b16 %v647
    %v1847 = vunpack.c.l.b16 %v648
    %v1848 = vunpack.c.h.b16 %v648
    %v1849 = vunpack.c.l.b16 %v649
    %v1850 = vunpack.c.l.b16 %v650
    %v1851 = vunpack.c.h.b16 %v650
    %v1852 = vunpack.c.l.b16 %v651
    %v1853 = vunpack.c.h.b16 %v651
    %v1854 = vunpack.c.l.b16 %v652
    %v1855 = vunpack.c.l.b16 %v653
    %v1856 = vunpack.c.h.b16 %v653
    %v1857 = vunpack.c.l.b16 %v654
    %v1858 = vunpack.c.h.b16 %v654
    %v1859 = vunpack.c.l.b16 %v655
    %v1860 = vunpack.c.l.b16 %v656
    %v1861 = vunpack.c.h.b16 %v656
    %v1862 = vunpack.c.l.b16 %v657
    %v1863 = vunpack.c.h.b16 %v657
    %v1864 = vunpack.c.l.b16 %v658
    %v1865 = vunpack.c.l.b16 %v659
    %v1866 = vunpack.c.h.b16 %v659
    %v1867 = vunpack.c.l.b16 %v660
    %v1868 = vunpack.c.h.b16 %v660
    %v1869 = vunpack.c.l.b16 %v661
    %v1870 = vunpack.c.l.b16 %v662
    %v1871 = vunpack.c.h.b16 %v662
    %v1872 = vunpack.c.l.b16 %v663
    %v1873 = vunpack.c.h.b16 %v663
    %v1874 = vunpack.c.l.b16 %v664
    %v1875 = vunpack.c.l.b16 %v665
    %v1876 = vunpack.c.h.b16 %v665
    %v1877 = vunpack.c.l.b16 %v666
    %v1878 = vunpack.c.h.b16 %v666
    %v1879 = vunpack.c.l.b16 %v667
    %v1880 = vunpack.c.l.b16 %v668
    %v1881 = vunpack.c.h.b16 %v668
    %v1882 = vunpack.c.l.b16 %v669
    %v1883 = vunpack.c.h.b16 %v669
    %v1884 = vunpack.c.l.b16 %v670
    %v1885 = vunpack.c.l.b16 %v671
    %v1886 = vunpack.c.h.b16 %v671
    %v1887 = vunpack.c.l.b16 %v672
    %v1888 = vunpack.c.h.b16 %v672
    %v1889 = vunpack.c.l.b16 %v673
    %v1890 = vunpack.c.l.b16 %v674
    %v1891 = vunpack.c.h.b16 %v674
    %v1892 = vunpack.c.l.b16 %v675
    %v1893 = vunpack.c.h.b16 %v675
    %v1894 = vunpack.c.l.b16 %v676
    %v1895 = vunpack.c.l.b16 %v677
    %v1896 = vunpack.c.h.b16 %v677
    %v1897 = vunpack.c.l.b16 %v678
    %v1898 = vunpack.c.h.b16 %v678
    %v1899 = vunpack.c.l.b16 %v679
    %v1900 = vunpack.c.l.b16 %v680
    %v1901 = vunpack.c.h.b16 %v680
    %v1902 = vunpack.c.l.b16 %v681
    %v1903 = vunpack.c.h.b16 %v681
    %v1904 = vunpack.c.l.b16 %v682
    %v1905 = vunpack.c.l.b16 %v683
    %v1906 = vunpack.c.h.b16 %v683
    %v1907 = vunpack.c.l.b16 %v684
    %v1908 = vunpack.c.h.b16 %v684
    %v1909 = vunpack.c.l.b16 %v685
    %v1910 = vunpack.c.l.b16 %v686
    %v1911 = vunpack.c.h.b16 %v686
    %v1912 = vunpack.c.l.b16 %v687
    %v1913 = vunpack.c.h.b16 %v687
    %v1914 = vunpack.c.l.b16 %v688
    %v1915 = vunpack.c.l.b16 %v689
    %v1916 = vunpack.c.h.b16 %v689
    %v1917 = vunpack.c.l.b16 %v690
    %v1918 = vunpack.c.h.b16 %v690
    %v1919 = vunpack.c.l.b16 %v691
    %v1920 = vunpack.c.l.b16 %v692
    %v1921 = vunpack.c.h.b16 %v692
    %v1922 = vunpack.c.l.b16 %v693
    %v1923 = vunpack.c.h.b16 %v693
    %v1924 = vunpack.c.l.b16 %v694
    %v1925 = vunpack.c.l.b16 %v695
    %v1926 = vunpack.c.h.b16 %v695
    %v1927 = vunpack.c.l.b16 %v696
    %v1928 = vunpack.c.h.b16 %v696
    %v1929 = vunpack.c.l.b16 %v697
    %v1930 = vunpack.c.l.b16 %v698
    %v1931 = vunpack.c.h.b16 %v698
    %v1932 = vunpack.c.l.b16 %v699
    %v1933 = vunpack.c.h.b16 %v699
    %v1934 = vunpack.c.l.b16 %v700
    %v1935 = vunpack.c.l.b16 %v701
    %v1936 = vunpack.c.h.b16 %v701
    %v1937 = vunpack.c.l.b16 %v702
    %v1938 = vunpack.c.h.b16 %v702
    %v1939 = vunpack.c.l.b16 %v703
    %v1940 = vunpack.c.l.b16 %v704
    %v1941 = vunpack.c.h.b16 %v704
    %v1942 = vunpack.c.l.b16 %v705
    %v1943 = vunpack.c.h.b16 %v705
    %v1944 = vunpack.c.l.b16 %v706
    %v1945 = vunpack.c.l.b16 %v707
    %v1946 = vunpack.c.h.b16 %v707
    %v1947 = vunpack.c.l.b16 %v708
    %v1948 = vunpack.c.h.b16 %v708
    %v1949 = vunpack.c.l.b16 %v709
    %v1950 = vunpack.c.l.b16 %v710
    %v1951 = vunpack.c.h.b16 %v710
    %v1952 = vunpack.c.l.b16 %v711
    %v1953 = vunpack.c.h.b16 %v711
    %v1954 = vunpack.c.l.b16 %v712
    %v1955 = vunpack.c.l.b16 %v713
    %v1956 = vunpack.c.h.b16 %v713
    %v1957 = vunpack.c.l.b16 %v714
    %v1958 = vunpack.c.h.b16 %v714
    %v1959 = vunpack.c.l.b16 %v715
    %v1960 = vunpack.c.l.b16 %v716
    %v1961 = vunpack.c.h.b16 %v716
    %v1962 = vunpack.c.l.b16 %v717
    %v1963 = vunpack.c.h.b16 %v717
    %v1964 = vunpack.c.l.b16 %v718
    %v1965 = vunpack.c.l.b16 %v719
    %v1966 = vunpack.c.h.b16 %v719
    %v1967 = vunpack.c.l.b16 %v720
    %v1968 = vunpack.c.h.b16 %v720
    %v1969 = vunpack.c.l.b16 %v721
    %v1970 = vunpack.c.l.b16 %v722
    %v1971 = vunpack.c.h.b16 %v722
    %v1972 = vunpack.c.l.b16 %v723
    %v1973 = vunpack.c.h.b16 %v723
    %v1974 = vunpack.c.l.b16 %v724
    %v1975 = vunpack.c.l.b16 %v725
    %v1976 = vunpack.c.h.b16 %v725
    %v1977 = vunpack.c.l.b16 %v726
    %v1978 = vunpack.c.h.b16 %v726
    %v1979 = vunpack.c.l.b16 %v727
    %v1980 = vunpack.c.l.b16 %v728
    %v1981 = vunpack.c.h.b16 %v728
    %v1982 = vunpack.c.l.b16 %v729
    %v1983 = vunpack.c.h.b16 %v729
    %v1984 = vunpack.c.l.b16 %v730
    %v1985 = vunpack.c.l.b16 %v731
    %v1986 = vunpack.c.h.b16 %v731
    %v1987 = vunpack.c.l.b16 %v732
    %v1988 = vunpack.c.h.b16 %v732
    %v1989 = vunpack.c.l.b16 %v733
    %v1990 = vunpack.c.l.b16 %v734
    %v1991 = vunpack.c.h.b16 %v734
    %v1992 = vunpack.c.l.b16 %v735
    %v1993 = vunpack.c.h.b16 %v735
    %v1994 = vunpack.c.l.b16 %v736
    %v1995 = vunpack.c.l.b16 %v737
    %v1996 = vunpack.c.h.b16 %v737
    %v1997 = vunpack.c.l.b16 %v738
    %v1998 = vunpack.c.h.b16 %v738
    %v1999 = vunpack.c.l.b16 %v739
    %v2000 = vpack.c.b16 %v1225, %v1220
    %v2001 = vpack.c.b16 %v1226, %v1221
    %v2002 = vpack.c.b16 %v1227, %v1222
    %v2003 = vpack.c.b16 %v1228, %v1223
    %v2004 = vpack.c.b16 %v1229, %v1224
    %v2005 = vpack.c.b16 %v1235, %v1230
    %v2006 = vpack.c.b16 %v1236, %v1231
    %v2007 = vpack.c.b16 %v1237, %v1232
    %v2008 = vpack.c.b16 %v1238, %v1233
    %v2009 = vpack.c.b16 %v1239, %v1234
    %v2010 = vpack.c.b16 %v1245, %v1240
    %v2011 = vpack.c.b16 %v1246, %v1241
    %v2012 = vpack.c.b16 %v1247, %v1242
    %v2013 = vpack.c.b16 %v1248, %v1243
    %v2014 = vpack.c.b16 %v1249, %v1244
    %v2015 = vpack.c.b16 %v1255, %v1250
    %v2016 = vpack.c.b16 %v1256, %v1251
    %v2017 = vpack.c.b16 %v1257, %v1252
    %v2018 = vpack.c.b16 %v1258, %v1253
    %v2019 = vpack.c.b16 %v1259, %v1254
    %v2020 = vpack.c.b16 %v1265, %v1260
    %v2021 = vpack.c.b16 %v1266, %v1261
    %v2022 = vpack.c.b16 %v1267, %v1262
    %v2023 = vpack.c.b16 %v1268, %v1263
    %v2024 = vpack.c.b16 %v1269, %v1264
    %v2025 = vpack.c.b16 %v1275, %v1270
    %v2026 = vpack.c.b16 %v1276, %v1271
    %v2027 = vpack.c.b16 %v1277, %v1272
    %v2028 = vpack.c.b16 %v1278, %v1273
    %v2029 = vpack.c.b16 %v1279, %v1274
    %v2030 = vpack.c.b16 %v1285, %v1280
    %v2031 = vpack.c.b16 %v1286, %v1281
    %v2032 = vpack.c.b16 %v1287, %v1282
    %v2033 = vpack.c.b16 %v1288, %v1283
    %v2034 = vpack.c.b16 %v1289, %v1284
    %v2035 = vpack.c.b16 %v1295, %v1290
    %v2036 = vpack.c.b16 %v1296, %v1291
    %v2037 = vpack.c.b16 %v1297, %v1292
    %v2038 = vpack.c.b16 %v1298, %v1293
    %v2039 = vpack.c.b16 %v1299, %v1294
    %v2040 = vpack.c.b16 %v1305, %v1300
    %v2041 = vpack.c.b16 %v1306, %v1301
    %v2042 = vpack.c.b16 %v1307, %v1302
    %v2043 = vpack.c.b16 %v1308, %v1303
    %v2044 = vpack.c.b16 %v1309, %v1304
    %v2045 = vpack.c.b16 %v1315, %v1310
    %v2046 = vpack.c.b16 %v1316, %v1311
    %v2047 = vpack.c.b16 %v1317, %v1312
    %v2048 = vpack.c.b16 %v1318, %v1313
    %v2049 = vpack.c.b16 %v1319, %v1314
    %v2050 = vpack.c.b16 %v1325, %v1320
    %v2051 = vpack.c.b16 %v1326, %v1321
    %v2052 = vpack.c.b16 %v1327, %v1322
    %v2053 = vpack.c.b16 %v1328, %v1323
    %v2054 = vpack.c.b16 %v1329, %v1324
    %v2055 = vpack.c.b16 %v1335, %v1330
    %v2056 = vpack.c.b16 %v1336, %v1331
    %v2057 = vpack.c.b16 %v1337, %v1332
    %v2058 = vpack.c.b16 %v1338, %v1333
    %v2059 = vpack.c.b16 %v1339, %v1334
    %v2060 = vpack.c.b16 %v1345, %v1340
    %v2061 = vpack.c.b16 %v1346, %v1341
    %v2062 = vpack.c.b16 %v1347, %v1342
    %v2063 = vpack.c.b16 %v1348, %v1343
    %v2064 = vpack.c.b16 %v1349, %v1344
    %v2065 = vpack.c.b16 %v1355, %v1350
    %v2066 = vpack.c.b16 %v1356, %v1351
    %v2067 = vpack.c.b16 %v1357, %v1352
    %v2068 = vpack.c.b16 %v1358, %v1353
    %v2069 = vpack.c.b16 %v1359, %v1354
    %v2070 = vpack.c.b16 %v1365, %v1360
    %v2071 = vpack.c.b16 %v1366, %v1361
    %v2072 = vpack.c.b16 %v1367, %v1362
    %v2073 = vpack.c.b16 %v1368, %v1363
    %v2074 = vpack.c.b16 %v1369, %v1364
    %v2075 = vpack.c.b16 %v1375, %v1370
    %v2076 = vpack.c.b16 %v1376, %v1371
    %v2077 = vpack.c.b16 %v1377, %v1372
    %v2078 = vpack.c.b16 %v1378, %v1373
    %v2079 = vpack.c.b16 %v1379, %v1374
    %v2080 = vpack.c.b16 %v1385, %v1380
    %v2081 = vpack.c.b16 %v1386, %v1381
    %v2082 = vpack.c.b16 %v1387, %v1382
    %v2083 = vpack.c.b16 %v1388, %v1383
    %v2084 = vpack.c.b16 %v1389, %v1384
    %v2085 = vpack.c.b16 %v1395, %v1390
    %v2086 = vpack.c.b16 %v1396, %v1391
    %v2087 = vpack.c.b16 %v1397, %v1392
    %v2088 = vpack.c.b16 %v1398, %v1393
    %v2089 = vpack.c.b16 %v1399, %v1394
    %v2090 = vpack.c.b16 %v1405, %v1400
    %v2091 = vpack.c.b16 %v1406, %v1401
    %v2092 = vpack.c.b16 %v1407, %v1402
    %v2093 = vpack.c.b16 %v1408, %v1403
    %v2094 = vpack.c.b16 %v1409, %v1404
    %v2095 = vpack.c.b16 %v1415, %v1410
    %v2096 = vpack.c.b16 %v1416, %v1411
    %v2097 = vpack.c.b16 %v1417, %v1412
    %v2098 = vpack.c.b16 %v1418, %v1413
    %v2099 = vpack.c.b16 %v1419, %v1414
    %v2100 = vpack.c.b16 %v1425, %v1420
    %v2101 = vpack.c.b16 %v1426, %v1421
    %v2102 = vpack.c.b16 %v1427, %v1422
    %v2103 = vpack.c.b16 %v1428, %v1423
    %v2104 = vpack.c.b16 %v1429, %v1424
    %v2105 = vpack.c.b16 %v1435, %v1430
    %v2106 = vpack.c.b16 %v1436, %v1431
    %v2107 = vpack.c.b16 %v1437, %v1432
    %v2108 = vpack.c.b16 %v1438, %v1433
    %v2109 = vpack.c.b16 %v1439, %v1434
    %v2110 = vpack.c.b16 %v1445, %v1440
    %v2111 = vpack.c.b16 %v1446, %v1441
    %v2112 = vpack.c.b16 %v1447, %v1442
    %v2113 = vpack.c.b16 %v1448, %v1443
    %v2114 = vpack.c.b16 %v1449, %v1444
    %v2115 = vpack.c.b16 %v1455, %v1450
    %v2116 = vpack.c.b16 %v1456, %v1451
    %v2117 = vpack.c.b16 %v1457, %v1452
    %v2118 = vpack.c.b16 %v1458, %v1453
    %v2119 = vpack.c.b16 %v1459, %v1454
    %v2120 = vpack.c.b16 %v1465, %v1460
    %v2121 = vpack.c.b16 %v1466, %v1461
    %v2122 = vpack.c.b16 %v1467, %v1462
    %v2123 = vpack.c.b16 %v1468, %v1463
    %v2124 = vpack.c.b16 %v1469, %v1464
    %v2125 = vpack.c.b16 %v1475, %v1470
    %v2126 = vpack.c.b16 %v1476, %v1471
    %v2127 = vpack.c.b16 %v1477, %v1472
    %v2128 = vpack.c.b16 %v1478, %v1473
    %v2129 = vpack.c.b16 %v1479, %v1474
    %v2130 = vpack.c.b16 %v1485, %v1480
    %v2131 = vpack.c.b16 %v1486, %v1481
    %v2132 = vpack.c.b16 %v1487, %v1482
    %v2133 = vpack.c.b16 %v1488, %v1483
    %v2134 = vpack.c.b16 %v1489, %v1484
    %v2135 = vpack.c.b16 %v1495, %v1490
    %v2136 = vpack.c.b16 %v1496, %v1491
    %v2137 = vpack.c.b16 %v1497, %v1492
    %v2138 = vpack.c.b16 %v1498, %v1493
    %v2139 = vpack.c.b16 %v1499, %v1494
    %v2140 = vpack.c.b16 %v1505, %v1500
    %v2141 = vpack.c.b16 %v1506, %v1501
    %v2142 = vpack.c.b16 %v1507, %v1502
    %v2143 = vpack.c.b16 %v1508, %v1503
    %v2144 = vpack.c.b16 %v1509, %v1504
    %v2145 = vpack.c.b16 %v1515, %v1510
    %v2146 = vpack.c.b16 %v1516, %v1511
    %v2147 = vpack.c.b16 %v1517, %v1512
    %v2148 = vpack.c.b16 %v1518, %v1513
    %v2149 = vpack.c.b16 %v1519, %v1514
    %v2150 = vpack.c.b16 %v1525, %v1520
    %v2151 = vpack.c.b16 %v1526, %v1521
    %v2152 = vpack.c.b16 %v1527, %v1522
    %v2153 = vpack.c.b16 %v1528, %v1523
    %v2154 = vpack.c.b16 %v1529, %v1524
    %v2155 = vpack.c.b16 %v1535, %v1530
    %v2156 = vpack.c.b16 %v1536, %v1531
    %v2157 = vpack.c.b16 %v1537, %v1532
    %v2158 = vpack.c.b16 %v1538, %v1533
    %v2159 = vpack.c.b16 %v1539, %v1534
    %v2160 = vpack.c.b16 %v1545, %v1540
    %v2161 = vpack.c.b16 %v1546, %v1541
    %v2162 = vpack.c.b16 %v1547, %v1542
    %v2163 = vpack.c.b16 %v1548, %v1543
    %v2164 = vpack.c.b16 %v1549, %v1544
    %v2165 = vpack.c.b16 %v1555, %v1550
    %v2166 = vpack.c.b16 %v1556, %v1551
    %v2167 = vpack.c.b16 %v1557, %v1552
    %v2168 = vpack.c.b16 %v1558, %v1553
    %v2169 = vpack.c.b16 %v1559, %v1554
    %v2170 = vpack.c.b16 %v1565, %v1560
    %v2171 = vpack.c.b16 %v1566, %v1561
    %v2172 = vpack.c.b16 %v1567, %v1562
    %v2173 = vpack.c.b16 %v1568, %v1563
    %v2174 = vpack.c.b16 %v1569, %v1564
    %v2175 = vpack.c.b16 %v1575, %v1570
    %v2176 = vpack.c.b16 %v1576, %v1571
    %v2177 = vpack.c.b16 %v1577, %v1572
    %v2178 = vpack.c.b16 %v1578, %v1573
    %v2179 = vpack.c.b16 %v1579, %v1574
    %v2180 = vpack.c.b16 %v1585, %v1580
    %v2181 = vpack.c.b16 %v1586, %v1581
    %v2182 = vpack.c.b16 %v1587, %v1582
    %v2183 = vpack.c.b16 %v1588, %v1583
    %v2184 = vpack.c.b16 %v1589, %v1584
    %v2185 = vpack.c.b16 %v1595, %v1590
    %v2186 = vpack.c.b16 %v1596, %v1591
    %v2187 = vpack.c.b16 %v1597, %v1592
    %v2188 = vpack.c.b16 %v1598, %v1593
    %v2189 = vpack.c.b16 %v1599, %v1594
    %v2190 = vpack.c.b16 %v1605, %v1600
    %v2191 = vpack.c.b16 %v1606, %v1601
    %v2192 = vpack.c.b16 %v1607, %v1602
    %v2193 = vpack.c.b16 %v1608, %v1603
    %v2194 = vpack.c.b16 %v1609, %v1604
    %v2195 = vpack.c.b16 %v1615, %v1610
    %v2196 = vpack.c.b16 %v1616, %v1611
    %v2197 = vpack.c.b16 %v1617, %v1612
    %v2198 = vpack.c.b16 %v1618, %v1613
    %v2199 = vpack.c.b16 %v1619, %v1614
    %v2200 = vpack.c.b16 %v1625, %v1620
    %v2201 = vpack.c.b16 %v1626, %v1621
    %v2202 = vpack.c.b16 %v1627, %v1622
    %v2203 = vpack.c.b16 %v1628, %v1623
    %v2204 = vpack.c.b16 %v1629, %v1624
    %v2205 = vpack.c.b16 %v1635, %v1630
    %v2206 = vpack.c.b16 %v1636, %v1631
    %v2207 = vpack.c.b16 %v1637, %v1632
    %v2208 = vpack.c.b16 %v1638, %v1633
    %v2209 = vpack.c.b16 %v1639, %v1634
    %v2210 = vpack.c.b16 %v1645, %v1640
    %v2211 = vpack.c.b16 %v1646, %v1641
    %v2212 = vpack.c.b16 %v1647, %v1642
    %v2213 = vpack.c.b16 %v1648, %v1643
    %v2214 = vpack.c.b16 %v1649, %v1644
    %v2215 = vpack.c.b16 %v1655, %v1650
    %v2216 = vpack.c.b16 %v1656, %v1651
    %v2217 = vpack.c.b16 %v1657, %v1652
    %v2218 = vpack.c.b16 %v1658, %v1653
    %v2219 = vpack.c.b16 %v1659, %v1654
    %v2220 = vpack.c.b16 %v1665, %v1660
    %v2221 = vpack.c.b16 %v1666, %v1661
    %v2222 = vpack.c.b16 %v1667, %v1662
    %v2223 = vpack.c.b16 %v1668, %v1663
    %v2224 = vpack.c.b16 %v1669, %v1664
    %v2225 = vpack.c.b16 %v1675, %v1670
    %v2226 = vpack.c.b16 %v1676, %v1671
    %v2227 = vpack.c.b16 %v1677, %v1672
    %v2228 = vpack.c.b16 %v1678, %v1673
    %v2229 = vpack.c.b16 %v1679, %v1674
    %v2230 = vpack.c.b16 %v1685, %v1680
    %v2231 = vpack.c.b16 %v1686, %v1681
    %v2232 = vpack.c.b16 %v1687, %v1682
    %v2233 = vpack.c.b16 %v1688, %v1683
    %v2234 = vpack.c.b16 %v1689, %v1684
    %v2235 = vpack.c.b16 %v1695, %v1690
    %v2236 = vpack.c.b16 %v1696, %v1691
    %v2237 = vpack.c.b16 %v1697, %v1692
    %v2238 = vpack.c.b16 %v1698, %v1693
    %v2239 = vpack.c.b16 %v1699, %v1694
    %v2240 = vpack.c.b16 %v1705, %v1700
    %v2241 = vpack.c.b16 %v1706, %v1701
    %v2242 = vpack.c.b16 %v1707, %v1702
    %v2243 = vpack.c.b16 %v1708, %v1703
    %v2244 = vpack.c.b16 %v1709, %v1704
    %v2245 = vpack.c.b16 %v1715, %v1710
    %v2246 = vpack.c.b16 %v1716, %v1711
    %v2247 = vpack.c.b16 %v1717, %v1712
    %v2248 = vpack.c.b16 %v1718, %v1713
    %v2249 = vpack.c.b16 %v1719, %v1714
    %v2250 = vpack.c.b16 %v1725, %v1720
    %v2251 = vpack.c.b16 %v1726, %v1721
    %v2252 = vpack.c.b16 %v1727, %v1722
    %v2253 = vpack.c.b16 %v1728, %v1723
    %v2254 = vpack.c.b16 %v1729, %v1724
    %v2255 = vpack.c.b16 %v1735, %v1730
    %v2256 = vpack.c.b16 %v1736, %v1731
    %v2257 = vpack.c.b16 %v1737, %v1732
    %v2258 = vpack.c.b16 %v1738, %v1733
    %v2259 = vpack.c.b16 %v1739, %v1734
    %v2260 = vpack.c.b16 %v1745, %v1740
    %v2261 = vpack.c.b16 %v1746, %v1741
    %v2262 = vpack.c.b16 %v1747, %v1742
    %v2263 = vpack.c.b16 %v1748, %v1743
    %v2264 = vpack.c.b16 %v1749, %v1744
    %v2265 = vpack.c.b16 %v1755, %v1750
    %v2266 = vpack.c.b16 %v1756, %v1751
    %v2267 = vpack.c.b16 %v1757, %v1752
    %v2268 = vpack.c.b16 %v1758, %v1753
    %v2269 = vpack.c.b16 %v1759, %v1754
    %v2270 = vpack.c.b16 %v1765, %v1760
    %v2271 = vpack.c.b16 %v1766, %v1761
    %v2272 = vpack.c.b16 %v1767, %v1762
    %v2273 = vpack.c.b16 %v1768, %v1763
    %v2274 = vpack.c.b16 %v1769, %v1764
    %v2275 = vpack.c.b16 %v1775, %v1770
    %v2276 = vpack.c.b16 %v1776, %v1771
    %v2277 = vpack.c.b16 %v1777, %v1772
    %v2278 = vpack.c.b16 %v1778, %v1773
    %v2279 = vpack.c.b16 %v1779, %v1774
    %v2280 = vpack.c.b16 %v1785, %v1780
    %v2281 = vpack.c.b16 %v1786, %v1781
    %v2282 = vpack.c.b16 %v1787, %v1782
    %v2283 = vpack.c.b16 %v1788, %v1783
    %v2284 = vpack.c.b16 %v1789, %v1784
    %v2285 = vpack.c.b16 %v1795, %v1790
    %v2286 = vpack.c.b16 %v1796, %v1791
    %v2287 = vpack.c.b16 %v1797, %v1792
    %v2288 = vpack.c.b16 %v1798, %v1793
    %v2289 = vpack.c.b16 %v1799, %v1794
    %v2290 = vpack.c.b16 %v1805, %v1800
    %v2291 = vpack.c.b16 %v1806, %v1801
    %v2292 = vpack.c.b16 %v1807, %v1802
    %v2293 = vpack.c.b16 %v1808, %v1803
    %v2294 = vpack.c.b16 %v1809, %v1804
    %v2295 = vpack.c.b16 %v1815, %v1810
    %v2296 = vpack.c.b16 %v1816, %v1811
    %v2297 = vpack.c.b16 %v1817, %v1812
    %v2298 = vpack.c.b16 %v1818, %v1813
    %v2299 = vpack.c.b16 %v1819, %v1814
    %v2300 = vpack.c.b16 %v1825, %v1820
    %v2301 = vpack.c.b16 %v1826, %v1821
    %v2302 = vpack.c.b16 %v1827, %v1822
    %v2303 = vpack.c.b16 %v1828, %v1823
    %v2304 = vpack.c.b16 %v1829, %v1824
    %v2305 = vpack.c.b16 %v1835, %v1830
    %v2306 = vpack.c.b16 %v1836, %v1831
    %v2307 = vpack.c.b16 %v1837, %v1832
    %v2308 = vpack.c.b16 %v1838, %v1833
    %v2309 = vpack.c.b16 %v1839, %v1834
    %v2310 = vpack.c.b16 %v1845, %v1840
    %v2311 = vpack.c.b16 %v1846, %v1841
    %v2312 = vpack.c.b16 %v1847, %v1842
    %v2313 = vpack.c.b16 %v1848, %v1843
    %v2314 = vpack.c.b16 %v1849, %v1844
    %v2315 = vpack.c.b16 %v1855, %v1850
    %v2316 = vpack.c.b16 %v1856, %v1851
    %v2317 = vpack.c.b16 %v1857, %v1852
    %v2318 = vpack.c.b16 %v1858, %v1853
    %v2319 = vpack.c.b16 %v1859, %v1854
    %v2320 = vpack.c.b16 %v1865, %v1860
    %v2321 = vpack.c.b16 %v1866, %v1861
    %v2322 = vpack.c.b16 %v1867, %v1862
    %v2323 = vpack.c.b16 %v1868, %v1863
    %v2324 = vpack.c.b16 %v1869, %v1864
    %v2325 = vpack.c.b16 %v1875, %v1870
    %v2326 = vpack.c.b16 %v1876, %v1871
    %v2327 = vpack.c.b16 %v1877, %v1872
    %v2328 = vpack.c.b16 %v1878, %v1873
    %v2329 = vpack.c.b16 %v1879, %v1874
    %v2330 = vpack.c.b16 %v1885, %v1880
    %v2331 = vpack.c.b16 %v1886, %v1881
    %v2332 = vpack.c.b16 %v1887, %v1882
    %v2333 = vpack.c.b16 %v1888, %v1883
    %v2334 = vpack.c.b16 %v1889, %v1884
    %v2335 = vpack.c.b16 %v1895, %v1890
    %v2336 = vpack.c.b16 %v1896, %v1891
    %v2337 = vpack.c.b16 %v1897, %v1892
    %v2338 = vpack.c.b16 %v1898, %v1893
    %v2339 = vpack.c.b16 %v1899, %v1894
    %v2340 = vpack.c.b16 %v1905, %v1900
    %v2341 = vpack.c.b16 %v1906, %v1901
    %v2342 = vpack.c.b16 %v1907, %v1902
    %v2343 = vpack.c.b16 %v1908, %v1903
    %v2344 = vpack.c.b16 %v1909, %v1904
    %v2345 = vpack.c.b16 %v1915, %v1910
    %v2346 = vpack.c.b16 %v1916, %v1911
    %v2347 = vpack.c.b16 %v1917, %v1912
    %v2348 = vpack.c.b16 %v1918, %v1913
    %v2349 = vpack.c.b16 %v1919, %v1914
    %v2350 = vpack.c.b16 %v1925, %v1920
    %v2351 = vpack.c.b16 %v1926, %v1921
    %v2352 = vpack.c.b16 %v1927, %v1922
    %v2353 = vpack.c.b16 %v1928, %v1923
    %v2354 = vpack.c.b16 %v1929, %v1924
    %v2355 = vpack.c.b16 %v1935, %v1930
    %v2356 = vpack.c.b16 %v1936, %v1931
    %v2357 = vpack.c.b16 %v1937, %v1932
    %v2358 = vpack.c.b16 %v1938, %v1933
    %v2359 = vpack.c.b16 %v1939, %v1934
    %v2360 = vpack.c.b16 %v1945, %v1940
    %v2361 = vpack.c.b16 %v1946, %v1941
    %v2362 = vpack.c.b16 %v1947, %v1942
    %v2363 = vpack.c.b16 %v1948, %v1943
    %v2364 = vpack.c.b16 %v1949, %v1944
    %v2365 = vpack.c.b16 %v1955, %v1950
    %v2366 = vpack.c.b16 %v1956, %v1951
    %v2367 = vpack.c.b16 %v1957, %v1952
    %v2368 = vpack.c.b16 %v1958, %v1953
    %v2369 = vpack.c.b16 %v1959, %v1954
    %v2370 = vpack.c.b16 %v1965, %v1960
    %v2371 = vpack.c.b16 %v1966, %v1961
    %v2372 = vpack.c.b16 %v1967, %v1962
    %v2373 = vpack.c.b16 %v1968, %v1963
    %v2374 = vpack.c.b16 %v1969, %v1964
    %v2375 = vpack.c.b16 %v1975, %v1970
    %v2376 = vpack.c.b16 %v1976, %v1971
    %v2377 = vpack.c.b16 %v1977, %v1972
    %v2378 = vpack.c.b16 %v1978, %v1973
    %v2379 = vpack.c.b16 %v1979, %v1974
    %v2380 = vpack.c.b16 %v1985, %v1980
    %v2381 = vpack.c.b16 %v1986, %v1981
    %v2382 = vpack.c.b16 %v1987, %v1982
    %v2383 = vpack.c.b16 %v1988, %v1983
    %v2384 = vpack.c.b16 %v1989, %v1984
    %v2385 = vpack.c.b16 %v1995, %v1990
    %v2386 = vpack.c.b16 %v1996, %v1991
    %v2387 = vpack.c.b16 %v1997, %v1992
    %v2388 = vpack.c.b16 %v1998, %v1993
    %v2389 = vpack.c.b16 %v1999, %v1994
    %vm2780 = vcmask 785408
    %v2782 = vsel %vm2780, %v247, 0
    %v2785 = vsel %vm2780, %v250, 0
    %2787 = vmatpush.bf16.msra.mxu0 %v2035
    %2788 = vmatpush.bf16.msra.mxu0 %v2030
    %2789 = vmatpush.bf16.msra.mxu0 %v2025
    %2790 = vmatpush.bf16.msra.mxu0 %v2020
    %2791 = vmatpush.bf16.msra.mxu0 %v2015
    %2792 = vmatpush.bf16.msra.mxu0 %v2010
    %2793 = vmatpush.bf16.msra.mxu0 %v2005
    %2794 = vmatpush.bf16.msra.mxu0 %v2000
    %2795 = vmatmul.bf16.gmra.mxu0 %v103
    %v2796 = vpop.f32.mrf.mxu0
    %v2797 = vadd.f32 %v742, %v2796
    %v2798 = vpop.f32.mrf.mxu0
    %v2799 = vadd.f32 %v742, %v2798
    %2800 = vmatmul.bf16.gmra.mxu0 %v107
    %v2801 = vpop.f32.mrf.mxu0
    %v2802 = vadd.f32 %v742, %v2801
    %v2803 = vpop.f32.mrf.mxu0
    %2804 = vdwg.mxu0
    %2805 = vmatpush.bf16.msra.mxu0 %v2075
    %2806 = vmatpush.bf16.msra.mxu0 %v2070
    %2807 = vmatpush.bf16.msra.mxu0 %v2065
    %2808 = vmatpush.bf16.msra.mxu0 %v2060
    %2809 = vmatpush.bf16.msra.mxu0 %v2055
    %2810 = vmatpush.bf16.msra.mxu0 %v2050
    %2811 = vmatpush.bf16.msra.mxu0 %v2045
    %2812 = vmatpush.bf16.msra.mxu0 %v2040
    %2813 = vmatmul.bf16.gmra.mxu0 %v104
    %v2814 = vpop.f32.mrf.mxu0
    %v2815 = vadd.f32 %v2797, %v2814
    %v2816 = vpop.f32.mrf.mxu0
    %v2817 = vadd.f32 %v2799, %v2816
    %2818 = vmatmul.bf16.gmra.mxu0 %v108
    %v2819 = vpop.f32.mrf.mxu0
    %v2820 = vadd.f32 %v2802, %v2819
    %v2821 = vpop.f32.mrf.mxu0
    %2822 = vdwg.mxu0
    %2823 = vmatpush.bf16.msra.mxu0 %v2115
    %2824 = vmatpush.bf16.msra.mxu0 %v2110
    %2825 = vmatpush.bf16.msra.mxu0 %v2105
    %2826 = vmatpush.bf16.msra.mxu0 %v2100
    %2827 = vmatpush.bf16.msra.mxu0 %v2095
    %2828 = vmatpush.bf16.msra.mxu0 %v2090
    %2829 = vmatpush.bf16.msra.mxu0 %v2085
    %2830 = vmatpush.bf16.msra.mxu0 %v2080
    %2831 = vmatmul.bf16.gmra.mxu0 %v105
    %v2832 = vpop.f32.mrf.mxu0
    %v2833 = vadd.f32 %v2815, %v2832
    %v2834 = vpop.f32.mrf.mxu0
    %v2835 = vadd.f32 %v2817, %v2834
    %2836 = vmatmul.bf16.gmra.mxu0 %v109
    %v2837 = vpop.f32.mrf.mxu0
    %v2838 = vadd.f32 %v2820, %v2837
    %v2839 = vpop.f32.mrf.mxu0
    %2840 = vdwg.mxu0
    %2841 = vmatpush.bf16.msra.mxu0 %v2155
    %2842 = vmatpush.bf16.msra.mxu0 %v2150
    %2843 = vmatpush.bf16.msra.mxu0 %v2145
    %2844 = vmatpush.bf16.msra.mxu0 %v2140
    %2845 = vmatpush.bf16.msra.mxu0 %v2135
    %2846 = vmatpush.bf16.msra.mxu0 %v2130
    %2847 = vmatpush.bf16.msra.mxu0 %v2125
    %2848 = vmatpush.bf16.msra.mxu0 %v2120
    %2849 = vmatmul.bf16.gmra.mxu0 %v257
    %v2850 = vpop.f32.mrf.mxu0
    %v2851 = vadd.f32 %v2833, %v2850
    %v2852 = vpop.f32.mrf.mxu0
    %v2853 = vadd.f32 %v2835, %v2852
    %2854 = vmatmul.bf16.gmra.mxu0 %v261
    %v2855 = vpop.f32.mrf.mxu0
    %v2856 = vadd.f32 %v2838, %v2855
    %v2857 = vpop.f32.mrf.mxu0
    %2858 = vdwg.mxu0
    %2859 = vmatpush.bf16.msra.mxu0 %v2195
    %2860 = vmatpush.bf16.msra.mxu0 %v2190
    %2861 = vmatpush.bf16.msra.mxu0 %v2185
    %2862 = vmatpush.bf16.msra.mxu0 %v2180
    %2863 = vmatpush.bf16.msra.mxu0 %v2175
    %2864 = vmatpush.bf16.msra.mxu0 %v2170
    %2865 = vmatpush.bf16.msra.mxu0 %v2165
    %2866 = vmatpush.bf16.msra.mxu0 %v2160
    %2867 = vmatmul.bf16.gmra.mxu0 %v205
    %v2868 = vpop.f32.mrf.mxu0
    %v2869 = vadd.f32 %v2851, %v2868
    %v2870 = vpop.f32.mrf.mxu0
    %v2871 = vadd.f32 %v2853, %v2870
    %2872 = vmatmul.bf16.gmra.mxu0 %v208
    %v2873 = vpop.f32.mrf.mxu0
    %v2874 = vadd.f32 %v2856, %v2873
    %v2875 = vpop.f32.mrf.mxu0
    %2876 = vdwg.mxu0
    %2877 = vmatpush.bf16.msra.mxu0 %v2235
    %2878 = vmatpush.bf16.msra.mxu0 %v2230
    %2879 = vmatpush.bf16.msra.mxu0 %v2225
    %2880 = vmatpush.bf16.msra.mxu0 %v2220
    %2881 = vmatpush.bf16.msra.mxu0 %v2215
    %2882 = vmatpush.bf16.msra.mxu0 %v2210
    %2883 = vmatpush.bf16.msra.mxu0 %v2205
    %2884 = vmatpush.bf16.msra.mxu0 %v2200
    %2885 = vmatmul.bf16.gmra.mxu0 %v206
    %v2886 = vpop.f32.mrf.mxu0
    %v2887 = vadd.f32 %v2869, %v2886
    %v2888 = vpop.f32.mrf.mxu0
    %v2889 = vadd.f32 %v2871, %v2888
    %2890 = vmatmul.bf16.gmra.mxu0 %v209
    %v2891 = vpop.f32.mrf.mxu0
    %v2892 = vadd.f32 %v2874, %v2891
    %v2893 = vpop.f32.mrf.mxu0
    %2894 = vdwg.mxu0
    %2895 = vmatpush.bf16.msra.mxu0 %v2275
    %2896 = vmatpush.bf16.msra.mxu0 %v2270
    %2897 = vmatpush.bf16.msra.mxu0 %v2265
    %2898 = vmatpush.bf16.msra.mxu0 %v2260
    %2899 = vmatpush.bf16.msra.mxu0 %v2255
    %2900 = vmatpush.bf16.msra.mxu0 %v2250
    %2901 = vmatpush.bf16.msra.mxu0 %v2245
    %2902 = vmatpush.bf16.msra.mxu0 %v2240
    %2903 = vmatmul.bf16.gmra.mxu0 %v266
    %v2904 = vpop.f32.mrf.mxu0
    %v2905 = vadd.f32 %v2887, %v2904
    %v2906 = vpop.f32.mrf.mxu0
    %v2907 = vadd.f32 %v2889, %v2906
    %2908 = vmatmul.bf16.gmra.mxu0 %v270
    %v2909 = vpop.f32.mrf.mxu0
    %v2910 = vadd.f32 %v2892, %v2909
    %v2911 = vpop.f32.mrf.mxu0
    %2912 = vdwg.mxu0
    %2913 = vmatpush.bf16.msra.mxu0 %v2315
    %2914 = vmatpush.bf16.msra.mxu0 %v2310
    %2915 = vmatpush.bf16.msra.mxu0 %v2305
    %2916 = vmatpush.bf16.msra.mxu0 %v2300
    %2917 = vmatpush.bf16.msra.mxu0 %v2295
    %2918 = vmatpush.bf16.msra.mxu0 %v2290
    %2919 = vmatpush.bf16.msra.mxu0 %v2285
    %2920 = vmatpush.bf16.msra.mxu0 %v2280
    %2921 = vmatmul.bf16.gmra.mxu0 %v245
    %v2922 = vpop.f32.mrf.mxu0
    %v2923 = vadd.f32 %v2905, %v2922
    %v2924 = vpop.f32.mrf.mxu0
    %v2925 = vadd.f32 %v2907, %v2924
    %2926 = vmatmul.bf16.gmra.mxu0 %v248
    %v2927 = vpop.f32.mrf.mxu0
    %v2928 = vadd.f32 %v2910, %v2927
    %v2929 = vpop.f32.mrf.mxu0
    %2930 = vdwg.mxu0
    %2931 = vmatpush.bf16.msra.mxu0 %v2355
    %2932 = vmatpush.bf16.msra.mxu0 %v2350
    %2933 = vmatpush.bf16.msra.mxu0 %v2345
    %2934 = vmatpush.bf16.msra.mxu0 %v2340
    %2935 = vmatpush.bf16.msra.mxu0 %v2335
    %2936 = vmatpush.bf16.msra.mxu0 %v2330
    %2937 = vmatpush.bf16.msra.mxu0 %v2325
    %2938 = vmatpush.bf16.msra.mxu0 %v2320
    %2939 = vmatmul.bf16.gmra.mxu0 %v246
    %v2940 = vpop.f32.mrf.mxu0
    %v2941 = vadd.f32 %v2923, %v2940
    %v2942 = vpop.f32.mrf.mxu0
    %v2943 = vadd.f32 %v2925, %v2942
    %2944 = vmatmul.bf16.gmra.mxu0 %v249
    %v2945 = vpop.f32.mrf.mxu0
    %v2946 = vadd.f32 %v2928, %v2945
    %v2947 = vpop.f32.mrf.mxu0
    %2948 = vdwg.mxu0
    %2949 = vmatpush.bf16.msra.mxu0 0
    %2950 = vmatpush.bf16.msra.mxu0 0
    %2951 = vmatpush.bf16.msra.mxu0 %v2385
    %2952 = vmatpush.bf16.msra.mxu0 %v2380
    %2953 = vmatpush.bf16.msra.mxu0 %v2375
    %2954 = vmatpush.bf16.msra.mxu0 %v2370
    %2955 = vmatpush.bf16.msra.mxu0 %v2365
    %2956 = vmatpush.bf16.msra.mxu0 %v2360
    %2957 = vmatmul.bf16.gmra.mxu0 %v2782
    %v2958 = vpop.f32.mrf.mxu0
    %v2959 = vadd.f32 %v2941, %v2958
    %v2960 = vpop.f32.mrf.mxu0
    %v2961 = vadd.f32 %v2943, %v2960
    %2962 = vmatmul.bf16.gmra.mxu0 %v2785
    %v2963 = vpop.f32.mrf.mxu0
    %v2964 = vadd.f32 %v2946, %v2963
    %v2965 = vpop.f32.mrf.mxu0
    %2966 = vdwg.mxu0
    %2967 = vmatpush.bf16.msra.mxu0 %v2036
    %2968 = vmatpush.bf16.msra.mxu0 %v2031
    %2969 = vmatpush.bf16.msra.mxu0 %v2026
    %2970 = vmatpush.bf16.msra.mxu0 %v2021
    %2971 = vmatpush.bf16.msra.mxu0 %v2016
    %2972 = vmatpush.bf16.msra.mxu0 %v2011
    %2973 = vmatpush.bf16.msra.mxu0 %v2006
    %2974 = vmatpush.bf16.msra.mxu0 %v2001
    %2975 = vmatmul.bf16.gmra.mxu0 %v103
    %v2976 = vpop.f32.mrf.mxu0
    %v2977 = vadd.f32 %v743, %v2976
    %v2978 = vpop.f32.mrf.mxu0
    %v2979 = vadd.f32 %v743, %v2978
    %2980 = vmatmul.bf16.gmra.mxu0 %v107
    %v2981 = vpop.f32.mrf.mxu0
    %v2982 = vadd.f32 %v743, %v2981
    %v2983 = vpop.f32.mrf.mxu0
    %2984 = vdwg.mxu0
    %2985 = vmatpush.bf16.msra.mxu0 %v2076
    %2986 = vmatpush.bf16.msra.mxu0 %v2071
    %2987 = vmatpush.bf16.msra.mxu0 %v2066
    %2988 = vmatpush.bf16.msra.mxu0 %v2061
    %2989 = vmatpush.bf16.msra.mxu0 %v2056
    %2990 = vmatpush.bf16.msra.mxu0 %v2051
    %2991 = vmatpush.bf16.msra.mxu0 %v2046
    %2992 = vmatpush.bf16.msra.mxu0 %v2041
    %2993 = vmatmul.bf16.gmra.mxu0 %v104
    %v2994 = vpop.f32.mrf.mxu0
    %v2995 = vadd.f32 %v2977, %v2994
    %v2996 = vpop.f32.mrf.mxu0
    %v2997 = vadd.f32 %v2979, %v2996
    %2998 = vmatmul.bf16.gmra.mxu0 %v108
    %v2999 = vpop.f32.mrf.mxu0
    %v3000 = vadd.f32 %v2982, %v2999
    %v3001 = vpop.f32.mrf.mxu0
    %3002 = vdwg.mxu0
    %3003 = vmatpush.bf16.msra.mxu0 %v2116
    %3004 = vmatpush.bf16.msra.mxu0 %v2111
    %3005 = vmatpush.bf16.msra.mxu0 %v2106
    %3006 = vmatpush.bf16.msra.mxu0 %v2101
    %3007 = vmatpush.bf16.msra.mxu0 %v2096
    %3008 = vmatpush.bf16.msra.mxu0 %v2091
    %3009 = vmatpush.bf16.msra.mxu0 %v2086
    %3010 = vmatpush.bf16.msra.mxu0 %v2081
    %3011 = vmatmul.bf16.gmra.mxu0 %v105
    %v3012 = vpop.f32.mrf.mxu0
    %v3013 = vadd.f32 %v2995, %v3012
    %v3014 = vpop.f32.mrf.mxu0
    %v3015 = vadd.f32 %v2997, %v3014
    %3016 = vmatmul.bf16.gmra.mxu0 %v109
    %v3017 = vpop.f32.mrf.mxu0
    %v3018 = vadd.f32 %v3000, %v3017
    %v3019 = vpop.f32.mrf.mxu0
    %3020 = vdwg.mxu0
    %3021 = vmatpush.bf16.msra.mxu0 %v2156
    %3022 = vmatpush.bf16.msra.mxu0 %v2151
    %3023 = vmatpush.bf16.msra.mxu0 %v2146
    %3024 = vmatpush.bf16.msra.mxu0 %v2141
    %3025 = vmatpush.bf16.msra.mxu0 %v2136
    %3026 = vmatpush.bf16.msra.mxu0 %v2131
    %3027 = vmatpush.bf16.msra.mxu0 %v2126
    %3028 = vmatpush.bf16.msra.mxu0 %v2121
    %3029 = vmatmul.bf16.gmra.mxu0 %v257
    %v3030 = vpop.f32.mrf.mxu0
    %v3031 = vadd.f32 %v3013, %v3030
    %v3032 = vpop.f32.mrf.mxu0
    %v3033 = vadd.f32 %v3015, %v3032
    %3034 = vmatmul.bf16.gmra.mxu0 %v261
    %v3035 = vpop.f32.mrf.mxu0
    %v3036 = vadd.f32 %v3018, %v3035
    %v3037 = vpop.f32.mrf.mxu0
    %3038 = vdwg.mxu0
    %3039 = vmatpush.bf16.msra.mxu0 %v2196
    %3040 = vmatpush.bf16.msra.mxu0 %v2191
    %3041 = vmatpush.bf16.msra.mxu0 %v2186
    %3042 = vmatpush.bf16.msra.mxu0 %v2181
    %3043 = vmatpush.bf16.msra.mxu0 %v2176
    %3044 = vmatpush.bf16.msra.mxu0 %v2171
    %3045 = vmatpush.bf16.msra.mxu0 %v2166
    %3046 = vmatpush.bf16.msra.mxu0 %v2161
    %3047 = vmatmul.bf16.gmra.mxu0 %v205
    %v3048 = vpop.f32.mrf.mxu0
    %v3049 = vadd.f32 %v3031, %v3048
    %v3050 = vpop.f32.mrf.mxu0
    %v3051 = vadd.f32 %v3033, %v3050
    %3052 = vmatmul.bf16.gmra.mxu0 %v208
    %v3053 = vpop.f32.mrf.mxu0
    %v3054 = vadd.f32 %v3036, %v3053
    %v3055 = vpop.f32.mrf.mxu0
    %3056 = vdwg.mxu0
    %3057 = vmatpush.bf16.msra.mxu0 %v2236
    %3058 = vmatpush.bf16.msra.mxu0 %v2231
    %3059 = vmatpush.bf16.msra.mxu0 %v2226
    %3060 = vmatpush.bf16.msra.mxu0 %v2221
    %3061 = vmatpush.bf16.msra.mxu0 %v2216
    %3062 = vmatpush.bf16.msra.mxu0 %v2211
    %3063 = vmatpush.bf16.msra.mxu0 %v2206
    %3064 = vmatpush.bf16.msra.mxu0 %v2201
    %3065 = vmatmul.bf16.gmra.mxu0 %v206
    %v3066 = vpop.f32.mrf.mxu0
    %v3067 = vadd.f32 %v3049, %v3066
    %v3068 = vpop.f32.mrf.mxu0
    %v3069 = vadd.f32 %v3051, %v3068
    %3070 = vmatmul.bf16.gmra.mxu0 %v209
    %v3071 = vpop.f32.mrf.mxu0
    %v3072 = vadd.f32 %v3054, %v3071
    %v3073 = vpop.f32.mrf.mxu0
    %3074 = vdwg.mxu0
    %3075 = vmatpush.bf16.msra.mxu0 %v2276
    %3076 = vmatpush.bf16.msra.mxu0 %v2271
    %3077 = vmatpush.bf16.msra.mxu0 %v2266
    %3078 = vmatpush.bf16.msra.mxu0 %v2261
    %3079 = vmatpush.bf16.msra.mxu0 %v2256
    %3080 = vmatpush.bf16.msra.mxu0 %v2251
    %3081 = vmatpush.bf16.msra.mxu0 %v2246
    %3082 = vmatpush.bf16.msra.mxu0 %v2241
    %3083 = vmatmul.bf16.gmra.mxu0 %v266
    %v3084 = vpop.f32.mrf.mxu0
    %v3085 = vadd.f32 %v3067, %v3084
    %v3086 = vpop.f32.mrf.mxu0
    %v3087 = vadd.f32 %v3069, %v3086
    %3088 = vmatmul.bf16.gmra.mxu0 %v270
    %v3089 = vpop.f32.mrf.mxu0
    %v3090 = vadd.f32 %v3072, %v3089
    %v3091 = vpop.f32.mrf.mxu0
    %3092 = vdwg.mxu0
    %3093 = vmatpush.bf16.msra.mxu0 %v2316
    %3094 = vmatpush.bf16.msra.mxu0 %v2311
    %3095 = vmatpush.bf16.msra.mxu0 %v2306
    %3096 = vmatpush.bf16.msra.mxu0 %v2301
    %3097 = vmatpush.bf16.msra.mxu0 %v2296
    %3098 = vmatpush.bf16.msra.mxu0 %v2291
    %3099 = vmatpush.bf16.msra.mxu0 %v2286
    %3100 = vmatpush.bf16.msra.mxu0 %v2281
    %3101 = vmatmul.bf16.gmra.mxu0 %v245
    %v3102 = vpop.f32.mrf.mxu0
    %v3103 = vadd.f32 %v3085, %v3102
    %v3104 = vpop.f32.mrf.mxu0
    %v3105 = vadd.f32 %v3087, %v3104
    %3106 = vmatmul.bf16.gmra.mxu0 %v248
    %v3107 = vpop.f32.mrf.mxu0
    %v3108 = vadd.f32 %v3090, %v3107
    %v3109 = vpop.f32.mrf.mxu0
    %3110 = vdwg.mxu0
    %3111 = vmatpush.bf16.msra.mxu0 %v2356
    %3112 = vmatpush.bf16.msra.mxu0 %v2351
    %3113 = vmatpush.bf16.msra.mxu0 %v2346
    %3114 = vmatpush.bf16.msra.mxu0 %v2341
    %3115 = vmatpush.bf16.msra.mxu0 %v2336
    %3116 = vmatpush.bf16.msra.mxu0 %v2331
    %3117 = vmatpush.bf16.msra.mxu0 %v2326
    %3118 = vmatpush.bf16.msra.mxu0 %v2321
    %3119 = vmatmul.bf16.gmra.mxu0 %v246
    %v3120 = vpop.f32.mrf.mxu0
    %v3121 = vadd.f32 %v3103, %v3120
    %v3122 = vpop.f32.mrf.mxu0
    %v3123 = vadd.f32 %v3105, %v3122
    %3124 = vmatmul.bf16.gmra.mxu0 %v249
    %v3125 = vpop.f32.mrf.mxu0
    %v3126 = vadd.f32 %v3108, %v3125
    %v3127 = vpop.f32.mrf.mxu0
    %3128 = vdwg.mxu0
    %3129 = vmatpush.bf16.msra.mxu0 0
    %3130 = vmatpush.bf16.msra.mxu0 0
    %3131 = vmatpush.bf16.msra.mxu0 %v2386
    %3132 = vmatpush.bf16.msra.mxu0 %v2381
    %3133 = vmatpush.bf16.msra.mxu0 %v2376
    %3134 = vmatpush.bf16.msra.mxu0 %v2371
    %3135 = vmatpush.bf16.msra.mxu0 %v2366
    %3136 = vmatpush.bf16.msra.mxu0 %v2361
    %3137 = vmatmul.bf16.gmra.mxu0 %v2782
    %v3138 = vpop.f32.mrf.mxu0
    %v3139 = vadd.f32 %v3121, %v3138
    %v3140 = vpop.f32.mrf.mxu0
    %v3141 = vadd.f32 %v3123, %v3140
    %3142 = vmatmul.bf16.gmra.mxu0 %v2785
    %v3143 = vpop.f32.mrf.mxu0
    %v3144 = vadd.f32 %v3126, %v3143
    %v3145 = vpop.f32.mrf.mxu0
    %3146 = vdwg.mxu0
    %3147 = vmatpush.bf16.msra.mxu0 %v2037
    %3148 = vmatpush.bf16.msra.mxu0 %v2032
    %3149 = vmatpush.bf16.msra.mxu0 %v2027
    %3150 = vmatpush.bf16.msra.mxu0 %v2022
    %3151 = vmatpush.bf16.msra.mxu0 %v2017
    %3152 = vmatpush.bf16.msra.mxu0 %v2012
    %3153 = vmatpush.bf16.msra.mxu0 %v2007
    %3154 = vmatpush.bf16.msra.mxu0 %v2002
    %3155 = vmatmul.bf16.gmra.mxu0 %v103
    %v3156 = vpop.f32.mrf.mxu0
    %v3157 = vadd.f32 %v744, %v3156
    %v3158 = vpop.f32.mrf.mxu0
    %v3159 = vadd.f32 %v744, %v3158
    %3160 = vmatmul.bf16.gmra.mxu0 %v107
    %v3161 = vpop.f32.mrf.mxu0
    %v3162 = vadd.f32 %v744, %v3161
    %v3163 = vpop.f32.mrf.mxu0
    %3164 = vdwg.mxu0
    %3165 = vmatpush.bf16.msra.mxu0 %v2077
    %3166 = vmatpush.bf16.msra.mxu0 %v2072
    %3167 = vmatpush.bf16.msra.mxu0 %v2067
    %3168 = vmatpush.bf16.msra.mxu0 %v2062
    %3169 = vmatpush.bf16.msra.mxu0 %v2057
    %3170 = vmatpush.bf16.msra.mxu0 %v2052
    %3171 = vmatpush.bf16.msra.mxu0 %v2047
    %3172 = vmatpush.bf16.msra.mxu0 %v2042
    %3173 = vmatmul.bf16.gmra.mxu0 %v104
    %v3174 = vpop.f32.mrf.mxu0
    %v3175 = vadd.f32 %v3157, %v3174
    %v3176 = vpop.f32.mrf.mxu0
    %v3177 = vadd.f32 %v3159, %v3176
    %3178 = vmatmul.bf16.gmra.mxu0 %v108
    %v3179 = vpop.f32.mrf.mxu0
    %v3180 = vadd.f32 %v3162, %v3179
    %v3181 = vpop.f32.mrf.mxu0
    %3182 = vdwg.mxu0
    %3183 = vmatpush.bf16.msra.mxu0 %v2117
    %3184 = vmatpush.bf16.msra.mxu0 %v2112
    %3185 = vmatpush.bf16.msra.mxu0 %v2107
    %3186 = vmatpush.bf16.msra.mxu0 %v2102
    %3187 = vmatpush.bf16.msra.mxu0 %v2097
    %3188 = vmatpush.bf16.msra.mxu0 %v2092
    %3189 = vmatpush.bf16.msra.mxu0 %v2087
    %3190 = vmatpush.bf16.msra.mxu0 %v2082
    %3191 = vmatmul.bf16.gmra.mxu0 %v105
    %v3192 = vpop.f32.mrf.mxu0
    %v3193 = vadd.f32 %v3175, %v3192
    %v3194 = vpop.f32.mrf.mxu0
    %v3195 = vadd.f32 %v3177, %v3194
    %3196 = vmatmul.bf16.gmra.mxu0 %v109
    %v3197 = vpop.f32.mrf.mxu0
    %v3198 = vadd.f32 %v3180, %v3197
    %v3199 = vpop.f32.mrf.mxu0
    %3200 = vdwg.mxu0
    %3201 = vmatpush.bf16.msra.mxu0 %v2157
    %3202 = vmatpush.bf16.msra.mxu0 %v2152
    %3203 = vmatpush.bf16.msra.mxu0 %v2147
    %3204 = vmatpush.bf16.msra.mxu0 %v2142
    %3205 = vmatpush.bf16.msra.mxu0 %v2137
    %3206 = vmatpush.bf16.msra.mxu0 %v2132
    %3207 = vmatpush.bf16.msra.mxu0 %v2127
    %3208 = vmatpush.bf16.msra.mxu0 %v2122
    %3209 = vmatmul.bf16.gmra.mxu0 %v257
    %v3210 = vpop.f32.mrf.mxu0
    %v3211 = vadd.f32 %v3193, %v3210
    %v3212 = vpop.f32.mrf.mxu0
    %v3213 = vadd.f32 %v3195, %v3212
    %3214 = vmatmul.bf16.gmra.mxu0 %v261
    %v3215 = vpop.f32.mrf.mxu0
    %v3216 = vadd.f32 %v3198, %v3215
    %v3217 = vpop.f32.mrf.mxu0
    %3218 = vdwg.mxu0
    %3219 = vmatpush.bf16.msra.mxu0 %v2197
    %3220 = vmatpush.bf16.msra.mxu0 %v2192
    %3221 = vmatpush.bf16.msra.mxu0 %v2187
    %3222 = vmatpush.bf16.msra.mxu0 %v2182
    %3223 = vmatpush.bf16.msra.mxu0 %v2177
    %3224 = vmatpush.bf16.msra.mxu0 %v2172
    %3225 = vmatpush.bf16.msra.mxu0 %v2167
    %3226 = vmatpush.bf16.msra.mxu0 %v2162
    %3227 = vmatmul.bf16.gmra.mxu0 %v205
    %v3228 = vpop.f32.mrf.mxu0
    %v3229 = vadd.f32 %v3211, %v3228
    %v3230 = vpop.f32.mrf.mxu0
    %v3231 = vadd.f32 %v3213, %v3230
    %3232 = vmatmul.bf16.gmra.mxu0 %v208
    %v3233 = vpop.f32.mrf.mxu0
    %v3234 = vadd.f32 %v3216, %v3233
    %v3235 = vpop.f32.mrf.mxu0
    %3236 = vdwg.mxu0
    %3237 = vmatpush.bf16.msra.mxu0 %v2237
    %3238 = vmatpush.bf16.msra.mxu0 %v2232
    %3239 = vmatpush.bf16.msra.mxu0 %v2227
    %3240 = vmatpush.bf16.msra.mxu0 %v2222
    %3241 = vmatpush.bf16.msra.mxu0 %v2217
    %3242 = vmatpush.bf16.msra.mxu0 %v2212
    %3243 = vmatpush.bf16.msra.mxu0 %v2207
    %3244 = vmatpush.bf16.msra.mxu0 %v2202
    %3245 = vmatmul.bf16.gmra.mxu0 %v206
    %v3246 = vpop.f32.mrf.mxu0
    %v3247 = vadd.f32 %v3229, %v3246
    %v3248 = vpop.f32.mrf.mxu0
    %v3249 = vadd.f32 %v3231, %v3248
    %3250 = vmatmul.bf16.gmra.mxu0 %v209
    %v3251 = vpop.f32.mrf.mxu0
    %v3252 = vadd.f32 %v3234, %v3251
    %v3253 = vpop.f32.mrf.mxu0
    %3254 = vdwg.mxu0
    %3255 = vmatpush.bf16.msra.mxu0 %v2277
    %3256 = vmatpush.bf16.msra.mxu0 %v2272
    %3257 = vmatpush.bf16.msra.mxu0 %v2267
    %3258 = vmatpush.bf16.msra.mxu0 %v2262
    %3259 = vmatpush.bf16.msra.mxu0 %v2257
    %3260 = vmatpush.bf16.msra.mxu0 %v2252
    %3261 = vmatpush.bf16.msra.mxu0 %v2247
    %3262 = vmatpush.bf16.msra.mxu0 %v2242
    %3263 = vmatmul.bf16.gmra.mxu0 %v266
    %v3264 = vpop.f32.mrf.mxu0
    %v3265 = vadd.f32 %v3247, %v3264
    %v3266 = vpop.f32.mrf.mxu0
    %v3267 = vadd.f32 %v3249, %v3266
    %3268 = vmatmul.bf16.gmra.mxu0 %v270
    %v3269 = vpop.f32.mrf.mxu0
    %v3270 = vadd.f32 %v3252, %v3269
    %v3271 = vpop.f32.mrf.mxu0
    %3272 = vdwg.mxu0
    %3273 = vmatpush.bf16.msra.mxu0 %v2317
    %3274 = vmatpush.bf16.msra.mxu0 %v2312
    %3275 = vmatpush.bf16.msra.mxu0 %v2307
    %3276 = vmatpush.bf16.msra.mxu0 %v2302
    %3277 = vmatpush.bf16.msra.mxu0 %v2297
    %3278 = vmatpush.bf16.msra.mxu0 %v2292
    %3279 = vmatpush.bf16.msra.mxu0 %v2287
    %3280 = vmatpush.bf16.msra.mxu0 %v2282
    %3281 = vmatmul.bf16.gmra.mxu0 %v245
    %v3282 = vpop.f32.mrf.mxu0
    %v3283 = vadd.f32 %v3265, %v3282
    %v3284 = vpop.f32.mrf.mxu0
    %v3285 = vadd.f32 %v3267, %v3284
    %3286 = vmatmul.bf16.gmra.mxu0 %v248
    %v3287 = vpop.f32.mrf.mxu0
    %v3288 = vadd.f32 %v3270, %v3287
    %v3289 = vpop.f32.mrf.mxu0
    %3290 = vdwg.mxu0
    %3291 = vmatpush.bf16.msra.mxu0 %v2357
    %3292 = vmatpush.bf16.msra.mxu0 %v2352
    %3293 = vmatpush.bf16.msra.mxu0 %v2347
    %3294 = vmatpush.bf16.msra.mxu0 %v2342
    %3295 = vmatpush.bf16.msra.mxu0 %v2337
    %3296 = vmatpush.bf16.msra.mxu0 %v2332
    %3297 = vmatpush.bf16.msra.mxu0 %v2327
    %3298 = vmatpush.bf16.msra.mxu0 %v2322
    %3299 = vmatmul.bf16.gmra.mxu0 %v246
    %v3300 = vpop.f32.mrf.mxu0
    %v3301 = vadd.f32 %v3283, %v3300
    %v3302 = vpop.f32.mrf.mxu0
    %v3303 = vadd.f32 %v3285, %v3302
    %3304 = vmatmul.bf16.gmra.mxu0 %v249
    %v3305 = vpop.f32.mrf.mxu0
    %v3306 = vadd.f32 %v3288, %v3305
    %v3307 = vpop.f32.mrf.mxu0
    %3308 = vdwg.mxu0
    %3309 = vmatpush.bf16.msra.mxu0 0
    %3310 = vmatpush.bf16.msra.mxu0 0
    %3311 = vmatpush.bf16.msra.mxu0 %v2387
    %3312 = vmatpush.bf16.msra.mxu0 %v2382
    %3313 = vmatpush.bf16.msra.mxu0 %v2377
    %3314 = vmatpush.bf16.msra.mxu0 %v2372
    %3315 = vmatpush.bf16.msra.mxu0 %v2367
    %3316 = vmatpush.bf16.msra.mxu0 %v2362
    %3317 = vmatmul.bf16.gmra.mxu0 %v2782
    %v3318 = vpop.f32.mrf.mxu0
    %v3319 = vadd.f32 %v3301, %v3318
    %v3320 = vpop.f32.mrf.mxu0
    %v3321 = vadd.f32 %v3303, %v3320
    %3322 = vmatmul.bf16.gmra.mxu0 %v2785
    %v3323 = vpop.f32.mrf.mxu0
    %v3324 = vadd.f32 %v3306, %v3323
    %v3325 = vpop.f32.mrf.mxu0
    %3326 = vdwg.mxu0
    %3327 = vmatpush.bf16.msra.mxu0 %v2038
    %3328 = vmatpush.bf16.msra.mxu0 %v2033
    %3329 = vmatpush.bf16.msra.mxu0 %v2028
    %3330 = vmatpush.bf16.msra.mxu0 %v2023
    %3331 = vmatpush.bf16.msra.mxu0 %v2018
    %3332 = vmatpush.bf16.msra.mxu0 %v2013
    %3333 = vmatpush.bf16.msra.mxu0 %v2008
    %3334 = vmatpush.bf16.msra.mxu0 %v2003
    %3335 = vmatmul.bf16.gmra.mxu0 %v103
    %v3336 = vpop.f32.mrf.mxu0
    %v3337 = vadd.f32 %v745, %v3336
    %v3338 = vpop.f32.mrf.mxu0
    %v3339 = vadd.f32 %v745, %v3338
    %3340 = vmatmul.bf16.gmra.mxu0 %v107
    %v3341 = vpop.f32.mrf.mxu0
    %v3342 = vadd.f32 %v745, %v3341
    %v3343 = vpop.f32.mrf.mxu0
    %3344 = vdwg.mxu0
    %3345 = vmatpush.bf16.msra.mxu0 %v2078
    %3346 = vmatpush.bf16.msra.mxu0 %v2073
    %3347 = vmatpush.bf16.msra.mxu0 %v2068
    %3348 = vmatpush.bf16.msra.mxu0 %v2063
    %3349 = vmatpush.bf16.msra.mxu0 %v2058
    %3350 = vmatpush.bf16.msra.mxu0 %v2053
    %3351 = vmatpush.bf16.msra.mxu0 %v2048
    %3352 = vmatpush.bf16.msra.mxu0 %v2043
    %3353 = vmatmul.bf16.gmra.mxu0 %v104
    %v3354 = vpop.f32.mrf.mxu0
    %v3355 = vadd.f32 %v3337, %v3354
    %v3356 = vpop.f32.mrf.mxu0
    %v3357 = vadd.f32 %v3339, %v3356
    %3358 = vmatmul.bf16.gmra.mxu0 %v108
    %v3359 = vpop.f32.mrf.mxu0
    %v3360 = vadd.f32 %v3342, %v3359
    %v3361 = vpop.f32.mrf.mxu0
    %3362 = vdwg.mxu0
    %3363 = vmatpush.bf16.msra.mxu0 %v2118
    %3364 = vmatpush.bf16.msra.mxu0 %v2113
    %3365 = vmatpush.bf16.msra.mxu0 %v2108
    %3366 = vmatpush.bf16.msra.mxu0 %v2103
    %3367 = vmatpush.bf16.msra.mxu0 %v2098
    %3368 = vmatpush.bf16.msra.mxu0 %v2093
    %3369 = vmatpush.bf16.msra.mxu0 %v2088
    %3370 = vmatpush.bf16.msra.mxu0 %v2083
    %3371 = vmatmul.bf16.gmra.mxu0 %v105
    %v3372 = vpop.f32.mrf.mxu0
    %v3373 = vadd.f32 %v3355, %v3372
    %v3374 = vpop.f32.mrf.mxu0
    %v3375 = vadd.f32 %v3357, %v3374
    %3376 = vmatmul.bf16.gmra.mxu0 %v109
    %v3377 = vpop.f32.mrf.mxu0
    %v3378 = vadd.f32 %v3360, %v3377
    %v3379 = vpop.f32.mrf.mxu0
    %3380 = vdwg.mxu0
    %3381 = vmatpush.bf16.msra.mxu0 %v2158
    %3382 = vmatpush.bf16.msra.mxu0 %v2153
    %3383 = vmatpush.bf16.msra.mxu0 %v2148
    %3384 = vmatpush.bf16.msra.mxu0 %v2143
    %3385 = vmatpush.bf16.msra.mxu0 %v2138
    %3386 = vmatpush.bf16.msra.mxu0 %v2133
    %3387 = vmatpush.bf16.msra.mxu0 %v2128
    %3388 = vmatpush.bf16.msra.mxu0 %v2123
    %3389 = vmatmul.bf16.gmra.mxu0 %v257
    %v3390 = vpop.f32.mrf.mxu0
    %v3391 = vadd.f32 %v3373, %v3390
    %v3392 = vpop.f32.mrf.mxu0
    %v3393 = vadd.f32 %v3375, %v3392
    %3394 = vmatmul.bf16.gmra.mxu0 %v261
    %v3395 = vpop.f32.mrf.mxu0
    %v3396 = vadd.f32 %v3378, %v3395
    %v3397 = vpop.f32.mrf.mxu0
    %3398 = vdwg.mxu0
    %3399 = vmatpush.bf16.msra.mxu0 %v2198
    %3400 = vmatpush.bf16.msra.mxu0 %v2193
    %3401 = vmatpush.bf16.msra.mxu0 %v2188
    %3402 = vmatpush.bf16.msra.mxu0 %v2183
    %3403 = vmatpush.bf16.msra.mxu0 %v2178
    %3404 = vmatpush.bf16.msra.mxu0 %v2173
    %3405 = vmatpush.bf16.msra.mxu0 %v2168
    %3406 = vmatpush.bf16.msra.mxu0 %v2163
    %3407 = vmatmul.bf16.gmra.mxu0 %v205
    %v3408 = vpop.f32.mrf.mxu0
    %v3409 = vadd.f32 %v3391, %v3408
    %v3410 = vpop.f32.mrf.mxu0
    %v3411 = vadd.f32 %v3393, %v3410
    %3412 = vmatmul.bf16.gmra.mxu0 %v208
    %v3413 = vpop.f32.mrf.mxu0
    %v3414 = vadd.f32 %v3396, %v3413
    %v3415 = vpop.f32.mrf.mxu0
    %3416 = vdwg.mxu0
    %3417 = vmatpush.bf16.msra.mxu0 %v2238
    %3418 = vmatpush.bf16.msra.mxu0 %v2233
    %3419 = vmatpush.bf16.msra.mxu0 %v2228
    %3420 = vmatpush.bf16.msra.mxu0 %v2223
    %3421 = vmatpush.bf16.msra.mxu0 %v2218
    %3422 = vmatpush.bf16.msra.mxu0 %v2213
    %3423 = vmatpush.bf16.msra.mxu0 %v2208
    %3424 = vmatpush.bf16.msra.mxu0 %v2203
    %3425 = vmatmul.bf16.gmra.mxu0 %v206
    %v3426 = vpop.f32.mrf.mxu0
    %v3427 = vadd.f32 %v3409, %v3426
    %v3428 = vpop.f32.mrf.mxu0
    %v3429 = vadd.f32 %v3411, %v3428
    %3430 = vmatmul.bf16.gmra.mxu0 %v209
    %v3431 = vpop.f32.mrf.mxu0
    %v3432 = vadd.f32 %v3414, %v3431
    %v3433 = vpop.f32.mrf.mxu0
    %3434 = vdwg.mxu0
    %3435 = vmatpush.bf16.msra.mxu0 %v2278
    %3436 = vmatpush.bf16.msra.mxu0 %v2273
    %3437 = vmatpush.bf16.msra.mxu0 %v2268
    %3438 = vmatpush.bf16.msra.mxu0 %v2263
    %3439 = vmatpush.bf16.msra.mxu0 %v2258
    %3440 = vmatpush.bf16.msra.mxu0 %v2253
    %3441 = vmatpush.bf16.msra.mxu0 %v2248
    %3442 = vmatpush.bf16.msra.mxu0 %v2243
    %3443 = vmatmul.bf16.gmra.mxu0 %v266
    %v3444 = vpop.f32.mrf.mxu0
    %v3445 = vadd.f32 %v3427, %v3444
    %v3446 = vpop.f32.mrf.mxu0
    %v3447 = vadd.f32 %v3429, %v3446
    %3448 = vmatmul.bf16.gmra.mxu0 %v270
    %v3449 = vpop.f32.mrf.mxu0
    %v3450 = vadd.f32 %v3432, %v3449
    %v3451 = vpop.f32.mrf.mxu0
    %3452 = vdwg.mxu0
    %3453 = vmatpush.bf16.msra.mxu0 %v2318
    %3454 = vmatpush.bf16.msra.mxu0 %v2313
    %3455 = vmatpush.bf16.msra.mxu0 %v2308
    %3456 = vmatpush.bf16.msra.mxu0 %v2303
    %3457 = vmatpush.bf16.msra.mxu0 %v2298
    %3458 = vmatpush.bf16.msra.mxu0 %v2293
    %3459 = vmatpush.bf16.msra.mxu0 %v2288
    %3460 = vmatpush.bf16.msra.mxu0 %v2283
    %3461 = vmatmul.bf16.gmra.mxu0 %v245
    %v3462 = vpop.f32.mrf.mxu0
    %v3463 = vadd.f32 %v3445, %v3462
    %v3464 = vpop.f32.mrf.mxu0
    %v3465 = vadd.f32 %v3447, %v3464
    %3466 = vmatmul.bf16.gmra.mxu0 %v248
    %v3467 = vpop.f32.mrf.mxu0
    %v3468 = vadd.f32 %v3450, %v3467
    %v3469 = vpop.f32.mrf.mxu0
    %3470 = vdwg.mxu0
    %3471 = vmatpush.bf16.msra.mxu0 %v2358
    %3472 = vmatpush.bf16.msra.mxu0 %v2353
    %3473 = vmatpush.bf16.msra.mxu0 %v2348
    %3474 = vmatpush.bf16.msra.mxu0 %v2343
    %3475 = vmatpush.bf16.msra.mxu0 %v2338
    %3476 = vmatpush.bf16.msra.mxu0 %v2333
    %3477 = vmatpush.bf16.msra.mxu0 %v2328
    %3478 = vmatpush.bf16.msra.mxu0 %v2323
    %3479 = vmatmul.bf16.gmra.mxu0 %v246
    %v3480 = vpop.f32.mrf.mxu0
    %v3481 = vadd.f32 %v3463, %v3480
    %v3482 = vpop.f32.mrf.mxu0
    %v3483 = vadd.f32 %v3465, %v3482
    %3484 = vmatmul.bf16.gmra.mxu0 %v249
    %v3485 = vpop.f32.mrf.mxu0
    %v3486 = vadd.f32 %v3468, %v3485
    %v3487 = vpop.f32.mrf.mxu0
    %3488 = vdwg.mxu0
    %3489 = vmatpush.bf16.msra.mxu0 0
    %3490 = vmatpush.bf16.msra.mxu0 0
    %3491 = vmatpush.bf16.msra.mxu0 %v2388
    %3492 = vmatpush.bf16.msra.mxu0 %v2383
    %3493 = vmatpush.bf16.msra.mxu0 %v2378
    %3494 = vmatpush.bf16.msra.mxu0 %v2373
    %3495 = vmatpush.bf16.msra.mxu0 %v2368
    %3496 = vmatpush.bf16.msra.mxu0 %v2363
    %3497 = vmatmul.bf16.gmra.mxu0 %v2782
    %v3498 = vpop.f32.mrf.mxu0
    %v3499 = vadd.f32 %v3481, %v3498
    %v3500 = vpop.f32.mrf.mxu0
    %v3501 = vadd.f32 %v3483, %v3500
    %3502 = vmatmul.bf16.gmra.mxu0 %v2785
    %v3503 = vpop.f32.mrf.mxu0
    %v3504 = vadd.f32 %v3486, %v3503
    %v3505 = vpop.f32.mrf.mxu0
    %3506 = vdwg.mxu0
    %3507 = vmatpush.bf16.msra.mxu0 %v2039
    %3508 = vmatpush.bf16.msra.mxu0 %v2034
    %3509 = vmatpush.bf16.msra.mxu0 %v2029
    %3510 = vmatpush.bf16.msra.mxu0 %v2024
    %3511 = vmatpush.bf16.msra.mxu0 %v2019
    %3512 = vmatpush.bf16.msra.mxu0 %v2014
    %3513 = vmatpush.bf16.msra.mxu0 %v2009
    %3514 = vmatpush.bf16.msra.mxu0 %v2004
    %3515 = vmatmul.bf16.gmra.mxu0 %v103
    %v3516 = vpop.f32.mrf.mxu0
    %v3517 = vadd.f32 %v746, %v3516
    %v3518 = vpop.f32.mrf.mxu0
    %v3519 = vadd.f32 %v746, %v3518
    %3520 = vmatmul.bf16.gmra.mxu0 %v107
    %v3521 = vpop.f32.mrf.mxu0
    %v3522 = vadd.f32 %v746, %v3521
    %v3523 = vpop.f32.mrf.mxu0
    %3524 = vdwg.mxu0
    %3525 = vmatpush.bf16.msra.mxu0 %v2079
    %3526 = vmatpush.bf16.msra.mxu0 %v2074
    %3527 = vmatpush.bf16.msra.mxu0 %v2069
    %3528 = vmatpush.bf16.msra.mxu0 %v2064
    %3529 = vmatpush.bf16.msra.mxu0 %v2059
    %3530 = vmatpush.bf16.msra.mxu0 %v2054
    %3531 = vmatpush.bf16.msra.mxu0 %v2049
    %3532 = vmatpush.bf16.msra.mxu0 %v2044
    %3533 = vmatmul.bf16.gmra.mxu0 %v104
    %v3534 = vpop.f32.mrf.mxu0
    %v3535 = vadd.f32 %v3517, %v3534
    %v3536 = vpop.f32.mrf.mxu0
    %v3537 = vadd.f32 %v3519, %v3536
    %3538 = vmatmul.bf16.gmra.mxu0 %v108
    %v3539 = vpop.f32.mrf.mxu0
    %v3540 = vadd.f32 %v3522, %v3539
    %v3541 = vpop.f32.mrf.mxu0
    %3542 = vdwg.mxu0
    %3543 = vmatpush.bf16.msra.mxu0 %v2119
    %3544 = vmatpush.bf16.msra.mxu0 %v2114
    %3545 = vmatpush.bf16.msra.mxu0 %v2109
    %3546 = vmatpush.bf16.msra.mxu0 %v2104
    %3547 = vmatpush.bf16.msra.mxu0 %v2099
    %3548 = vmatpush.bf16.msra.mxu0 %v2094
    %3549 = vmatpush.bf16.msra.mxu0 %v2089
    %3550 = vmatpush.bf16.msra.mxu0 %v2084
    %3551 = vmatmul.bf16.gmra.mxu0 %v105
    %v3552 = vpop.f32.mrf.mxu0
    %v3553 = vadd.f32 %v3535, %v3552
    %v3554 = vpop.f32.mrf.mxu0
    %v3555 = vadd.f32 %v3537, %v3554
    %3556 = vmatmul.bf16.gmra.mxu0 %v109
    %v3557 = vpop.f32.mrf.mxu0
    %v3558 = vadd.f32 %v3540, %v3557
    %v3559 = vpop.f32.mrf.mxu0
    %3560 = vdwg.mxu0
    %3561 = vmatpush.bf16.msra.mxu0 %v2159
    %3562 = vmatpush.bf16.msra.mxu0 %v2154
    %3563 = vmatpush.bf16.msra.mxu0 %v2149
    %3564 = vmatpush.bf16.msra.mxu0 %v2144
    %3565 = vmatpush.bf16.msra.mxu0 %v2139
    %3566 = vmatpush.bf16.msra.mxu0 %v2134
    %3567 = vmatpush.bf16.msra.mxu0 %v2129
    %3568 = vmatpush.bf16.msra.mxu0 %v2124
    %3569 = vmatmul.bf16.gmra.mxu0 %v257
    %v3570 = vpop.f32.mrf.mxu0
    %v3571 = vadd.f32 %v3553, %v3570
    %v3572 = vpop.f32.mrf.mxu0
    %v3573 = vadd.f32 %v3555, %v3572
    %3574 = vmatmul.bf16.gmra.mxu0 %v261
    %v3575 = vpop.f32.mrf.mxu0
    %v3576 = vadd.f32 %v3558, %v3575
    %v3577 = vpop.f32.mrf.mxu0
    %3578 = vdwg.mxu0
    %3579 = vmatpush.bf16.msra.mxu0 %v2199
    %3580 = vmatpush.bf16.msra.mxu0 %v2194
    %3581 = vmatpush.bf16.msra.mxu0 %v2189
    %3582 = vmatpush.bf16.msra.mxu0 %v2184
    %3583 = vmatpush.bf16.msra.mxu0 %v2179
    %3584 = vmatpush.bf16.msra.mxu0 %v2174
    %3585 = vmatpush.bf16.msra.mxu0 %v2169
    %3586 = vmatpush.bf16.msra.mxu0 %v2164
    %3587 = vmatmul.bf16.gmra.mxu0 %v205
    %v3588 = vpop.f32.mrf.mxu0
    %v3589 = vadd.f32 %v3571, %v3588
    %v3590 = vpop.f32.mrf.mxu0
    %v3591 = vadd.f32 %v3573, %v3590
    %3592 = vmatmul.bf16.gmra.mxu0 %v208
    %v3593 = vpop.f32.mrf.mxu0
    %v3594 = vadd.f32 %v3576, %v3593
    %v3595 = vpop.f32.mrf.mxu0
    %3596 = vdwg.mxu0
    %3597 = vmatpush.bf16.msra.mxu0 %v2239
    %3598 = vmatpush.bf16.msra.mxu0 %v2234
    %3599 = vmatpush.bf16.msra.mxu0 %v2229
    %3600 = vmatpush.bf16.msra.mxu0 %v2224
    %3601 = vmatpush.bf16.msra.mxu0 %v2219
    %3602 = vmatpush.bf16.msra.mxu0 %v2214
    %3603 = vmatpush.bf16.msra.mxu0 %v2209
    %3604 = vmatpush.bf16.msra.mxu0 %v2204
    %3605 = vmatmul.bf16.gmra.mxu0 %v206
    %v3606 = vpop.f32.mrf.mxu0
    %v3607 = vadd.f32 %v3589, %v3606
    %v3608 = vpop.f32.mrf.mxu0
    %v3609 = vadd.f32 %v3591, %v3608
    %3610 = vmatmul.bf16.gmra.mxu0 %v209
    %v3611 = vpop.f32.mrf.mxu0
    %v3612 = vadd.f32 %v3594, %v3611
    %v3613 = vpop.f32.mrf.mxu0
    %3614 = vdwg.mxu0
    %3615 = vmatpush.bf16.msra.mxu0 %v2279
    %3616 = vmatpush.bf16.msra.mxu0 %v2274
    %3617 = vmatpush.bf16.msra.mxu0 %v2269
    %3618 = vmatpush.bf16.msra.mxu0 %v2264
    %3619 = vmatpush.bf16.msra.mxu0 %v2259
    %3620 = vmatpush.bf16.msra.mxu0 %v2254
    %3621 = vmatpush.bf16.msra.mxu0 %v2249
    %3622 = vmatpush.bf16.msra.mxu0 %v2244
    %3623 = vmatmul.bf16.gmra.mxu0 %v266
    %v3624 = vpop.f32.mrf.mxu0
    %v3625 = vadd.f32 %v3607, %v3624
    %v3626 = vpop.f32.mrf.mxu0
    %v3627 = vadd.f32 %v3609, %v3626
    %3628 = vmatmul.bf16.gmra.mxu0 %v270
    %v3629 = vpop.f32.mrf.mxu0
    %v3630 = vadd.f32 %v3612, %v3629
    %v3631 = vpop.f32.mrf.mxu0
    %3632 = vdwg.mxu0
    %3633 = vmatpush.bf16.msra.mxu0 %v2319
    %3634 = vmatpush.bf16.msra.mxu0 %v2314
    %3635 = vmatpush.bf16.msra.mxu0 %v2309
    %3636 = vmatpush.bf16.msra.mxu0 %v2304
    %3637 = vmatpush.bf16.msra.mxu0 %v2299
    %3638 = vmatpush.bf16.msra.mxu0 %v2294
    %3639 = vmatpush.bf16.msra.mxu0 %v2289
    %3640 = vmatpush.bf16.msra.mxu0 %v2284
    %3641 = vmatmul.bf16.gmra.mxu0 %v245
    %v3642 = vpop.f32.mrf.mxu0
    %v3643 = vadd.f32 %v3625, %v3642
    %v3644 = vpop.f32.mrf.mxu0
    %v3645 = vadd.f32 %v3627, %v3644
    %3646 = vmatmul.bf16.gmra.mxu0 %v248
    %v3647 = vpop.f32.mrf.mxu0
    %v3648 = vadd.f32 %v3630, %v3647
    %v3649 = vpop.f32.mrf.mxu0
    %3650 = vdwg.mxu0
    %3651 = vmatpush.bf16.msra.mxu0 %v2359
    %3652 = vmatpush.bf16.msra.mxu0 %v2354
    %3653 = vmatpush.bf16.msra.mxu0 %v2349
    %3654 = vmatpush.bf16.msra.mxu0 %v2344
    %3655 = vmatpush.bf16.msra.mxu0 %v2339
    %3656 = vmatpush.bf16.msra.mxu0 %v2334
    %3657 = vmatpush.bf16.msra.mxu0 %v2329
    %3658 = vmatpush.bf16.msra.mxu0 %v2324
    %3659 = vmatmul.bf16.gmra.mxu0 %v246
    %v3660 = vpop.f32.mrf.mxu0
    %v3661 = vadd.f32 %v3643, %v3660
    %v3662 = vpop.f32.mrf.mxu0
    %v3663 = vadd.f32 %v3645, %v3662
    %3664 = vmatmul.bf16.gmra.mxu0 %v249
    %v3665 = vpop.f32.mrf.mxu0
    %v3666 = vadd.f32 %v3648, %v3665
    %v3667 = vpop.f32.mrf.mxu0
    %3668 = vdwg.mxu0
    %3669 = vmatpush.bf16.msra.mxu0 0
    %3670 = vmatpush.bf16.msra.mxu0 0
    %3671 = vmatpush.bf16.msra.mxu0 %v2389
    %3672 = vmatpush.bf16.msra.mxu0 %v2384
    %3673 = vmatpush.bf16.msra.mxu0 %v2379
    %3674 = vmatpush.bf16.msra.mxu0 %v2374
    %3675 = vmatpush.bf16.msra.mxu0 %v2369
    %3676 = vmatpush.bf16.msra.mxu0 %v2364
    %3677 = vmatmul.bf16.gmra.mxu0 %v2782
    %v3678 = vpop.f32.mrf.mxu0
    %v3679 = vadd.f32 %v3661, %v3678
    %v3680 = vpop.f32.mrf.mxu0
    %v3681 = vadd.f32 %v3663, %v3680
    %3682 = vmatmul.bf16.gmra.mxu0 %v2785
    %v3683 = vpop.f32.mrf.mxu0
    %v3684 = vadd.f32 %v3666, %v3683
    %v3685 = vpop.f32.mrf.mxu0
    %3686 = vdwg.mxu0
    %v3687 = vmax.f32 %v2959, 0.0
    %v3688 = vmax.f32 %v3139, 0.0
    %v3689 = vmax.f32 %v3319, 0.0
    %v3690 = vmax.f32 %v3499, 0.0
    %v3691 = vmax.f32 %v3679, 0.0
    %v3692 = vmax.f32 %v2961, 0.0
    %v3693 = vmax.f32 %v3141, 0.0
    %v3694 = vmax.f32 %v3321, 0.0
    %v3695 = vmax.f32 %v3501, 0.0
    %v3696 = vmax.f32 %v3681, 0.0
    %v3697 = vmax.f32 %v2964, 0.0
    %v3698 = vmax.f32 %v3144, 0.0
    %v3699 = vmax.f32 %v3324, 0.0
    %v3700 = vmax.f32 %v3504, 0.0
    %v3701 = vmax.f32 %v3684, 0.0
    %3711 = vrot.lane.b32.xlu0 %v3689, 64
    %v3712 = vpop.permute.xlu0 %3711
    %3713 = vrot.lane.b32.xlu0 %v3690, 64
    %v3714 = vpop.permute.xlu0 %3713
    %3715 = vrot.lane.b32.xlu0 %v3691, 64
    %v3716 = vpop.permute.xlu0 %3715
    %3717 = vrot.lane.b32.xlu0 %v3694, 64
    %v3718 = vpop.permute.xlu0 %3717
    %3719 = vrot.lane.b32.xlu0 %v3695, 64
    %v3720 = vpop.permute.xlu0 %3719
    %3721 = vrot.lane.b32.xlu0 %v3696, 64
    %v3722 = vpop.permute.xlu0 %3721
    %3723 = vrot.lane.b32.xlu0 %v3699, 64
    %v3724 = vpop.permute.xlu0 %3723
    %3725 = vrot.lane.b32.xlu0 %v3700, 64
    %v3726 = vpop.permute.xlu0 %3725
    %3727 = vrot.lane.b32.xlu0 %v3701, 64
    %v3728 = vpop.permute.xlu0 %3727
    %v3729 = vsel %vm263, %v3712, %v3714
    %v3730 = vsel %vm263, %v3714, %v3716
    %v3731 = vsel %vm263, %v3718, %v3720
    %v3732 = vsel %vm263, %v3720, %v3722
    %v3733 = vsel %vm263, %v3724, %v3726
    %v3734 = vsel %vm263, %v3726, %v3728
    %v3744 = vmax.f32 %v3687, %v3729
    %v3745 = vmax.f32 %v3688, %v3730
    %v3746 = vmax.f32 %v3689, %v3716
    %v3747 = vmax.f32 %v3692, %v3731
    %v3748 = vmax.f32 %v3693, %v3732
    %v3749 = vmax.f32 %v3694, %v3722
    %v3750 = vmax.f32 %v3697, %v3733
    %v3751 = vmax.f32 %v3698, %v3734
    %v3752 = vmax.f32 %v3699, %v3728
    %vm3762 = vcmask 1046528
    %v3763 = vrot.slane %v3744, 1
    %v3764 = vrot.slane %v3747, 1
    %v3765 = vsel %vm3762, %v3763, %v3764
    %v3766 = vrot.slane %v3745, 1
    %v3767 = vrot.slane %v3748, 1
    %v3768 = vsel %vm3762, %v3766, %v3767
    %v3769 = vrot.slane %v3746, 1
    %v3770 = vrot.slane %v3749, 1
    %v3771 = vsel %vm3762, %v3769, %v3770
    %v3772 = vrot.slane %v3750, 1
    %v3773 = vsel %vm3762, %v3764, %v3772
    %v3774 = vrot.slane %v3751, 1
    %v3775 = vsel %vm3762, %v3767, %v3774
    %v3776 = vrot.slane %v3752, 1
    %v3777 = vsel %vm3762, %v3770, %v3776
    %v3787 = vsel %vm3762, %v3772, %v3750
    %v3788 = vsel %vm3762, %v3774, %v3751
    %v3789 = vsel %vm3762, %v3776, %v3752
    %v3790 = vmax.f32 %v3744, %v3765
    %v3791 = vmax.f32 %v3745, %v3768
    %v3792 = vmax.f32 %v3746, %v3771
    %v3793 = vmax.f32 %v3747, %v3773
    %v3794 = vmax.f32 %v3748, %v3775
    %v3795 = vmax.f32 %v3749, %v3777
    %v3796 = vmax.f32 %v3750, %v3787
    %v3797 = vmax.f32 %v3751, %v3788
    %v3798 = vmax.f32 %v3752, %v3789
    %v3799 = vld [vmem:[#allocation6] sm:$0x1f]
    %vm3800 = vcmask 80896
    %v3802 = vsel %vm3800, %v3799, 0
    %vm3804 = vcmask 1041408
    %v3806 = vsel %vm3804, %v3793, 0
    %v3809 = vsel %vm3804, %v3794, 0
    %v3812 = vsel %vm3804, %v3795, 0
    %3814 = vmatpush.msra.mxu0 0.0
    %3815 = vmatpush.msra.mxu0 0.0
    %3816 = vmatpush.msra.mxu0 0.0
    %3817 = vmatpush.msra.mxu0 0.0
    %3818 = vmatpush.msra.mxu0 0.0
    %3819 = vmatpush.msra.mxu0 0.0
    %3820 = vmatpush.msra.mxu0 0.0
    %3821 = vmatpush.msra.mxu0 0.0
    %3822 = vmatpush.msra.mxu0 0.0
    %3823 = vmatpush.msra.mxu0 0.0
    %3824 = vmatpush.msra.mxu0 0.0
    %3825 = vmatpush.msra.mxu0 0.0
    %3826 = vmatpush.msra.mxu0 0.0
    %3827 = vmatpush.msra.mxu0 0.0
    %3828 = vmatpush.msra.mxu0 %v3806
    %3829 = vmatpush.msra.mxu0 %v3790
    %3830 = vmatmul.f32.gmra.mxu0 %v3802
    %v3831 = vpop.f32.mrf.mxu0
    %v3832 = vadd.f32 0.0, %v3831
    %3833 = vdwg.mxu0
    %3834 = vmatpush.msra.mxu0 0.0
    %3835 = vmatpush.msra.mxu0 0.0
    %3836 = vmatpush.msra.mxu0 0.0
    %3837 = vmatpush.msra.mxu0 0.0
    %3838 = vmatpush.msra.mxu0 0.0
    %3839 = vmatpush.msra.mxu0 0.0
    %3840 = vmatpush.msra.mxu0 0.0
    %3841 = vmatpush.msra.mxu0 0.0
    %3842 = vmatpush.msra.mxu0 0.0
    %3843 = vmatpush.msra.mxu0 0.0
    %3844 = vmatpush.msra.mxu0 0.0
    %3845 = vmatpush.msra.mxu0 0.0
    %3846 = vmatpush.msra.mxu0 0.0
    %3847 = vmatpush.msra.mxu0 0.0
    %3848 = vmatpush.msra.mxu0 %v3809
    %3849 = vmatpush.msra.mxu0 %v3791
    %3850 = vmatmul.f32.gmra.mxu0 %v3802
    %v3851 = vpop.f32.mrf.mxu0
    %v3852 = vadd.f32 0.0, %v3851
    %3853 = vdwg.mxu0
    %3854 = vmatpush.msra.mxu0 0.0
    %3855 = vmatpush.msra.mxu0 0.0
    %3856 = vmatpush.msra.mxu0 0.0
    %3857 = vmatpush.msra.mxu0 0.0
    %3858 = vmatpush.msra.mxu0 0.0
    %3859 = vmatpush.msra.mxu0 0.0
    %3860 = vmatpush.msra.mxu0 0.0
    %3861 = vmatpush.msra.mxu0 0.0
    %3862 = vmatpush.msra.mxu0 0.0
    %3863 = vmatpush.msra.mxu0 0.0
    %3864 = vmatpush.msra.mxu0 0.0
    %3865 = vmatpush.msra.mxu0 0.0
    %3866 = vmatpush.msra.mxu0 0.0
    %3867 = vmatpush.msra.mxu0 0.0
    %3868 = vmatpush.msra.mxu0 %v3812
    %3869 = vmatpush.msra.mxu0 %v3792
    %3870 = vmatmul.f32.gmra.mxu0 %v3802
    %v3871 = vpop.f32.mrf.mxu0
    %v3872 = vadd.f32 0.0, %v3871
    %3873 = vdwg.mxu0
    %3874 = vst [vmem:[%s4] sm:$0x1f] %v3832
    %3875 = vst [vmem:[%s4 + $0x8] sm:$0x1f] %v3852
    %vm3876 = vcmask 520192
    %3877 = vst.msk [vmem:[%s4 + $0x10] sm:$0x1f] %vm3876, %v3872
    %v3878 = vld [vmem:[#allocation6] sm:$0x1f]
    %vm3882 = vcmask 1042432
    %v3883 = vrot.slane %v3793, 5
    %v3884 = vrot.slane %v3796, 5
    %v3885 = vsel %vm3882, %v3883, %v3884
    %v3886 = vrot.slane %v3794, 5
    %v3887 = vrot.slane %v3797, 5
    %v3888 = vsel %vm3882, %v3886, %v3887
    %v3889 = vrot.slane %v3795, 5
    %v3890 = vrot.slane %v3798, 5
    %v3891 = vsel %vm3882, %v3889, %v3890
    %v3896 = vsel %vm3800, %v3878, 0
    %v3898 = vsel %vm3804, %v3884, 0
    %v3900 = vsel %vm3804, %v3887, 0
    %v3902 = vsel %vm3804, %v3890, 0
    %3904 = vmatpush.msra.mxu0 0.0
    %3905 = vmatpush.msra.mxu0 0.0
    %3906 = vmatpush.msra.mxu0 0.0
    %3907 = vmatpush.msra.mxu0 0.0
    %3908 = vmatpush.msra.mxu0 0.0
    %3909 = vmatpush.msra.mxu0 0.0
    %3910 = vmatpush.msra.mxu0 0.0
    %3911 = vmatpush.msra.mxu0 0.0
    %3912 = vmatpush.msra.mxu0 0.0
    %3913 = vmatpush.msra.mxu0 0.0
    %3914 = vmatpush.msra.mxu0 0.0
    %3915 = vmatpush.msra.mxu0 0.0
    %3916 = vmatpush.msra.mxu0 0.0
    %3917 = vmatpush.msra.mxu0 0.0
    %3918 = vmatpush.msra.mxu0 %v3898
    %3919 = vmatpush.msra.mxu0 %v3885
    %3920 = vmatmul.f32.gmra.mxu0 %v3896
    %v3921 = vpop.f32.mrf.mxu0
    %v3922 = vadd.f32 0.0, %v3921
    %3923 = vdwg.mxu0
    %3924 = vmatpush.msra.mxu0 0.0
    %3925 = vmatpush.msra.mxu0 0.0
    %3926 = vmatpush.msra.mxu0 0.0
    %3927 = vmatpush.msra.mxu0 0.0
    %3928 = vmatpush.msra.mxu0 0.0
    %3929 = vmatpush.msra.mxu0 0.0
    %3930 = vmatpush.msra.mxu0 0.0
    %3931 = vmatpush.msra.mxu0 0.0
    %3932 = vmatpush.msra.mxu0 0.0
    %3933 = vmatpush.msra.mxu0 0.0
    %3934 = vmatpush.msra.mxu0 0.0
    %3935 = vmatpush.msra.mxu0 0.0
    %3936 = vmatpush.msra.mxu0 0.0
    %3937 = vmatpush.msra.mxu0 0.0
    %3938 = vmatpush.msra.mxu0 %v3900
    %3939 = vmatpush.msra.mxu0 %v3888
    %3940 = vmatmul.f32.gmra.mxu0 %v3896
    %v3941 = vpop.f32.mrf.mxu0
    %v3942 = vadd.f32 0.0, %v3941
    %3943 = vdwg.mxu0
    %3944 = vmatpush.msra.mxu0 0.0
    %3945 = vmatpush.msra.mxu0 0.0
    %3946 = vmatpush.msra.mxu0 0.0
    %3947 = vmatpush.msra.mxu0 0.0
    %3948 = vmatpush.msra.mxu0 0.0
    %3949 = vmatpush.msra.mxu0 0.0
    %3950 = vmatpush.msra.mxu0 0.0
    %3951 = vmatpush.msra.mxu0 0.0
    %3952 = vmatpush.msra.mxu0 0.0
    %3953 = vmatpush.msra.mxu0 0.0
    %3954 = vmatpush.msra.mxu0 0.0
    %3955 = vmatpush.msra.mxu0 0.0
    %3956 = vmatpush.msra.mxu0 0.0
    %3957 = vmatpush.msra.mxu0 0.0
    %3958 = vmatpush.msra.mxu0 %v3902
    %3959 = vmatpush.msra.mxu0 %v3891
    %3960 = vmatmul.f32.gmra.mxu0 %v3896
    %v3961 = vpop.f32.mrf.mxu0
    %v3962 = vadd.f32 0.0, %v3961
    %3963 = vdwg.mxu0
    %v3967 = vrot.slane %v3922, 3
    %v3968 = vrot.slane %v3942, 3
    %v3969 = vrot.slane %v3962, 3
    %3973 = vst [vmem:[%s4] sm:$0xe0] %v3967
    %3974 = vst [vmem:[%s4 + $0x8] sm:$0xe0] %v3968
    %vm3975 = vcmask 523269
    %3976 = vst.msk [vmem:[%s4 + $0x10] sm:$0xe0] %vm3975, %v3969
    %3977 = vst [vmem:[%s4 + $0x18] sm:$0x3] %v3967
    %3978 = vst [vmem:[%s4 + $0x20] sm:$0x3] %v3968
    %vm3979 = vcmask 517120
    %3980 = vst.msk [vmem:[%s4 + $0x28] sm:$0x3] %vm3979, %v3969
    // Predicated region
    $region30: #{cnn_mnist_forward.4} parent=1 // pred_check
      _
    $region31: #{cnn_mnist_forward.4} parent=1 // pred_check_branch
      %3982 = sbr.rel (0) target = $region33
    $region32: #{cnn_mnist_forward.4} parent=1 // pred_region
      _
    $region33: #{cnn_mnist_forward.4} parent=1 // pred_fallthru
      _
    // Predicated region
    $region34: #{cnn_mnist_forward.4} parent=1 // pred_check
      _
    $region35: #{cnn_mnist_forward.4} parent=1 // pred_check_branch
      %3984 = sbr.rel (0) target = $region37
    $region36: #{cnn_mnist_forward.4} parent=1 // pred_region
      _
    $region37: #{cnn_mnist_forward.4} parent=1 // pred_fallthru
      _
    %3985 = vsyncpa [#allocation3], 1
    %3986 = vsyncpa [#allocation5], 1

</llo_original>
